<compile_context>
chip_gen: v7x
topology: tpu7x:2x2x1
jax: 0.10.0
libtpu: 0.0.40
codegen_flags: <defaults>
</compile_context>

<pallas_src>
import functools
import math

import jax
import jax.numpy as jnp
from jax.experimental import pallas as pl
from jax.experimental.pallas import tpu as pltpu


# ---------------------------------------------------------------------------
# Kernel helpers (lane-dense layout: tensors are (feat, vbs), batch on lanes)
# ---------------------------------------------------------------------------
def _batch_norm_t(h, gamma, beta, eps=1e-5):
    """BatchNorm1d (training mode, biased stats) over the lane/batch axis.

    h: (F, vbs); gamma/beta: (F, 1) column vectors.
    """
    mu = jnp.mean(h, axis=-1, keepdims=True)
    var = jnp.mean(jnp.square(h - mu), axis=-1, keepdims=True)
    return (h - mu) * jax.lax.rsqrt(var + eps) * gamma + beta


def _sparsemax_t(z, *, chunk=64):
    """Exact sort-free sparsemax along axis 0 (features) of a (D, vbs) tile.

    All-pairs formulation; the (chunk, D, vbs) comparison cube is chunked over
    the i axis so live intermediates stay bounded regardless of D / tile size
    (important on v7x with 64 MiB VMEM).
    """
    d = z.shape[0]
    z = z - jnp.max(z, axis=0, keepdims=True)
    zj = z[None, :, :]                                    # (1, D, B)
    r_parts, s_parts = [], []
    step = min(chunk, d)
    for i0 in range(0, d, step):
        zi = z[i0:i0 + step][:, None, :]                  # (c, 1, B)
        ge = (zj >= zi).astype(jnp.float32)               # (c, D, B)
        r_parts.append(jnp.sum(ge, axis=1))               # rank (ties counted)
        s_parts.append(jnp.sum(ge * zj, axis=1))          # sum of z_j >= z_i
    r = r_parts[0] if len(r_parts) == 1 else jnp.concatenate(r_parts, axis=0)
    s = s_parts[0] if len(s_parts) == 1 else jnp.concatenate(s_parts, axis=0)
    sup = (1.0 + r * z > s).astype(jnp.float32)           # in support?
    k_sup = jnp.sum(sup, axis=0, keepdims=True)           # support size   (1,B)
    sum_sup = jnp.sum(sup * z, axis=0, keepdims=True)     # sum over supp  (1,B)
    tau = (sum_sup - 1.0) / k_sup
    return jnp.maximum(z - tau, 0.0)


# ---------------------------------------------------------------------------
# Kernel
# ---------------------------------------------------------------------------
def _decision_step_kernel(
    a_ref, p_ref, x_ref,                  # (k, n_a|inp_dim, vbs) activation tiles
    att_w_ref, att_gb_ref,                # attention fc weight + [gamma; beta]
    g0_wv_ref, g0_wg_ref, g0_gb_ref,      # first GLU (inp_dim -> od)
    gr_wv_ref, gr_wg_ref, gr_gb_ref,      # stacked remaining GLUs (od -> od)
    out_ref, loss_ref,
    *, k, n_rest, scale, compute_dtype, sm_chunk):

    # Hoist per-step-invariant weight loads out of the virtual-batch loop.
    att_w = att_w_ref[...]
    att_g, att_b = att_gb_ref[0], att_gb_ref[1]
    g0_wv, g0_wg, g0_gb = g0_wv_ref[...], g0_wg_ref[...], g0_gb_ref[...]
    gr_wv = [gr_wv_ref[i] for i in range(n_rest)]
    gr_wg = [gr_wg_ref[i] for i in range(n_rest)]
    gr_gb = [gr_gb_ref[i] for i in range(n_rest)]

    def glu(hh, wv, wg, gb):
        # fc biases dropped: a per-feature bias feeding training-mode BN is
        # exactly cancelled by the mean subtraction (identical outputs).
        yv = jnp.dot(wv, hh, preferred_element_type=jnp.float32)
        yv = _batch_norm_t(yv, gb[0], gb[1])
        yg = jnp.dot(wg, hh, preferred_element_type=jnp.float32)
        yg = _batch_norm_t(yg, gb[2], gb[3])
        return yv * jax.nn.sigmoid(yg)

    loss_sum = jnp.zeros((1, 1), jnp.float32)

    # k folded virtual batches per grid step; BN stats stay per virtual batch.
    for j in range(k):
        a = a_ref[j].astype(compute_dtype)               # (n_a, vbs)
        priors = p_ref[j]                                # (inp_dim, vbs)
        x = x_ref[j]                                     # (inp_dim, vbs)

        # ---------------- AttentionTransformer ----------------
        h = jnp.dot(att_w, a, preferred_element_type=jnp.float32)
        h = _batch_norm_t(h, att_g, att_b)
        mask = _sparsemax_t(h * priors, chunk=sm_chunk)

        # sparse loss: per-tile SUM of -mask*log(mask+1e-10); normalized outside.
        ent = -mask * jnp.log(mask + 1e-10)
        loss_sum = loss_sum + jnp.sum(
            jnp.sum(ent, axis=0, keepdims=True), axis=1, keepdims=True)

        # ---------------- FeatureTransformer ----------------
        xm = (x * mask).astype(compute_dtype)
        f = glu(xm, g0_wv, g0_wg, g0_gb)
        for i in range(n_rest):                          # small static unroll
            g = glu(f.astype(compute_dtype), gr_wv[i], gr_wg[i], gr_gb[i])
            f = (f + g) * scale

        out_ref[j] = f.astype(out_ref.dtype)             # full-width lane store

    loss_ref[...] = loss_sum[None]                       # (1, 1, 1)


# ---------------------------------------------------------------------------
# Wrapper
# ---------------------------------------------------------------------------
def _choose_fold(num_vb, fold):
    """Largest divisor of num_vb <= fold, keeping >= 2 grid steps when possible."""
    fold = max(1, min(int(fold), num_vb))
    while num_vb % fold:
        fold -= 1
    while fold > 1 and num_vb // fold < 2:   # keep both TensorCores busy (v7x)
        fold -= 1
        while num_vb % fold:
            fold -= 1
    return fold


def _vmem_limit_bytes():
    # Raise the scoped-VMEM cap (default 32 MiB) but keep headroom on parts
    # with less physical VMEM (v7x: 64 MiB per TensorCore -> 48 MiB).
    try:
        phys = pltpu.get_tpu_info().vmem_capacity_bytes
        return int(min(96 * 1024 * 1024, 0.75 * phys))
    except Exception:
        return 48 * 1024 * 1024


def decision_step(x, a, priors, params, *, n_d, n_a, vbs=1024, fold=2,
                  compute_dtype=jnp.bfloat16, sm_chunk=64):
    B, inp_dim = x.shape
    od = n_d + n_a
    n_rest = params["glu_wv"].shape[0]
    scale = float(math.sqrt(0.5))

    # Ghost BatchNorm virtual-batch layout (single batch-wide BN when B <= vbs,
    # matching the PyTorch module).
    vbs_eff = B if B <= vbs else vbs
    # TODO(synk): PyTorch GBN tolerates a ragged final virtual batch; here the
    #             batch must split evenly into virtual batches.
    assert B % vbs_eff == 0, "batch must be a multiple of the ghost-batch size"
    num_vb = B // vbs_eff
    k = _choose_fold(num_vb, fold)
    num_steps = num_vb // k

    # Lane-dense layout plumbing: (B, F) -> (num_vb, F, vbs) so batch is on lanes.
    def to_vb(t):
        return t.reshape(num_vb, vbs_eff, t.shape[-1]).transpose(0, 2, 1)

    a_t, x_t, p_t = to_vb(a), to_vb(x), to_vb(priors)

    def vb_spec(feat):
        return pl.BlockSpec((k, feat, vbs_eff), lambda i: (i, 0, 0))

    def full_spec(arr):
        return pl.BlockSpec(arr.shape, lambda i, _n=arr.ndim: (0,) * _n)

    kernel = functools.partial(
        _decision_step_kernel, k=k, n_rest=n_rest, scale=scale,
        compute_dtype=compute_dtype, sm_chunk=sm_chunk)

    out_shapes = (jax.ShapeDtypeStruct((num_vb, od, vbs_eff), jnp.float32),
                  jax.ShapeDtypeStruct((num_steps, 1, 1), jnp.float32))
    out_specs = (pl.BlockSpec((k, od, vbs_eff), lambda i: (i, 0, 0)),
                 pl.BlockSpec((1, 1, 1), lambda i: (i, 0, 0)))

    in_specs = [
        vb_spec(n_a),                        # a
        vb_spec(inp_dim),                    # priors
        vb_spec(inp_dim),                    # x
        full_spec(params["att_w"]),          # attention fc weight (inp_dim, n_a)
        full_spec(params["att_gb"]),         # attention BN gamma/beta
        full_spec(params["glu0_wv"]),        # GLU0 value weight
        full_spec(params["glu0_wg"]),        # GLU0 gate weight
        full_spec(params["glu0_gb"]),        # GLU0 BN gamma/beta
        full_spec(params["glu_wv"]),         # rest GLU value weights (stacked)
        full_spec(params["glu_wg"]),         # rest GLU gate weights (stacked)
        full_spec(params["glu_gb"]),         # rest GLU BN gamma/beta (stacked)
    ]

    out_t, loss_partials = pl.pallas_call(
        kernel,
        grid=(num_steps,),
        out_shape=out_shapes,
        in_specs=in_specs,
        out_specs=out_specs,
        compiler_params=pltpu.CompilerParams(
            dimension_semantics=("parallel",),
            vmem_limit_bytes=_vmem_limit_bytes()),
    )(a_t, p_t, x_t,
      params["att_w"], params["att_gb"],
      params["glu0_wv"], params["glu0_wg"], params["glu0_gb"],
      params["glu_wv"], params["glu_wg"], params["glu_gb"])

    out = out_t.transpose(0, 2, 1).reshape(B, od)
    # mean over the full [B, inp_dim] mask; per-tile partial sums reduced here
    # so the batch grid axis stays fully parallel for megacore sharding.
    sparse_loss = jnp.sum(loss_partials) / float(B * inp_dim)
    return out, sparse_loss


# ---------------------------------------------------------------------------
# Deterministic synthetic parameters matching DecisionStep's shapes
# (kernel-ready: GLU value/gate split, bf16 cast done ONCE here, no per-call casts)
# ---------------------------------------------------------------------------
def init_params(key, inp_dim, n_d, n_a, n_shared=2, n_ind=2,
                compute_dtype=jnp.bfloat16):
    od = n_d + n_a
    ks = jax.random.split(key, 3)
    f32 = jnp.float32

    def bn_cols(feat):  # (2, feat, 1): [gamma; beta] column vectors
        return jnp.stack(
            [jnp.ones((feat, 1), f32), jnp.zeros((feat, 1), f32)], axis=0)

    # AttentionTransformer: Linear(n_a, inp_dim) + GBN(inp_dim).
    # fc bias omitted: it is exactly cancelled by training-mode BN mean-subtraction.
    att_w = (0.1 * jax.random.normal(ks[0], (inp_dim, n_a), f32)).astype(compute_dtype)
    att_gb = bn_cols(inp_dim)                                  # (2, inp_dim, 1)

    # FeatureTransformer GLUs:
    #   shared[0]: Linear(inp_dim, 2*od)                       -> glu0
    #   shared[1:], independ (n_ind): Linear(od, 2*od)         -> stacked "rest"
    g0_w = 0.1 * jax.random.normal(ks[1], (2 * od, inp_dim), f32)
    glu0_wv = g0_w[:od].astype(compute_dtype)                  # (od, inp_dim)
    glu0_wg = g0_w[od:].astype(compute_dtype)
    glu0_gb = jnp.concatenate([bn_cols(od), bn_cols(od)], axis=0)   # (4, od, 1)

    n_rest = (n_shared - 1) + n_ind
    gw = 0.1 * jax.random.normal(ks[2], (n_rest, 2 * od, od), f32)
    glu_wv = gw[:, :od, :].astype(compute_dtype)               # (n_rest, od, od)
    glu_wg = gw[:, od:, :].astype(compute_dtype)
    glu_gb = jnp.tile(glu0_gb[None], (n_rest, 1, 1, 1))        # (n_rest, 4, od, 1)

    return dict(att_w=att_w, att_gb=att_gb,
                glu0_wv=glu0_wv, glu0_wg=glu0_wg, glu0_gb=glu0_gb,
                glu_wv=glu_wv, glu_wg=glu_wg, glu_gb=glu_gb)


if __name__ == "__main__":
    # Small, module-consistent shapes: inp_dim=16, n_d=8, n_a=8, 2 shared GLU fcs,
    # n_ind=2.  vbs=128 with batch=512 -> 4 virtual batches, 2 folded per grid
    # step -> a 2-step "parallel" grid (exercises folding + megacore path).
    B, inp_dim, n_d, n_a, vbs = 512, 16, 8, 8, 128

    key = jax.random.PRNGKey(0)
    k_x, k_a, k_p = jax.random.split(key, 3)
    x = jax.random.normal(k_x, (B, inp_dim), jnp.float32)
    a = jax.random.normal(k_a, (B, n_a), jnp.float32)
    priors = jnp.ones((B, inp_dim), jnp.float32)   # TabNet initial priors

    params = init_params(k_p, inp_dim, n_d, n_a, n_shared=2, n_ind=2)

    out, sparse_loss = decision_step(x, a, priors, params,
                                     n_d=n_d, n_a=n_a, vbs=vbs, fold=2)
    jax.block_until_ready((out, sparse_loss))
    print("KERNEL_OK")
</pallas_src>

<mosaic_0001>
module attributes {stable_mosaic.version = 11 : i64} {
  func.func @_decision_step_kernel(%arg0: i32, %arg1: memref<2x8x128xf32, #tpu.memory_space<vmem>>, %arg2: memref<2x16x128xf32, #tpu.memory_space<vmem>>, %arg3: memref<2x16x128xf32, #tpu.memory_space<vmem>>, %arg4: memref<16x8xbf16, #tpu.memory_space<vmem>>, %arg5: memref<2x16x1xf32, #tpu.memory_space<vmem>>, %arg6: memref<16x16xbf16, #tpu.memory_space<vmem>>, %arg7: memref<16x16xbf16, #tpu.memory_space<vmem>>, %arg8: memref<4x16x1xf32, #tpu.memory_space<vmem>>, %arg9: memref<3x16x16xbf16, #tpu.memory_space<vmem>>, %arg10: memref<3x16x16xbf16, #tpu.memory_space<vmem>>, %arg11: memref<3x4x16x1xf32, #tpu.memory_space<vmem>>, %arg12: memref<2x16x128xf32, #tpu.memory_space<vmem>>, %arg13: memref<1x1x1xf32, #tpu.memory_space<vmem>>) attributes {dimension_semantics = [#tpu.dimension_semantics<parallel>], iteration_bounds = array<i64: 2>, scalar_prefetch = 0 : i64, scratch_operands = 0 : i64, tpu.core_type = #tpu.core_type<tc>, window_params = [{transform_indices = @transform_0, window_bounds = array<i64: 2, 8, 128>}, {transform_indices = @transform_1, window_bounds = array<i64: 2, 16, 128>}, {transform_indices = @transform_2, window_bounds = array<i64: 2, 16, 128>}, {pipeline_mode = #tpu.pipeline_mode<synchronous>, transform_indices = @transform_3, window_bounds = array<i64: 16, 8>}, {pipeline_mode = #tpu.pipeline_mode<synchronous>, transform_indices = @transform_4, window_bounds = array<i64: 2, 16, 1>}, {pipeline_mode = #tpu.pipeline_mode<synchronous>, transform_indices = @transform_5, window_bounds = array<i64: 16, 16>}, {pipeline_mode = #tpu.pipeline_mode<synchronous>, transform_indices = @transform_6, window_bounds = array<i64: 16, 16>}, {pipeline_mode = #tpu.pipeline_mode<synchronous>, transform_indices = @transform_7, window_bounds = array<i64: 4, 16, 1>}, {pipeline_mode = #tpu.pipeline_mode<synchronous>, transform_indices = @transform_8, window_bounds = array<i64: 3, 16, 16>}, {pipeline_mode = #tpu.pipeline_mode<synchronous>, transform_indices = @transform_9, window_bounds = array<i64: 3, 16, 16>}, {pipeline_mode = #tpu.pipeline_mode<synchronous>, transform_indices = @transform_10, window_bounds = array<i64: 3, 4, 16, 1>}, {transform_indices = @transform_11, window_bounds = array<i64: 2, 16, 128>}, {transform_indices = @transform_12, window_bounds = array<i64: 1, 1, 1>}]} {
    %c0 = arith.constant 0 : index
    %c0_0 = arith.constant 0 : index
    %0 = vector.load %arg4[%c0, %c0_0] : memref<16x8xbf16, #tpu.memory_space<vmem>>, vector<16x8xbf16>
    %c0_1 = arith.constant 0 : index
    %c0_2 = arith.constant 0 : index
    %c0_3 = arith.constant 0 : index
    %1 = vector.load %arg5[%c0_1, %c0_2, %c0_3] : memref<2x16x1xf32, #tpu.memory_space<vmem>>, vector<1x16x1xf32>
    %2 = vector.shape_cast %1 : vector<1x16x1xf32> to vector<16x1xf32>
    %c1 = arith.constant 1 : index
    %c0_4 = arith.constant 0 : index
    %c0_5 = arith.constant 0 : index
    %3 = vector.load %arg5[%c1, %c0_4, %c0_5] : memref<2x16x1xf32, #tpu.memory_space<vmem>>, vector<1x16x1xf32>
    %4 = vector.shape_cast %3 : vector<1x16x1xf32> to vector<16x1xf32>
    %c0_6 = arith.constant 0 : index
    %c0_7 = arith.constant 0 : index
    %5 = vector.load %arg6[%c0_6, %c0_7] : memref<16x16xbf16, #tpu.memory_space<vmem>>, vector<16x16xbf16>
    %c0_8 = arith.constant 0 : index
    %c0_9 = arith.constant 0 : index
    %6 = vector.load %arg7[%c0_8, %c0_9] : memref<16x16xbf16, #tpu.memory_space<vmem>>, vector<16x16xbf16>
    %c0_10 = arith.constant 0 : index
    %c0_11 = arith.constant 0 : index
    %c0_12 = arith.constant 0 : index
    %7 = vector.load %arg8[%c0_10, %c0_11, %c0_12] : memref<4x16x1xf32, #tpu.memory_space<vmem>>, vector<4x16x1xf32>
    %c0_13 = arith.constant 0 : index
    %c0_14 = arith.constant 0 : index
    %c0_15 = arith.constant 0 : index
    %8 = vector.load %arg9[%c0_13, %c0_14, %c0_15] : memref<3x16x16xbf16, #tpu.memory_space<vmem>>, vector<1x16x16xbf16>
    %9 = vector.shape_cast %8 : vector<1x16x16xbf16> to vector<16x16xbf16>
    %c1_16 = arith.constant 1 : index
    %c0_17 = arith.constant 0 : index
    %c0_18 = arith.constant 0 : index
    %10 = vector.load %arg9[%c1_16, %c0_17, %c0_18] : memref<3x16x16xbf16, #tpu.memory_space<vmem>>, vector<1x16x16xbf16>
    %11 = vector.shape_cast %10 : vector<1x16x16xbf16> to vector<16x16xbf16>
    %c2 = arith.constant 2 : index
    %c0_19 = arith.constant 0 : index
    %c0_20 = arith.constant 0 : index
    %12 = vector.load %arg9[%c2, %c0_19, %c0_20] : memref<3x16x16xbf16, #tpu.memory_space<vmem>>, vector<1x16x16xbf16>
    %13 = vector.shape_cast %12 : vector<1x16x16xbf16> to vector<16x16xbf16>
    %c0_21 = arith.constant 0 : index
    %c0_22 = arith.constant 0 : index
    %c0_23 = arith.constant 0 : index
    %14 = vector.load %arg10[%c0_21, %c0_22, %c0_23] : memref<3x16x16xbf16, #tpu.memory_space<vmem>>, vector<1x16x16xbf16>
    %15 = vector.shape_cast %14 : vector<1x16x16xbf16> to vector<16x16xbf16>
    %c1_24 = arith.constant 1 : index
    %c0_25 = arith.constant 0 : index
    %c0_26 = arith.constant 0 : index
    %16 = vector.load %arg10[%c1_24, %c0_25, %c0_26] : memref<3x16x16xbf16, #tpu.memory_space<vmem>>, vector<1x16x16xbf16>
    %17 = vector.shape_cast %16 : vector<1x16x16xbf16> to vector<16x16xbf16>
    %c2_27 = arith.constant 2 : index
    %c0_28 = arith.constant 0 : index
    %c0_29 = arith.constant 0 : index
    %18 = vector.load %arg10[%c2_27, %c0_28, %c0_29] : memref<3x16x16xbf16, #tpu.memory_space<vmem>>, vector<1x16x16xbf16>
    %19 = vector.shape_cast %18 : vector<1x16x16xbf16> to vector<16x16xbf16>
    %c0_30 = arith.constant 0 : index
    %c0_31 = arith.constant 0 : index
    %c0_32 = arith.constant 0 : index
    %c0_33 = arith.constant 0 : index
    %20 = vector.load %arg11[%c0_30, %c0_31, %c0_32, %c0_33] : memref<3x4x16x1xf32, #tpu.memory_space<vmem>>, vector<1x4x16x1xf32>
    %21 = vector.shape_cast %20 : vector<1x4x16x1xf32> to vector<4x16x1xf32>
    %c1_34 = arith.constant 1 : index
    %c0_35 = arith.constant 0 : index
    %c0_36 = arith.constant 0 : index
    %c0_37 = arith.constant 0 : index
    %22 = vector.load %arg11[%c1_34, %c0_35, %c0_36, %c0_37] : memref<3x4x16x1xf32, #tpu.memory_space<vmem>>, vector<1x4x16x1xf32>
    %23 = vector.shape_cast %22 : vector<1x4x16x1xf32> to vector<4x16x1xf32>
    %c2_38 = arith.constant 2 : index
    %c0_39 = arith.constant 0 : index
    %c0_40 = arith.constant 0 : index
    %c0_41 = arith.constant 0 : index
    %24 = vector.load %arg11[%c2_38, %c0_39, %c0_40, %c0_41] : memref<3x4x16x1xf32, #tpu.memory_space<vmem>>, vector<1x4x16x1xf32>
    %25 = vector.shape_cast %24 : vector<1x4x16x1xf32> to vector<4x16x1xf32>
    %cst = arith.constant 0.000000e+00 : f32
    %26 = vector.broadcast %cst : f32 to vector<1x1xf32>
    %c0_42 = arith.constant 0 : index
    %c0_43 = arith.constant 0 : index
    %c0_44 = arith.constant 0 : index
    %27 = vector.load %arg1[%c0_42, %c0_43, %c0_44] : memref<2x8x128xf32, #tpu.memory_space<vmem>>, vector<1x8x128xf32>
    %28 = vector.shape_cast %27 : vector<1x8x128xf32> to vector<8x128xf32>
    %29 = arith.truncf %28 : vector<8x128xf32> to vector<8x128xbf16>
    %c0_45 = arith.constant 0 : index
    %c0_46 = arith.constant 0 : index
    %c0_47 = arith.constant 0 : index
    %30 = vector.load %arg2[%c0_45, %c0_46, %c0_47] : memref<2x16x128xf32, #tpu.memory_space<vmem>>, vector<1x16x128xf32>
    %31 = vector.shape_cast %30 : vector<1x16x128xf32> to vector<16x128xf32>
    %c0_48 = arith.constant 0 : index
    %c0_49 = arith.constant 0 : index
    %c0_50 = arith.constant 0 : index
    %32 = vector.load %arg3[%c0_48, %c0_49, %c0_50] : memref<2x16x128xf32, #tpu.memory_space<vmem>>, vector<1x16x128xf32>
    %33 = vector.shape_cast %32 : vector<1x16x128xf32> to vector<16x128xf32>
    %cst_51 = arith.constant dense<0.000000e+00> : vector<16x128xf32>
    %34 = tpu.matmul %0, %29, %cst_51 {dimension_numbers = #tpu.dot_dimension_numbers<[1], [0], [0], [1], [0, 0, 1, 1], [], []>} : vector<16x8xbf16>, vector<8x128xbf16>, vector<16x128xf32> -> vector<16x128xf32>
    %cst_52 = arith.constant dense<0.000000e+00> : vector<16xf32>
    %35 = vector.multi_reduction <add>, %34, %cst_52 [1] : vector<16x128xf32> to vector<16xf32>
    %36 = vector.shape_cast %35 : vector<16xf32> to vector<16x1xf32>
    %cst_53 = arith.constant 1.280000e+02 : f32
    %37 = vector.broadcast %cst_53 : f32 to vector<16x1xf32>
    %38 = arith.divf %36, %37 : vector<16x1xf32>
    %39 = vector.broadcast %38 : vector<16x1xf32> to vector<16x128xf32>
    %40 = arith.subf %34, %39 : vector<16x128xf32>
    %41 = arith.mulf %40, %40 : vector<16x128xf32>
    %cst_54 = arith.constant dense<0.000000e+00> : vector<16xf32>
    %42 = vector.multi_reduction <add>, %41, %cst_54 [1] : vector<16x128xf32> to vector<16xf32>
    %43 = vector.shape_cast %42 : vector<16xf32> to vector<16x1xf32>
    %cst_55 = arith.constant 1.280000e+02 : f32
    %44 = vector.broadcast %cst_55 : f32 to vector<16x1xf32>
    %45 = arith.divf %43, %44 : vector<16x1xf32>
    %46 = vector.broadcast %38 : vector<16x1xf32> to vector<16x128xf32>
    %47 = arith.subf %34, %46 : vector<16x128xf32>
    %cst_56 = arith.constant 9.99999974E-6 : f32
    %48 = vector.broadcast %cst_56 : f32 to vector<16x1xf32>
    %49 = arith.addf %45, %48 : vector<16x1xf32>
    %50 = math.rsqrt %49 : vector<16x1xf32>
    %51 = vector.broadcast %50 : vector<16x1xf32> to vector<16x128xf32>
    %52 = arith.mulf %47, %51 : vector<16x128xf32>
    %53 = vector.broadcast %2 : vector<16x1xf32> to vector<16x128xf32>
    %54 = arith.mulf %52, %53 : vector<16x128xf32>
    %55 = vector.broadcast %4 : vector<16x1xf32> to vector<16x128xf32>
    %56 = arith.addf %54, %55 : vector<16x128xf32>
    %57 = arith.mulf %56, %31 : vector<16x128xf32>
    %cst_57 = arith.constant dense<0xFF800000> : vector<128xf32>
    %58 = vector.multi_reduction <maximumf>, %57, %cst_57 [0] : vector<16x128xf32> to vector<128xf32>
    %59 = vector.shape_cast %58 : vector<128xf32> to vector<1x128xf32>
    %60 = vector.broadcast %59 : vector<1x128xf32> to vector<16x128xf32>
    %61 = arith.subf %57, %60 : vector<16x128xf32>
    %62 = vector.shape_cast %61 : vector<16x128xf32> to vector<1x16x128xf32>
    %63 = vector.shape_cast %61 : vector<16x128xf32> to vector<16x1x128xf32>
    %64 = vector.broadcast %62 : vector<1x16x128xf32> to vector<16x16x128xf32>
    %65 = vector.broadcast %63 : vector<16x1x128xf32> to vector<16x16x128xf32>
    %66 = arith.cmpf oge, %64, %65 : vector<16x16x128xf32>
    %67 = arith.extui %66 : vector<16x16x128xi1> to vector<16x16x128xi32>
    %68 = arith.sitofp %67 : vector<16x16x128xi32> to vector<16x16x128xf32>
    %cst_58 = arith.constant dense<0.000000e+00> : vector<16x128xf32>
    %69 = vector.multi_reduction <add>, %68, %cst_58 [1] : vector<16x16x128xf32> to vector<16x128xf32>
    %70 = vector.broadcast %62 : vector<1x16x128xf32> to vector<16x16x128xf32>
    %71 = arith.mulf %68, %70 : vector<16x16x128xf32>
    %cst_59 = arith.constant dense<0.000000e+00> : vector<16x128xf32>
    %72 = vector.multi_reduction <add>, %71, %cst_59 [1] : vector<16x16x128xf32> to vector<16x128xf32>
    %73 = arith.mulf %69, %61 : vector<16x128xf32>
    %cst_60 = arith.constant 1.000000e+00 : f32
    %74 = vector.broadcast %cst_60 : f32 to vector<16x128xf32>
    %75 = arith.addf %74, %73 : vector<16x128xf32>
    %76 = arith.cmpf ogt, %75, %72 : vector<16x128xf32>
    %77 = arith.extui %76 : vector<16x128xi1> to vector<16x128xi32>
    %78 = arith.sitofp %77 : vector<16x128xi32> to vector<16x128xf32>
    %cst_61 = arith.constant dense<0.000000e+00> : vector<128xf32>
    %79 = vector.multi_reduction <add>, %78, %cst_61 [0] : vector<16x128xf32> to vector<128xf32>
    %80 = vector.shape_cast %79 : vector<128xf32> to vector<1x128xf32>
    %81 = arith.mulf %78, %61 : vector<16x128xf32>
    %cst_62 = arith.constant dense<0.000000e+00> : vector<128xf32>
    %82 = vector.multi_reduction <add>, %81, %cst_62 [0] : vector<16x128xf32> to vector<128xf32>
    %83 = vector.shape_cast %82 : vector<128xf32> to vector<1x128xf32>
    %cst_63 = arith.constant 1.000000e+00 : f32
    %84 = vector.broadcast %cst_63 : f32 to vector<1x128xf32>
    %85 = arith.subf %83, %84 : vector<1x128xf32>
    %86 = arith.divf %85, %80 : vector<1x128xf32>
    %87 = vector.broadcast %86 : vector<1x128xf32> to vector<16x128xf32>
    %88 = arith.subf %61, %87 : vector<16x128xf32>
    %cst_64 = arith.constant 0.000000e+00 : f32
    %89 = vector.broadcast %cst_64 : f32 to vector<16x128xf32>
    %90 = arith.maximumf %88, %89 : vector<16x128xf32>
    %cst_65 = arith.constant 0.000000e+00 : f32
    %91 = vector.broadcast %cst_65 : f32 to vector<16x128xf32>
    %92 = arith.subf %91, %90 : vector<16x128xf32>
    %cst_66 = arith.constant 1.000000e-10 : f32
    %93 = vector.broadcast %cst_66 : f32 to vector<16x128xf32>
    %94 = arith.addf %90, %93 : vector<16x128xf32>
    %95 = math.log %94 : vector<16x128xf32>
    %96 = arith.mulf %92, %95 : vector<16x128xf32>
    %cst_67 = arith.constant dense<0.000000e+00> : vector<128xf32>
    %97 = vector.multi_reduction <add>, %96, %cst_67 [0] : vector<16x128xf32> to vector<128xf32>
    %98 = vector.shape_cast %97 : vector<128xf32> to vector<1x128xf32>
    %cst_68 = arith.constant dense<0.000000e+00> : vector<1xf32>
    %99 = vector.multi_reduction <add>, %98, %cst_68 [1] : vector<1x128xf32> to vector<1xf32>
    %100 = vector.shape_cast %99 : vector<1xf32> to vector<1x1xf32>
    %101 = arith.addf %26, %100 : vector<1x1xf32>
    %102 = arith.mulf %33, %90 : vector<16x128xf32>
    %103 = arith.truncf %102 : vector<16x128xf32> to vector<16x128xbf16>
    %cst_69 = arith.constant dense<0.000000e+00> : vector<16x128xf32>
    %104 = tpu.matmul %5, %103, %cst_69 {dimension_numbers = #tpu.dot_dimension_numbers<[1], [0], [0], [1], [0, 0, 1, 1], [], []>} : vector<16x16xbf16>, vector<16x128xbf16>, vector<16x128xf32> -> vector<16x128xf32>
    %105 = vector.extract_strided_slice %7 {offsets = [0, 0, 0], sizes = [1, 16, 1], strides = [1, 1, 1]} : vector<4x16x1xf32> to vector<1x16x1xf32>
    %106 = vector.shape_cast %105 : vector<1x16x1xf32> to vector<16x1xf32>
    %107 = vector.extract_strided_slice %7 {offsets = [1, 0, 0], sizes = [1, 16, 1], strides = [1, 1, 1]} : vector<4x16x1xf32> to vector<1x16x1xf32>
    %108 = vector.shape_cast %107 : vector<1x16x1xf32> to vector<16x1xf32>
    %cst_70 = arith.constant dense<0.000000e+00> : vector<16xf32>
    %109 = vector.multi_reduction <add>, %104, %cst_70 [1] : vector<16x128xf32> to vector<16xf32>
    %110 = vector.shape_cast %109 : vector<16xf32> to vector<16x1xf32>
    %cst_71 = arith.constant 1.280000e+02 : f32
    %111 = vector.broadcast %cst_71 : f32 to vector<16x1xf32>
    %112 = arith.divf %110, %111 : vector<16x1xf32>
    %113 = vector.broadcast %112 : vector<16x1xf32> to vector<16x128xf32>
    %114 = arith.subf %104, %113 : vector<16x128xf32>
    %115 = arith.mulf %114, %114 : vector<16x128xf32>
    %cst_72 = arith.constant dense<0.000000e+00> : vector<16xf32>
    %116 = vector.multi_reduction <add>, %115, %cst_72 [1] : vector<16x128xf32> to vector<16xf32>
    %117 = vector.shape_cast %116 : vector<16xf32> to vector<16x1xf32>
    %cst_73 = arith.constant 1.280000e+02 : f32
    %118 = vector.broadcast %cst_73 : f32 to vector<16x1xf32>
    %119 = arith.divf %117, %118 : vector<16x1xf32>
    %120 = vector.broadcast %112 : vector<16x1xf32> to vector<16x128xf32>
    %121 = arith.subf %104, %120 : vector<16x128xf32>
    %cst_74 = arith.constant 9.99999974E-6 : f32
    %122 = vector.broadcast %cst_74 : f32 to vector<16x1xf32>
    %123 = arith.addf %119, %122 : vector<16x1xf32>
    %124 = math.rsqrt %123 : vector<16x1xf32>
    %125 = vector.broadcast %124 : vector<16x1xf32> to vector<16x128xf32>
    %126 = arith.mulf %121, %125 : vector<16x128xf32>
    %127 = vector.broadcast %106 : vector<16x1xf32> to vector<16x128xf32>
    %128 = arith.mulf %126, %127 : vector<16x128xf32>
    %129 = vector.broadcast %108 : vector<16x1xf32> to vector<16x128xf32>
    %130 = arith.addf %128, %129 : vector<16x128xf32>
    %cst_75 = arith.constant dense<0.000000e+00> : vector<16x128xf32>
    %131 = tpu.matmul %6, %103, %cst_75 {dimension_numbers = #tpu.dot_dimension_numbers<[1], [0], [0], [1], [0, 0, 1, 1], [], []>} : vector<16x16xbf16>, vector<16x128xbf16>, vector<16x128xf32> -> vector<16x128xf32>
    %132 = vector.extract_strided_slice %7 {offsets = [2, 0, 0], sizes = [1, 16, 1], strides = [1, 1, 1]} : vector<4x16x1xf32> to vector<1x16x1xf32>
    %133 = vector.shape_cast %132 : vector<1x16x1xf32> to vector<16x1xf32>
    %134 = vector.extract_strided_slice %7 {offsets = [3, 0, 0], sizes = [1, 16, 1], strides = [1, 1, 1]} : vector<4x16x1xf32> to vector<1x16x1xf32>
    %135 = vector.shape_cast %134 : vector<1x16x1xf32> to vector<16x1xf32>
    %cst_76 = arith.constant dense<0.000000e+00> : vector<16xf32>
    %136 = vector.multi_reduction <add>, %131, %cst_76 [1] : vector<16x128xf32> to vector<16xf32>
    %137 = vector.shape_cast %136 : vector<16xf32> to vector<16x1xf32>
    %cst_77 = arith.constant 1.280000e+02 : f32
    %138 = vector.broadcast %cst_77 : f32 to vector<16x1xf32>
    %139 = arith.divf %137, %138 : vector<16x1xf32>
    %140 = vector.broadcast %139 : vector<16x1xf32> to vector<16x128xf32>
    %141 = arith.subf %131, %140 : vector<16x128xf32>
    %142 = arith.mulf %141, %141 : vector<16x128xf32>
    %cst_78 = arith.constant dense<0.000000e+00> : vector<16xf32>
    %143 = vector.multi_reduction <add>, %142, %cst_78 [1] : vector<16x128xf32> to vector<16xf32>
    %144 = vector.shape_cast %143 : vector<16xf32> to vector<16x1xf32>
    %cst_79 = arith.constant 1.280000e+02 : f32
    %145 = vector.broadcast %cst_79 : f32 to vector<16x1xf32>
    %146 = arith.divf %144, %145 : vector<16x1xf32>
    %147 = vector.broadcast %139 : vector<16x1xf32> to vector<16x128xf32>
    %148 = arith.subf %131, %147 : vector<16x128xf32>
    %cst_80 = arith.constant 9.99999974E-6 : f32
    %149 = vector.broadcast %cst_80 : f32 to vector<16x1xf32>
    %150 = arith.addf %146, %149 : vector<16x1xf32>
    %151 = math.rsqrt %150 : vector<16x1xf32>
    %152 = vector.broadcast %151 : vector<16x1xf32> to vector<16x128xf32>
    %153 = arith.mulf %148, %152 : vector<16x128xf32>
    %154 = vector.broadcast %133 : vector<16x1xf32> to vector<16x128xf32>
    %155 = arith.mulf %153, %154 : vector<16x128xf32>
    %156 = vector.broadcast %135 : vector<16x1xf32> to vector<16x128xf32>
    %157 = arith.addf %155, %156 : vector<16x128xf32>
    %158 = arith.negf %157 : vector<16x128xf32>
    %159 = math.exp %158 : vector<16x128xf32>
    %cst_81 = arith.constant 1.000000e+00 : f32
    %160 = vector.broadcast %cst_81 : f32 to vector<16x128xf32>
    %161 = arith.addf %160, %159 : vector<16x128xf32>
    %162 = arith.divf %160, %161 : vector<16x128xf32>
    %163 = arith.mulf %130, %162 : vector<16x128xf32>
    %164 = arith.truncf %163 : vector<16x128xf32> to vector<16x128xbf16>
    %cst_82 = arith.constant dense<0.000000e+00> : vector<16x128xf32>
    %165 = tpu.matmul %9, %164, %cst_82 {dimension_numbers = #tpu.dot_dimension_numbers<[1], [0], [0], [1], [0, 0, 1, 1], [], []>} : vector<16x16xbf16>, vector<16x128xbf16>, vector<16x128xf32> -> vector<16x128xf32>
    %166 = vector.extract_strided_slice %21 {offsets = [0, 0, 0], sizes = [1, 16, 1], strides = [1, 1, 1]} : vector<4x16x1xf32> to vector<1x16x1xf32>
    %167 = vector.shape_cast %166 : vector<1x16x1xf32> to vector<16x1xf32>
    %168 = vector.extract_strided_slice %21 {offsets = [1, 0, 0], sizes = [1, 16, 1], strides = [1, 1, 1]} : vector<4x16x1xf32> to vector<1x16x1xf32>
    %169 = vector.shape_cast %168 : vector<1x16x1xf32> to vector<16x1xf32>
    %cst_83 = arith.constant dense<0.000000e+00> : vector<16xf32>
    %170 = vector.multi_reduction <add>, %165, %cst_83 [1] : vector<16x128xf32> to vector<16xf32>
    %171 = vector.shape_cast %170 : vector<16xf32> to vector<16x1xf32>
    %cst_84 = arith.constant 1.280000e+02 : f32
    %172 = vector.broadcast %cst_84 : f32 to vector<16x1xf32>
    %173 = arith.divf %171, %172 : vector<16x1xf32>
    %174 = vector.broadcast %173 : vector<16x1xf32> to vector<16x128xf32>
    %175 = arith.subf %165, %174 : vector<16x128xf32>
    %176 = arith.mulf %175, %175 : vector<16x128xf32>
    %cst_85 = arith.constant dense<0.000000e+00> : vector<16xf32>
    %177 = vector.multi_reduction <add>, %176, %cst_85 [1] : vector<16x128xf32> to vector<16xf32>
    %178 = vector.shape_cast %177 : vector<16xf32> to vector<16x1xf32>
    %cst_86 = arith.constant 1.280000e+02 : f32
    %179 = vector.broadcast %cst_86 : f32 to vector<16x1xf32>
    %180 = arith.divf %178, %179 : vector<16x1xf32>
    %181 = vector.broadcast %173 : vector<16x1xf32> to vector<16x128xf32>
    %182 = arith.subf %165, %181 : vector<16x128xf32>
    %cst_87 = arith.constant 9.99999974E-6 : f32
    %183 = vector.broadcast %cst_87 : f32 to vector<16x1xf32>
    %184 = arith.addf %180, %183 : vector<16x1xf32>
    %185 = math.rsqrt %184 : vector<16x1xf32>
    %186 = vector.broadcast %185 : vector<16x1xf32> to vector<16x128xf32>
    %187 = arith.mulf %182, %186 : vector<16x128xf32>
    %188 = vector.broadcast %167 : vector<16x1xf32> to vector<16x128xf32>
    %189 = arith.mulf %187, %188 : vector<16x128xf32>
    %190 = vector.broadcast %169 : vector<16x1xf32> to vector<16x128xf32>
    %191 = arith.addf %189, %190 : vector<16x128xf32>
    %cst_88 = arith.constant dense<0.000000e+00> : vector<16x128xf32>
    %192 = tpu.matmul %15, %164, %cst_88 {dimension_numbers = #tpu.dot_dimension_numbers<[1], [0], [0], [1], [0, 0, 1, 1], [], []>} : vector<16x16xbf16>, vector<16x128xbf16>, vector<16x128xf32> -> vector<16x128xf32>
    %193 = vector.extract_strided_slice %21 {offsets = [2, 0, 0], sizes = [1, 16, 1], strides = [1, 1, 1]} : vector<4x16x1xf32> to vector<1x16x1xf32>
    %194 = vector.shape_cast %193 : vector<1x16x1xf32> to vector<16x1xf32>
    %195 = vector.extract_strided_slice %21 {offsets = [3, 0, 0], sizes = [1, 16, 1], strides = [1, 1, 1]} : vector<4x16x1xf32> to vector<1x16x1xf32>
    %196 = vector.shape_cast %195 : vector<1x16x1xf32> to vector<16x1xf32>
    %cst_89 = arith.constant dense<0.000000e+00> : vector<16xf32>
    %197 = vector.multi_reduction <add>, %192, %cst_89 [1] : vector<16x128xf32> to vector<16xf32>
    %198 = vector.shape_cast %197 : vector<16xf32> to vector<16x1xf32>
    %cst_90 = arith.constant 1.280000e+02 : f32
    %199 = vector.broadcast %cst_90 : f32 to vector<16x1xf32>
    %200 = arith.divf %198, %199 : vector<16x1xf32>
    %201 = vector.broadcast %200 : vector<16x1xf32> to vector<16x128xf32>
    %202 = arith.subf %192, %201 : vector<16x128xf32>
    %203 = arith.mulf %202, %202 : vector<16x128xf32>
    %cst_91 = arith.constant dense<0.000000e+00> : vector<16xf32>
    %204 = vector.multi_reduction <add>, %203, %cst_91 [1] : vector<16x128xf32> to vector<16xf32>
    %205 = vector.shape_cast %204 : vector<16xf32> to vector<16x1xf32>
    %cst_92 = arith.constant 1.280000e+02 : f32
    %206 = vector.broadcast %cst_92 : f32 to vector<16x1xf32>
    %207 = arith.divf %205, %206 : vector<16x1xf32>
    %208 = vector.broadcast %200 : vector<16x1xf32> to vector<16x128xf32>
    %209 = arith.subf %192, %208 : vector<16x128xf32>
    %cst_93 = arith.constant 9.99999974E-6 : f32
    %210 = vector.broadcast %cst_93 : f32 to vector<16x1xf32>
    %211 = arith.addf %207, %210 : vector<16x1xf32>
    %212 = math.rsqrt %211 : vector<16x1xf32>
    %213 = vector.broadcast %212 : vector<16x1xf32> to vector<16x128xf32>
    %214 = arith.mulf %209, %213 : vector<16x128xf32>
    %215 = vector.broadcast %194 : vector<16x1xf32> to vector<16x128xf32>
    %216 = arith.mulf %214, %215 : vector<16x128xf32>
    %217 = vector.broadcast %196 : vector<16x1xf32> to vector<16x128xf32>
    %218 = arith.addf %216, %217 : vector<16x128xf32>
    %219 = arith.negf %218 : vector<16x128xf32>
    %220 = math.exp %219 : vector<16x128xf32>
    %cst_94 = arith.constant 1.000000e+00 : f32
    %221 = vector.broadcast %cst_94 : f32 to vector<16x128xf32>
    %222 = arith.addf %221, %220 : vector<16x128xf32>
    %223 = arith.divf %221, %222 : vector<16x128xf32>
    %224 = arith.mulf %191, %223 : vector<16x128xf32>
    %225 = arith.addf %163, %224 : vector<16x128xf32>
    %cst_95 = arith.constant 0.707106769 : f32
    %226 = vector.broadcast %cst_95 : f32 to vector<16x128xf32>
    %227 = arith.mulf %225, %226 : vector<16x128xf32>
    %228 = arith.truncf %227 : vector<16x128xf32> to vector<16x128xbf16>
    %cst_96 = arith.constant dense<0.000000e+00> : vector<16x128xf32>
    %229 = tpu.matmul %11, %228, %cst_96 {dimension_numbers = #tpu.dot_dimension_numbers<[1], [0], [0], [1], [0, 0, 1, 1], [], []>} : vector<16x16xbf16>, vector<16x128xbf16>, vector<16x128xf32> -> vector<16x128xf32>
    %230 = vector.extract_strided_slice %23 {offsets = [0, 0, 0], sizes = [1, 16, 1], strides = [1, 1, 1]} : vector<4x16x1xf32> to vector<1x16x1xf32>
    %231 = vector.shape_cast %230 : vector<1x16x1xf32> to vector<16x1xf32>
    %232 = vector.extract_strided_slice %23 {offsets = [1, 0, 0], sizes = [1, 16, 1], strides = [1, 1, 1]} : vector<4x16x1xf32> to vector<1x16x1xf32>
    %233 = vector.shape_cast %232 : vector<1x16x1xf32> to vector<16x1xf32>
    %cst_97 = arith.constant dense<0.000000e+00> : vector<16xf32>
    %234 = vector.multi_reduction <add>, %229, %cst_97 [1] : vector<16x128xf32> to vector<16xf32>
    %235 = vector.shape_cast %234 : vector<16xf32> to vector<16x1xf32>
    %cst_98 = arith.constant 1.280000e+02 : f32
    %236 = vector.broadcast %cst_98 : f32 to vector<16x1xf32>
    %237 = arith.divf %235, %236 : vector<16x1xf32>
    %238 = vector.broadcast %237 : vector<16x1xf32> to vector<16x128xf32>
    %239 = arith.subf %229, %238 : vector<16x128xf32>
    %240 = arith.mulf %239, %239 : vector<16x128xf32>
    %cst_99 = arith.constant dense<0.000000e+00> : vector<16xf32>
    %241 = vector.multi_reduction <add>, %240, %cst_99 [1] : vector<16x128xf32> to vector<16xf32>
    %242 = vector.shape_cast %241 : vector<16xf32> to vector<16x1xf32>
    %cst_100 = arith.constant 1.280000e+02 : f32
    %243 = vector.broadcast %cst_100 : f32 to vector<16x1xf32>
    %244 = arith.divf %242, %243 : vector<16x1xf32>
    %245 = vector.broadcast %237 : vector<16x1xf32> to vector<16x128xf32>
    %246 = arith.subf %229, %245 : vector<16x128xf32>
    %cst_101 = arith.constant 9.99999974E-6 : f32
    %247 = vector.broadcast %cst_101 : f32 to vector<16x1xf32>
    %248 = arith.addf %244, %247 : vector<16x1xf32>
    %249 = math.rsqrt %248 : vector<16x1xf32>
    %250 = vector.broadcast %249 : vector<16x1xf32> to vector<16x128xf32>
    %251 = arith.mulf %246, %250 : vector<16x128xf32>
    %252 = vector.broadcast %231 : vector<16x1xf32> to vector<16x128xf32>
    %253 = arith.mulf %251, %252 : vector<16x128xf32>
    %254 = vector.broadcast %233 : vector<16x1xf32> to vector<16x128xf32>
    %255 = arith.addf %253, %254 : vector<16x128xf32>
    %cst_102 = arith.constant dense<0.000000e+00> : vector<16x128xf32>
    %256 = tpu.matmul %17, %228, %cst_102 {dimension_numbers = #tpu.dot_dimension_numbers<[1], [0], [0], [1], [0, 0, 1, 1], [], []>} : vector<16x16xbf16>, vector<16x128xbf16>, vector<16x128xf32> -> vector<16x128xf32>
    %257 = vector.extract_strided_slice %23 {offsets = [2, 0, 0], sizes = [1, 16, 1], strides = [1, 1, 1]} : vector<4x16x1xf32> to vector<1x16x1xf32>
    %258 = vector.shape_cast %257 : vector<1x16x1xf32> to vector<16x1xf32>
    %259 = vector.extract_strided_slice %23 {offsets = [3, 0, 0], sizes = [1, 16, 1], strides = [1, 1, 1]} : vector<4x16x1xf32> to vector<1x16x1xf32>
    %260 = vector.shape_cast %259 : vector<1x16x1xf32> to vector<16x1xf32>
    %cst_103 = arith.constant dense<0.000000e+00> : vector<16xf32>
    %261 = vector.multi_reduction <add>, %256, %cst_103 [1] : vector<16x128xf32> to vector<16xf32>
    %262 = vector.shape_cast %261 : vector<16xf32> to vector<16x1xf32>
    %cst_104 = arith.constant 1.280000e+02 : f32
    %263 = vector.broadcast %cst_104 : f32 to vector<16x1xf32>
    %264 = arith.divf %262, %263 : vector<16x1xf32>
    %265 = vector.broadcast %264 : vector<16x1xf32> to vector<16x128xf32>
    %266 = arith.subf %256, %265 : vector<16x128xf32>
    %267 = arith.mulf %266, %266 : vector<16x128xf32>
    %cst_105 = arith.constant dense<0.000000e+00> : vector<16xf32>
    %268 = vector.multi_reduction <add>, %267, %cst_105 [1] : vector<16x128xf32> to vector<16xf32>
    %269 = vector.shape_cast %268 : vector<16xf32> to vector<16x1xf32>
    %cst_106 = arith.constant 1.280000e+02 : f32
    %270 = vector.broadcast %cst_106 : f32 to vector<16x1xf32>
    %271 = arith.divf %269, %270 : vector<16x1xf32>
    %272 = vector.broadcast %264 : vector<16x1xf32> to vector<16x128xf32>
    %273 = arith.subf %256, %272 : vector<16x128xf32>
    %cst_107 = arith.constant 9.99999974E-6 : f32
    %274 = vector.broadcast %cst_107 : f32 to vector<16x1xf32>
    %275 = arith.addf %271, %274 : vector<16x1xf32>
    %276 = math.rsqrt %275 : vector<16x1xf32>
    %277 = vector.broadcast %276 : vector<16x1xf32> to vector<16x128xf32>
    %278 = arith.mulf %273, %277 : vector<16x128xf32>
    %279 = vector.broadcast %258 : vector<16x1xf32> to vector<16x128xf32>
    %280 = arith.mulf %278, %279 : vector<16x128xf32>
    %281 = vector.broadcast %260 : vector<16x1xf32> to vector<16x128xf32>
    %282 = arith.addf %280, %281 : vector<16x128xf32>
    %283 = arith.negf %282 : vector<16x128xf32>
    %284 = math.exp %283 : vector<16x128xf32>
    %cst_108 = arith.constant 1.000000e+00 : f32
    %285 = vector.broadcast %cst_108 : f32 to vector<16x128xf32>
    %286 = arith.addf %285, %284 : vector<16x128xf32>
    %287 = arith.divf %285, %286 : vector<16x128xf32>
    %288 = arith.mulf %255, %287 : vector<16x128xf32>
    %289 = arith.addf %227, %288 : vector<16x128xf32>
    %cst_109 = arith.constant 0.707106769 : f32
    %290 = vector.broadcast %cst_109 : f32 to vector<16x128xf32>
    %291 = arith.mulf %289, %290 : vector<16x128xf32>
    %292 = arith.truncf %291 : vector<16x128xf32> to vector<16x128xbf16>
    %cst_110 = arith.constant dense<0.000000e+00> : vector<16x128xf32>
    %293 = tpu.matmul %13, %292, %cst_110 {dimension_numbers = #tpu.dot_dimension_numbers<[1], [0], [0], [1], [0, 0, 1, 1], [], []>} : vector<16x16xbf16>, vector<16x128xbf16>, vector<16x128xf32> -> vector<16x128xf32>
    %294 = vector.extract_strided_slice %25 {offsets = [0, 0, 0], sizes = [1, 16, 1], strides = [1, 1, 1]} : vector<4x16x1xf32> to vector<1x16x1xf32>
    %295 = vector.shape_cast %294 : vector<1x16x1xf32> to vector<16x1xf32>
    %296 = vector.extract_strided_slice %25 {offsets = [1, 0, 0], sizes = [1, 16, 1], strides = [1, 1, 1]} : vector<4x16x1xf32> to vector<1x16x1xf32>
    %297 = vector.shape_cast %296 : vector<1x16x1xf32> to vector<16x1xf32>
    %cst_111 = arith.constant dense<0.000000e+00> : vector<16xf32>
    %298 = vector.multi_reduction <add>, %293, %cst_111 [1] : vector<16x128xf32> to vector<16xf32>
    %299 = vector.shape_cast %298 : vector<16xf32> to vector<16x1xf32>
    %cst_112 = arith.constant 1.280000e+02 : f32
    %300 = vector.broadcast %cst_112 : f32 to vector<16x1xf32>
    %301 = arith.divf %299, %300 : vector<16x1xf32>
    %302 = vector.broadcast %301 : vector<16x1xf32> to vector<16x128xf32>
    %303 = arith.subf %293, %302 : vector<16x128xf32>
    %304 = arith.mulf %303, %303 : vector<16x128xf32>
    %cst_113 = arith.constant dense<0.000000e+00> : vector<16xf32>
    %305 = vector.multi_reduction <add>, %304, %cst_113 [1] : vector<16x128xf32> to vector<16xf32>
    %306 = vector.shape_cast %305 : vector<16xf32> to vector<16x1xf32>
    %cst_114 = arith.constant 1.280000e+02 : f32
    %307 = vector.broadcast %cst_114 : f32 to vector<16x1xf32>
    %308 = arith.divf %306, %307 : vector<16x1xf32>
    %309 = vector.broadcast %301 : vector<16x1xf32> to vector<16x128xf32>
    %310 = arith.subf %293, %309 : vector<16x128xf32>
    %cst_115 = arith.constant 9.99999974E-6 : f32
    %311 = vector.broadcast %cst_115 : f32 to vector<16x1xf32>
    %312 = arith.addf %308, %311 : vector<16x1xf32>
    %313 = math.rsqrt %312 : vector<16x1xf32>
    %314 = vector.broadcast %313 : vector<16x1xf32> to vector<16x128xf32>
    %315 = arith.mulf %310, %314 : vector<16x128xf32>
    %316 = vector.broadcast %295 : vector<16x1xf32> to vector<16x128xf32>
    %317 = arith.mulf %315, %316 : vector<16x128xf32>
    %318 = vector.broadcast %297 : vector<16x1xf32> to vector<16x128xf32>
    %319 = arith.addf %317, %318 : vector<16x128xf32>
    %cst_116 = arith.constant dense<0.000000e+00> : vector<16x128xf32>
    %320 = tpu.matmul %19, %292, %cst_116 {dimension_numbers = #tpu.dot_dimension_numbers<[1], [0], [0], [1], [0, 0, 1, 1], [], []>} : vector<16x16xbf16>, vector<16x128xbf16>, vector<16x128xf32> -> vector<16x128xf32>
    %321 = vector.extract_strided_slice %25 {offsets = [2, 0, 0], sizes = [1, 16, 1], strides = [1, 1, 1]} : vector<4x16x1xf32> to vector<1x16x1xf32>
    %322 = vector.shape_cast %321 : vector<1x16x1xf32> to vector<16x1xf32>
    %323 = vector.extract_strided_slice %25 {offsets = [3, 0, 0], sizes = [1, 16, 1], strides = [1, 1, 1]} : vector<4x16x1xf32> to vector<1x16x1xf32>
    %324 = vector.shape_cast %323 : vector<1x16x1xf32> to vector<16x1xf32>
    %cst_117 = arith.constant dense<0.000000e+00> : vector<16xf32>
    %325 = vector.multi_reduction <add>, %320, %cst_117 [1] : vector<16x128xf32> to vector<16xf32>
    %326 = vector.shape_cast %325 : vector<16xf32> to vector<16x1xf32>
    %cst_118 = arith.constant 1.280000e+02 : f32
    %327 = vector.broadcast %cst_118 : f32 to vector<16x1xf32>
    %328 = arith.divf %326, %327 : vector<16x1xf32>
    %329 = vector.broadcast %328 : vector<16x1xf32> to vector<16x128xf32>
    %330 = arith.subf %320, %329 : vector<16x128xf32>
    %331 = arith.mulf %330, %330 : vector<16x128xf32>
    %cst_119 = arith.constant dense<0.000000e+00> : vector<16xf32>
    %332 = vector.multi_reduction <add>, %331, %cst_119 [1] : vector<16x128xf32> to vector<16xf32>
    %333 = vector.shape_cast %332 : vector<16xf32> to vector<16x1xf32>
    %cst_120 = arith.constant 1.280000e+02 : f32
    %334 = vector.broadcast %cst_120 : f32 to vector<16x1xf32>
    %335 = arith.divf %333, %334 : vector<16x1xf32>
    %336 = vector.broadcast %328 : vector<16x1xf32> to vector<16x128xf32>
    %337 = arith.subf %320, %336 : vector<16x128xf32>
    %cst_121 = arith.constant 9.99999974E-6 : f32
    %338 = vector.broadcast %cst_121 : f32 to vector<16x1xf32>
    %339 = arith.addf %335, %338 : vector<16x1xf32>
    %340 = math.rsqrt %339 : vector<16x1xf32>
    %341 = vector.broadcast %340 : vector<16x1xf32> to vector<16x128xf32>
    %342 = arith.mulf %337, %341 : vector<16x128xf32>
    %343 = vector.broadcast %322 : vector<16x1xf32> to vector<16x128xf32>
    %344 = arith.mulf %342, %343 : vector<16x128xf32>
    %345 = vector.broadcast %324 : vector<16x1xf32> to vector<16x128xf32>
    %346 = arith.addf %344, %345 : vector<16x128xf32>
    %347 = arith.negf %346 : vector<16x128xf32>
    %348 = math.exp %347 : vector<16x128xf32>
    %cst_122 = arith.constant 1.000000e+00 : f32
    %349 = vector.broadcast %cst_122 : f32 to vector<16x128xf32>
    %350 = arith.addf %349, %348 : vector<16x128xf32>
    %351 = arith.divf %349, %350 : vector<16x128xf32>
    %352 = arith.mulf %319, %351 : vector<16x128xf32>
    %353 = arith.addf %291, %352 : vector<16x128xf32>
    %cst_123 = arith.constant 0.707106769 : f32
    %354 = vector.broadcast %cst_123 : f32 to vector<16x128xf32>
    %355 = arith.mulf %353, %354 : vector<16x128xf32>
    %c0_124 = arith.constant 0 : index
    %c0_125 = arith.constant 0 : index
    %c0_126 = arith.constant 0 : index
    %356 = vector.load %arg12[%c0_124, %c0_125, %c0_126] : memref<2x16x128xf32, #tpu.memory_space<vmem>>, vector<1x16x128xf32>
    %357 = vector.shape_cast %356 : vector<1x16x128xf32> to vector<16x128xf32>
    %358 = vector.shape_cast %355 : vector<16x128xf32> to vector<1x16x128xf32>
    tpu.vector_store %arg12[%c0_124, %c0_125, %c0_126], %358 {strides = array<i32>} : memref<2x16x128xf32, #tpu.memory_space<vmem>>, vector<1x16x128xf32>,
    %c1_127 = arith.constant 1 : index
    %c0_128 = arith.constant 0 : index
    %c0_129 = arith.constant 0 : index
    %359 = vector.load %arg1[%c1_127, %c0_128, %c0_129] : memref<2x8x128xf32, #tpu.memory_space<vmem>>, vector<1x8x128xf32>
    %360 = vector.shape_cast %359 : vector<1x8x128xf32> to vector<8x128xf32>
    %361 = arith.truncf %360 : vector<8x128xf32> to vector<8x128xbf16>
    %c1_130 = arith.constant 1 : index
    %c0_131 = arith.constant 0 : index
    %c0_132 = arith.constant 0 : index
    %362 = vector.load %arg2[%c1_130, %c0_131, %c0_132] : memref<2x16x128xf32, #tpu.memory_space<vmem>>, vector<1x16x128xf32>
    %363 = vector.shape_cast %362 : vector<1x16x128xf32> to vector<16x128xf32>
    %c1_133 = arith.constant 1 : index
    %c0_134 = arith.constant 0 : index
    %c0_135 = arith.constant 0 : index
    %364 = vector.load %arg3[%c1_133, %c0_134, %c0_135] : memref<2x16x128xf32, #tpu.memory_space<vmem>>, vector<1x16x128xf32>
    %365 = vector.shape_cast %364 : vector<1x16x128xf32> to vector<16x128xf32>
    %cst_136 = arith.constant dense<0.000000e+00> : vector<16x128xf32>
    %366 = tpu.matmul %0, %361, %cst_136 {dimension_numbers = #tpu.dot_dimension_numbers<[1], [0], [0], [1], [0, 0, 1, 1], [], []>} : vector<16x8xbf16>, vector<8x128xbf16>, vector<16x128xf32> -> vector<16x128xf32>
    %cst_137 = arith.constant dense<0.000000e+00> : vector<16xf32>
    %367 = vector.multi_reduction <add>, %366, %cst_137 [1] : vector<16x128xf32> to vector<16xf32>
    %368 = vector.shape_cast %367 : vector<16xf32> to vector<16x1xf32>
    %cst_138 = arith.constant 1.280000e+02 : f32
    %369 = vector.broadcast %cst_138 : f32 to vector<16x1xf32>
    %370 = arith.divf %368, %369 : vector<16x1xf32>
    %371 = vector.broadcast %370 : vector<16x1xf32> to vector<16x128xf32>
    %372 = arith.subf %366, %371 : vector<16x128xf32>
    %373 = arith.mulf %372, %372 : vector<16x128xf32>
    %cst_139 = arith.constant dense<0.000000e+00> : vector<16xf32>
    %374 = vector.multi_reduction <add>, %373, %cst_139 [1] : vector<16x128xf32> to vector<16xf32>
    %375 = vector.shape_cast %374 : vector<16xf32> to vector<16x1xf32>
    %cst_140 = arith.constant 1.280000e+02 : f32
    %376 = vector.broadcast %cst_140 : f32 to vector<16x1xf32>
    %377 = arith.divf %375, %376 : vector<16x1xf32>
    %378 = vector.broadcast %370 : vector<16x1xf32> to vector<16x128xf32>
    %379 = arith.subf %366, %378 : vector<16x128xf32>
    %cst_141 = arith.constant 9.99999974E-6 : f32
    %380 = vector.broadcast %cst_141 : f32 to vector<16x1xf32>
    %381 = arith.addf %377, %380 : vector<16x1xf32>
    %382 = math.rsqrt %381 : vector<16x1xf32>
    %383 = vector.broadcast %382 : vector<16x1xf32> to vector<16x128xf32>
    %384 = arith.mulf %379, %383 : vector<16x128xf32>
    %385 = vector.broadcast %2 : vector<16x1xf32> to vector<16x128xf32>
    %386 = arith.mulf %384, %385 : vector<16x128xf32>
    %387 = vector.broadcast %4 : vector<16x1xf32> to vector<16x128xf32>
    %388 = arith.addf %386, %387 : vector<16x128xf32>
    %389 = arith.mulf %388, %363 : vector<16x128xf32>
    %cst_142 = arith.constant dense<0xFF800000> : vector<128xf32>
    %390 = vector.multi_reduction <maximumf>, %389, %cst_142 [0] : vector<16x128xf32> to vector<128xf32>
    %391 = vector.shape_cast %390 : vector<128xf32> to vector<1x128xf32>
    %392 = vector.broadcast %391 : vector<1x128xf32> to vector<16x128xf32>
    %393 = arith.subf %389, %392 : vector<16x128xf32>
    %394 = vector.shape_cast %393 : vector<16x128xf32> to vector<1x16x128xf32>
    %395 = vector.shape_cast %393 : vector<16x128xf32> to vector<16x1x128xf32>
    %396 = vector.broadcast %394 : vector<1x16x128xf32> to vector<16x16x128xf32>
    %397 = vector.broadcast %395 : vector<16x1x128xf32> to vector<16x16x128xf32>
    %398 = arith.cmpf oge, %396, %397 : vector<16x16x128xf32>
    %399 = arith.extui %398 : vector<16x16x128xi1> to vector<16x16x128xi32>
    %400 = arith.sitofp %399 : vector<16x16x128xi32> to vector<16x16x128xf32>
    %cst_143 = arith.constant dense<0.000000e+00> : vector<16x128xf32>
    %401 = vector.multi_reduction <add>, %400, %cst_143 [1] : vector<16x16x128xf32> to vector<16x128xf32>
    %402 = vector.broadcast %394 : vector<1x16x128xf32> to vector<16x16x128xf32>
    %403 = arith.mulf %400, %402 : vector<16x16x128xf32>
    %cst_144 = arith.constant dense<0.000000e+00> : vector<16x128xf32>
    %404 = vector.multi_reduction <add>, %403, %cst_144 [1] : vector<16x16x128xf32> to vector<16x128xf32>
    %405 = arith.mulf %401, %393 : vector<16x128xf32>
    %cst_145 = arith.constant 1.000000e+00 : f32
    %406 = vector.broadcast %cst_145 : f32 to vector<16x128xf32>
    %407 = arith.addf %406, %405 : vector<16x128xf32>
    %408 = arith.cmpf ogt, %407, %404 : vector<16x128xf32>
    %409 = arith.extui %408 : vector<16x128xi1> to vector<16x128xi32>
    %410 = arith.sitofp %409 : vector<16x128xi32> to vector<16x128xf32>
    %cst_146 = arith.constant dense<0.000000e+00> : vector<128xf32>
    %411 = vector.multi_reduction <add>, %410, %cst_146 [0] : vector<16x128xf32> to vector<128xf32>
    %412 = vector.shape_cast %411 : vector<128xf32> to vector<1x128xf32>
    %413 = arith.mulf %410, %393 : vector<16x128xf32>
    %cst_147 = arith.constant dense<0.000000e+00> : vector<128xf32>
    %414 = vector.multi_reduction <add>, %413, %cst_147 [0] : vector<16x128xf32> to vector<128xf32>
    %415 = vector.shape_cast %414 : vector<128xf32> to vector<1x128xf32>
    %cst_148 = arith.constant 1.000000e+00 : f32
    %416 = vector.broadcast %cst_148 : f32 to vector<1x128xf32>
    %417 = arith.subf %415, %416 : vector<1x128xf32>
    %418 = arith.divf %417, %412 : vector<1x128xf32>
    %419 = vector.broadcast %418 : vector<1x128xf32> to vector<16x128xf32>
    %420 = arith.subf %393, %419 : vector<16x128xf32>
    %cst_149 = arith.constant 0.000000e+00 : f32
    %421 = vector.broadcast %cst_149 : f32 to vector<16x128xf32>
    %422 = arith.maximumf %420, %421 : vector<16x128xf32>
    %cst_150 = arith.constant 0.000000e+00 : f32
    %423 = vector.broadcast %cst_150 : f32 to vector<16x128xf32>
    %424 = arith.subf %423, %422 : vector<16x128xf32>
    %cst_151 = arith.constant 1.000000e-10 : f32
    %425 = vector.broadcast %cst_151 : f32 to vector<16x128xf32>
    %426 = arith.addf %422, %425 : vector<16x128xf32>
    %427 = math.log %426 : vector<16x128xf32>
    %428 = arith.mulf %424, %427 : vector<16x128xf32>
    %cst_152 = arith.constant dense<0.000000e+00> : vector<128xf32>
    %429 = vector.multi_reduction <add>, %428, %cst_152 [0] : vector<16x128xf32> to vector<128xf32>
    %430 = vector.shape_cast %429 : vector<128xf32> to vector<1x128xf32>
    %cst_153 = arith.constant dense<0.000000e+00> : vector<1xf32>
    %431 = vector.multi_reduction <add>, %430, %cst_153 [1] : vector<1x128xf32> to vector<1xf32>
    %432 = vector.shape_cast %431 : vector<1xf32> to vector<1x1xf32>
    %433 = arith.addf %101, %432 : vector<1x1xf32>
    %434 = arith.mulf %365, %422 : vector<16x128xf32>
    %435 = arith.truncf %434 : vector<16x128xf32> to vector<16x128xbf16>
    %cst_154 = arith.constant dense<0.000000e+00> : vector<16x128xf32>
    %436 = tpu.matmul %5, %435, %cst_154 {dimension_numbers = #tpu.dot_dimension_numbers<[1], [0], [0], [1], [0, 0, 1, 1], [], []>} : vector<16x16xbf16>, vector<16x128xbf16>, vector<16x128xf32> -> vector<16x128xf32>
    %437 = vector.extract_strided_slice %7 {offsets = [0, 0, 0], sizes = [1, 16, 1], strides = [1, 1, 1]} : vector<4x16x1xf32> to vector<1x16x1xf32>
    %438 = vector.shape_cast %437 : vector<1x16x1xf32> to vector<16x1xf32>
    %439 = vector.extract_strided_slice %7 {offsets = [1, 0, 0], sizes = [1, 16, 1], strides = [1, 1, 1]} : vector<4x16x1xf32> to vector<1x16x1xf32>
    %440 = vector.shape_cast %439 : vector<1x16x1xf32> to vector<16x1xf32>
    %cst_155 = arith.constant dense<0.000000e+00> : vector<16xf32>
    %441 = vector.multi_reduction <add>, %436, %cst_155 [1] : vector<16x128xf32> to vector<16xf32>
    %442 = vector.shape_cast %441 : vector<16xf32> to vector<16x1xf32>
    %cst_156 = arith.constant 1.280000e+02 : f32
    %443 = vector.broadcast %cst_156 : f32 to vector<16x1xf32>
    %444 = arith.divf %442, %443 : vector<16x1xf32>
    %445 = vector.broadcast %444 : vector<16x1xf32> to vector<16x128xf32>
    %446 = arith.subf %436, %445 : vector<16x128xf32>
    %447 = arith.mulf %446, %446 : vector<16x128xf32>
    %cst_157 = arith.constant dense<0.000000e+00> : vector<16xf32>
    %448 = vector.multi_reduction <add>, %447, %cst_157 [1] : vector<16x128xf32> to vector<16xf32>
    %449 = vector.shape_cast %448 : vector<16xf32> to vector<16x1xf32>
    %cst_158 = arith.constant 1.280000e+02 : f32
    %450 = vector.broadcast %cst_158 : f32 to vector<16x1xf32>
    %451 = arith.divf %449, %450 : vector<16x1xf32>
    %452 = vector.broadcast %444 : vector<16x1xf32> to vector<16x128xf32>
    %453 = arith.subf %436, %452 : vector<16x128xf32>
    %cst_159 = arith.constant 9.99999974E-6 : f32
    %454 = vector.broadcast %cst_159 : f32 to vector<16x1xf32>
    %455 = arith.addf %451, %454 : vector<16x1xf32>
    %456 = math.rsqrt %455 : vector<16x1xf32>
    %457 = vector.broadcast %456 : vector<16x1xf32> to vector<16x128xf32>
    %458 = arith.mulf %453, %457 : vector<16x128xf32>
    %459 = vector.broadcast %438 : vector<16x1xf32> to vector<16x128xf32>
    %460 = arith.mulf %458, %459 : vector<16x128xf32>
    %461 = vector.broadcast %440 : vector<16x1xf32> to vector<16x128xf32>
    %462 = arith.addf %460, %461 : vector<16x128xf32>
    %cst_160 = arith.constant dense<0.000000e+00> : vector<16x128xf32>
    %463 = tpu.matmul %6, %435, %cst_160 {dimension_numbers = #tpu.dot_dimension_numbers<[1], [0], [0], [1], [0, 0, 1, 1], [], []>} : vector<16x16xbf16>, vector<16x128xbf16>, vector<16x128xf32> -> vector<16x128xf32>
    %464 = vector.extract_strided_slice %7 {offsets = [2, 0, 0], sizes = [1, 16, 1], strides = [1, 1, 1]} : vector<4x16x1xf32> to vector<1x16x1xf32>
    %465 = vector.shape_cast %464 : vector<1x16x1xf32> to vector<16x1xf32>
    %466 = vector.extract_strided_slice %7 {offsets = [3, 0, 0], sizes = [1, 16, 1], strides = [1, 1, 1]} : vector<4x16x1xf32> to vector<1x16x1xf32>
    %467 = vector.shape_cast %466 : vector<1x16x1xf32> to vector<16x1xf32>
    %cst_161 = arith.constant dense<0.000000e+00> : vector<16xf32>
    %468 = vector.multi_reduction <add>, %463, %cst_161 [1] : vector<16x128xf32> to vector<16xf32>
    %469 = vector.shape_cast %468 : vector<16xf32> to vector<16x1xf32>
    %cst_162 = arith.constant 1.280000e+02 : f32
    %470 = vector.broadcast %cst_162 : f32 to vector<16x1xf32>
    %471 = arith.divf %469, %470 : vector<16x1xf32>
    %472 = vector.broadcast %471 : vector<16x1xf32> to vector<16x128xf32>
    %473 = arith.subf %463, %472 : vector<16x128xf32>
    %474 = arith.mulf %473, %473 : vector<16x128xf32>
    %cst_163 = arith.constant dense<0.000000e+00> : vector<16xf32>
    %475 = vector.multi_reduction <add>, %474, %cst_163 [1] : vector<16x128xf32> to vector<16xf32>
    %476 = vector.shape_cast %475 : vector<16xf32> to vector<16x1xf32>
    %cst_164 = arith.constant 1.280000e+02 : f32
    %477 = vector.broadcast %cst_164 : f32 to vector<16x1xf32>
    %478 = arith.divf %476, %477 : vector<16x1xf32>
    %479 = vector.broadcast %471 : vector<16x1xf32> to vector<16x128xf32>
    %480 = arith.subf %463, %479 : vector<16x128xf32>
    %cst_165 = arith.constant 9.99999974E-6 : f32
    %481 = vector.broadcast %cst_165 : f32 to vector<16x1xf32>
    %482 = arith.addf %478, %481 : vector<16x1xf32>
    %483 = math.rsqrt %482 : vector<16x1xf32>
    %484 = vector.broadcast %483 : vector<16x1xf32> to vector<16x128xf32>
    %485 = arith.mulf %480, %484 : vector<16x128xf32>
    %486 = vector.broadcast %465 : vector<16x1xf32> to vector<16x128xf32>
    %487 = arith.mulf %485, %486 : vector<16x128xf32>
    %488 = vector.broadcast %467 : vector<16x1xf32> to vector<16x128xf32>
    %489 = arith.addf %487, %488 : vector<16x128xf32>
    %490 = arith.negf %489 : vector<16x128xf32>
    %491 = math.exp %490 : vector<16x128xf32>
    %cst_166 = arith.constant 1.000000e+00 : f32
    %492 = vector.broadcast %cst_166 : f32 to vector<16x128xf32>
    %493 = arith.addf %492, %491 : vector<16x128xf32>
    %494 = arith.divf %492, %493 : vector<16x128xf32>
    %495 = arith.mulf %462, %494 : vector<16x128xf32>
    %496 = arith.truncf %495 : vector<16x128xf32> to vector<16x128xbf16>
    %cst_167 = arith.constant dense<0.000000e+00> : vector<16x128xf32>
    %497 = tpu.matmul %9, %496, %cst_167 {dimension_numbers = #tpu.dot_dimension_numbers<[1], [0], [0], [1], [0, 0, 1, 1], [], []>} : vector<16x16xbf16>, vector<16x128xbf16>, vector<16x128xf32> -> vector<16x128xf32>
    %498 = vector.extract_strided_slice %21 {offsets = [0, 0, 0], sizes = [1, 16, 1], strides = [1, 1, 1]} : vector<4x16x1xf32> to vector<1x16x1xf32>
    %499 = vector.shape_cast %498 : vector<1x16x1xf32> to vector<16x1xf32>
    %500 = vector.extract_strided_slice %21 {offsets = [1, 0, 0], sizes = [1, 16, 1], strides = [1, 1, 1]} : vector<4x16x1xf32> to vector<1x16x1xf32>
    %501 = vector.shape_cast %500 : vector<1x16x1xf32> to vector<16x1xf32>
    %cst_168 = arith.constant dense<0.000000e+00> : vector<16xf32>
    %502 = vector.multi_reduction <add>, %497, %cst_168 [1] : vector<16x128xf32> to vector<16xf32>
    %503 = vector.shape_cast %502 : vector<16xf32> to vector<16x1xf32>
    %cst_169 = arith.constant 1.280000e+02 : f32
    %504 = vector.broadcast %cst_169 : f32 to vector<16x1xf32>
    %505 = arith.divf %503, %504 : vector<16x1xf32>
    %506 = vector.broadcast %505 : vector<16x1xf32> to vector<16x128xf32>
    %507 = arith.subf %497, %506 : vector<16x128xf32>
    %508 = arith.mulf %507, %507 : vector<16x128xf32>
    %cst_170 = arith.constant dense<0.000000e+00> : vector<16xf32>
    %509 = vector.multi_reduction <add>, %508, %cst_170 [1] : vector<16x128xf32> to vector<16xf32>
    %510 = vector.shape_cast %509 : vector<16xf32> to vector<16x1xf32>
    %cst_171 = arith.constant 1.280000e+02 : f32
    %511 = vector.broadcast %cst_171 : f32 to vector<16x1xf32>
    %512 = arith.divf %510, %511 : vector<16x1xf32>
    %513 = vector.broadcast %505 : vector<16x1xf32> to vector<16x128xf32>
    %514 = arith.subf %497, %513 : vector<16x128xf32>
    %cst_172 = arith.constant 9.99999974E-6 : f32
    %515 = vector.broadcast %cst_172 : f32 to vector<16x1xf32>
    %516 = arith.addf %512, %515 : vector<16x1xf32>
    %517 = math.rsqrt %516 : vector<16x1xf32>
    %518 = vector.broadcast %517 : vector<16x1xf32> to vector<16x128xf32>
    %519 = arith.mulf %514, %518 : vector<16x128xf32>
    %520 = vector.broadcast %499 : vector<16x1xf32> to vector<16x128xf32>
    %521 = arith.mulf %519, %520 : vector<16x128xf32>
    %522 = vector.broadcast %501 : vector<16x1xf32> to vector<16x128xf32>
    %523 = arith.addf %521, %522 : vector<16x128xf32>
    %cst_173 = arith.constant dense<0.000000e+00> : vector<16x128xf32>
    %524 = tpu.matmul %15, %496, %cst_173 {dimension_numbers = #tpu.dot_dimension_numbers<[1], [0], [0], [1], [0, 0, 1, 1], [], []>} : vector<16x16xbf16>, vector<16x128xbf16>, vector<16x128xf32> -> vector<16x128xf32>
    %525 = vector.extract_strided_slice %21 {offsets = [2, 0, 0], sizes = [1, 16, 1], strides = [1, 1, 1]} : vector<4x16x1xf32> to vector<1x16x1xf32>
    %526 = vector.shape_cast %525 : vector<1x16x1xf32> to vector<16x1xf32>
    %527 = vector.extract_strided_slice %21 {offsets = [3, 0, 0], sizes = [1, 16, 1], strides = [1, 1, 1]} : vector<4x16x1xf32> to vector<1x16x1xf32>
    %528 = vector.shape_cast %527 : vector<1x16x1xf32> to vector<16x1xf32>
    %cst_174 = arith.constant dense<0.000000e+00> : vector<16xf32>
    %529 = vector.multi_reduction <add>, %524, %cst_174 [1] : vector<16x128xf32> to vector<16xf32>
    %530 = vector.shape_cast %529 : vector<16xf32> to vector<16x1xf32>
    %cst_175 = arith.constant 1.280000e+02 : f32
    %531 = vector.broadcast %cst_175 : f32 to vector<16x1xf32>
    %532 = arith.divf %530, %531 : vector<16x1xf32>
    %533 = vector.broadcast %532 : vector<16x1xf32> to vector<16x128xf32>
    %534 = arith.subf %524, %533 : vector<16x128xf32>
    %535 = arith.mulf %534, %534 : vector<16x128xf32>
    %cst_176 = arith.constant dense<0.000000e+00> : vector<16xf32>
    %536 = vector.multi_reduction <add>, %535, %cst_176 [1] : vector<16x128xf32> to vector<16xf32>
    %537 = vector.shape_cast %536 : vector<16xf32> to vector<16x1xf32>
    %cst_177 = arith.constant 1.280000e+02 : f32
    %538 = vector.broadcast %cst_177 : f32 to vector<16x1xf32>
    %539 = arith.divf %537, %538 : vector<16x1xf32>
    %540 = vector.broadcast %532 : vector<16x1xf32> to vector<16x128xf32>
    %541 = arith.subf %524, %540 : vector<16x128xf32>
    %cst_178 = arith.constant 9.99999974E-6 : f32
    %542 = vector.broadcast %cst_178 : f32 to vector<16x1xf32>
    %543 = arith.addf %539, %542 : vector<16x1xf32>
    %544 = math.rsqrt %543 : vector<16x1xf32>
    %545 = vector.broadcast %544 : vector<16x1xf32> to vector<16x128xf32>
    %546 = arith.mulf %541, %545 : vector<16x128xf32>
    %547 = vector.broadcast %526 : vector<16x1xf32> to vector<16x128xf32>
    %548 = arith.mulf %546, %547 : vector<16x128xf32>
    %549 = vector.broadcast %528 : vector<16x1xf32> to vector<16x128xf32>
    %550 = arith.addf %548, %549 : vector<16x128xf32>
    %551 = arith.negf %550 : vector<16x128xf32>
    %552 = math.exp %551 : vector<16x128xf32>
    %cst_179 = arith.constant 1.000000e+00 : f32
    %553 = vector.broadcast %cst_179 : f32 to vector<16x128xf32>
    %554 = arith.addf %553, %552 : vector<16x128xf32>
    %555 = arith.divf %553, %554 : vector<16x128xf32>
    %556 = arith.mulf %523, %555 : vector<16x128xf32>
    %557 = arith.addf %495, %556 : vector<16x128xf32>
    %cst_180 = arith.constant 0.707106769 : f32
    %558 = vector.broadcast %cst_180 : f32 to vector<16x128xf32>
    %559 = arith.mulf %557, %558 : vector<16x128xf32>
    %560 = arith.truncf %559 : vector<16x128xf32> to vector<16x128xbf16>
    %cst_181 = arith.constant dense<0.000000e+00> : vector<16x128xf32>
    %561 = tpu.matmul %11, %560, %cst_181 {dimension_numbers = #tpu.dot_dimension_numbers<[1], [0], [0], [1], [0, 0, 1, 1], [], []>} : vector<16x16xbf16>, vector<16x128xbf16>, vector<16x128xf32> -> vector<16x128xf32>
    %562 = vector.extract_strided_slice %23 {offsets = [0, 0, 0], sizes = [1, 16, 1], strides = [1, 1, 1]} : vector<4x16x1xf32> to vector<1x16x1xf32>
    %563 = vector.shape_cast %562 : vector<1x16x1xf32> to vector<16x1xf32>
    %564 = vector.extract_strided_slice %23 {offsets = [1, 0, 0], sizes = [1, 16, 1], strides = [1, 1, 1]} : vector<4x16x1xf32> to vector<1x16x1xf32>
    %565 = vector.shape_cast %564 : vector<1x16x1xf32> to vector<16x1xf32>
    %cst_182 = arith.constant dense<0.000000e+00> : vector<16xf32>
    %566 = vector.multi_reduction <add>, %561, %cst_182 [1] : vector<16x128xf32> to vector<16xf32>
    %567 = vector.shape_cast %566 : vector<16xf32> to vector<16x1xf32>
    %cst_183 = arith.constant 1.280000e+02 : f32
    %568 = vector.broadcast %cst_183 : f32 to vector<16x1xf32>
    %569 = arith.divf %567, %568 : vector<16x1xf32>
    %570 = vector.broadcast %569 : vector<16x1xf32> to vector<16x128xf32>
    %571 = arith.subf %561, %570 : vector<16x128xf32>
    %572 = arith.mulf %571, %571 : vector<16x128xf32>
    %cst_184 = arith.constant dense<0.000000e+00> : vector<16xf32>
    %573 = vector.multi_reduction <add>, %572, %cst_184 [1] : vector<16x128xf32> to vector<16xf32>
    %574 = vector.shape_cast %573 : vector<16xf32> to vector<16x1xf32>
    %cst_185 = arith.constant 1.280000e+02 : f32
    %575 = vector.broadcast %cst_185 : f32 to vector<16x1xf32>
    %576 = arith.divf %574, %575 : vector<16x1xf32>
    %577 = vector.broadcast %569 : vector<16x1xf32> to vector<16x128xf32>
    %578 = arith.subf %561, %577 : vector<16x128xf32>
    %cst_186 = arith.constant 9.99999974E-6 : f32
    %579 = vector.broadcast %cst_186 : f32 to vector<16x1xf32>
    %580 = arith.addf %576, %579 : vector<16x1xf32>
    %581 = math.rsqrt %580 : vector<16x1xf32>
    %582 = vector.broadcast %581 : vector<16x1xf32> to vector<16x128xf32>
    %583 = arith.mulf %578, %582 : vector<16x128xf32>
    %584 = vector.broadcast %563 : vector<16x1xf32> to vector<16x128xf32>
    %585 = arith.mulf %583, %584 : vector<16x128xf32>
    %586 = vector.broadcast %565 : vector<16x1xf32> to vector<16x128xf32>
    %587 = arith.addf %585, %586 : vector<16x128xf32>
    %cst_187 = arith.constant dense<0.000000e+00> : vector<16x128xf32>
    %588 = tpu.matmul %17, %560, %cst_187 {dimension_numbers = #tpu.dot_dimension_numbers<[1], [0], [0], [1], [0, 0, 1, 1], [], []>} : vector<16x16xbf16>, vector<16x128xbf16>, vector<16x128xf32> -> vector<16x128xf32>
    %589 = vector.extract_strided_slice %23 {offsets = [2, 0, 0], sizes = [1, 16, 1], strides = [1, 1, 1]} : vector<4x16x1xf32> to vector<1x16x1xf32>
    %590 = vector.shape_cast %589 : vector<1x16x1xf32> to vector<16x1xf32>
    %591 = vector.extract_strided_slice %23 {offsets = [3, 0, 0], sizes = [1, 16, 1], strides = [1, 1, 1]} : vector<4x16x1xf32> to vector<1x16x1xf32>
    %592 = vector.shape_cast %591 : vector<1x16x1xf32> to vector<16x1xf32>
    %cst_188 = arith.constant dense<0.000000e+00> : vector<16xf32>
    %593 = vector.multi_reduction <add>, %588, %cst_188 [1] : vector<16x128xf32> to vector<16xf32>
    %594 = vector.shape_cast %593 : vector<16xf32> to vector<16x1xf32>
    %cst_189 = arith.constant 1.280000e+02 : f32
    %595 = vector.broadcast %cst_189 : f32 to vector<16x1xf32>
    %596 = arith.divf %594, %595 : vector<16x1xf32>
    %597 = vector.broadcast %596 : vector<16x1xf32> to vector<16x128xf32>
    %598 = arith.subf %588, %597 : vector<16x128xf32>
    %599 = arith.mulf %598, %598 : vector<16x128xf32>
    %cst_190 = arith.constant dense<0.000000e+00> : vector<16xf32>
    %600 = vector.multi_reduction <add>, %599, %cst_190 [1] : vector<16x128xf32> to vector<16xf32>
    %601 = vector.shape_cast %600 : vector<16xf32> to vector<16x1xf32>
    %cst_191 = arith.constant 1.280000e+02 : f32
    %602 = vector.broadcast %cst_191 : f32 to vector<16x1xf32>
    %603 = arith.divf %601, %602 : vector<16x1xf32>
    %604 = vector.broadcast %596 : vector<16x1xf32> to vector<16x128xf32>
    %605 = arith.subf %588, %604 : vector<16x128xf32>
    %cst_192 = arith.constant 9.99999974E-6 : f32
    %606 = vector.broadcast %cst_192 : f32 to vector<16x1xf32>
    %607 = arith.addf %603, %606 : vector<16x1xf32>
    %608 = math.rsqrt %607 : vector<16x1xf32>
    %609 = vector.broadcast %608 : vector<16x1xf32> to vector<16x128xf32>
    %610 = arith.mulf %605, %609 : vector<16x128xf32>
    %611 = vector.broadcast %590 : vector<16x1xf32> to vector<16x128xf32>
    %612 = arith.mulf %610, %611 : vector<16x128xf32>
    %613 = vector.broadcast %592 : vector<16x1xf32> to vector<16x128xf32>
    %614 = arith.addf %612, %613 : vector<16x128xf32>
    %615 = arith.negf %614 : vector<16x128xf32>
    %616 = math.exp %615 : vector<16x128xf32>
    %cst_193 = arith.constant 1.000000e+00 : f32
    %617 = vector.broadcast %cst_193 : f32 to vector<16x128xf32>
    %618 = arith.addf %617, %616 : vector<16x128xf32>
    %619 = arith.divf %617, %618 : vector<16x128xf32>
    %620 = arith.mulf %587, %619 : vector<16x128xf32>
    %621 = arith.addf %559, %620 : vector<16x128xf32>
    %cst_194 = arith.constant 0.707106769 : f32
    %622 = vector.broadcast %cst_194 : f32 to vector<16x128xf32>
    %623 = arith.mulf %621, %622 : vector<16x128xf32>
    %624 = arith.truncf %623 : vector<16x128xf32> to vector<16x128xbf16>
    %cst_195 = arith.constant dense<0.000000e+00> : vector<16x128xf32>
    %625 = tpu.matmul %13, %624, %cst_195 {dimension_numbers = #tpu.dot_dimension_numbers<[1], [0], [0], [1], [0, 0, 1, 1], [], []>} : vector<16x16xbf16>, vector<16x128xbf16>, vector<16x128xf32> -> vector<16x128xf32>
    %626 = vector.extract_strided_slice %25 {offsets = [0, 0, 0], sizes = [1, 16, 1], strides = [1, 1, 1]} : vector<4x16x1xf32> to vector<1x16x1xf32>
    %627 = vector.shape_cast %626 : vector<1x16x1xf32> to vector<16x1xf32>
    %628 = vector.extract_strided_slice %25 {offsets = [1, 0, 0], sizes = [1, 16, 1], strides = [1, 1, 1]} : vector<4x16x1xf32> to vector<1x16x1xf32>
    %629 = vector.shape_cast %628 : vector<1x16x1xf32> to vector<16x1xf32>
    %cst_196 = arith.constant dense<0.000000e+00> : vector<16xf32>
    %630 = vector.multi_reduction <add>, %625, %cst_196 [1] : vector<16x128xf32> to vector<16xf32>
    %631 = vector.shape_cast %630 : vector<16xf32> to vector<16x1xf32>
    %cst_197 = arith.constant 1.280000e+02 : f32
    %632 = vector.broadcast %cst_197 : f32 to vector<16x1xf32>
    %633 = arith.divf %631, %632 : vector<16x1xf32>
    %634 = vector.broadcast %633 : vector<16x1xf32> to vector<16x128xf32>
    %635 = arith.subf %625, %634 : vector<16x128xf32>
    %636 = arith.mulf %635, %635 : vector<16x128xf32>
    %cst_198 = arith.constant dense<0.000000e+00> : vector<16xf32>
    %637 = vector.multi_reduction <add>, %636, %cst_198 [1] : vector<16x128xf32> to vector<16xf32>
    %638 = vector.shape_cast %637 : vector<16xf32> to vector<16x1xf32>
    %cst_199 = arith.constant 1.280000e+02 : f32
    %639 = vector.broadcast %cst_199 : f32 to vector<16x1xf32>
    %640 = arith.divf %638, %639 : vector<16x1xf32>
    %641 = vector.broadcast %633 : vector<16x1xf32> to vector<16x128xf32>
    %642 = arith.subf %625, %641 : vector<16x128xf32>
    %cst_200 = arith.constant 9.99999974E-6 : f32
    %643 = vector.broadcast %cst_200 : f32 to vector<16x1xf32>
    %644 = arith.addf %640, %643 : vector<16x1xf32>
    %645 = math.rsqrt %644 : vector<16x1xf32>
    %646 = vector.broadcast %645 : vector<16x1xf32> to vector<16x128xf32>
    %647 = arith.mulf %642, %646 : vector<16x128xf32>
    %648 = vector.broadcast %627 : vector<16x1xf32> to vector<16x128xf32>
    %649 = arith.mulf %647, %648 : vector<16x128xf32>
    %650 = vector.broadcast %629 : vector<16x1xf32> to vector<16x128xf32>
    %651 = arith.addf %649, %650 : vector<16x128xf32>
    %cst_201 = arith.constant dense<0.000000e+00> : vector<16x128xf32>
    %652 = tpu.matmul %19, %624, %cst_201 {dimension_numbers = #tpu.dot_dimension_numbers<[1], [0], [0], [1], [0, 0, 1, 1], [], []>} : vector<16x16xbf16>, vector<16x128xbf16>, vector<16x128xf32> -> vector<16x128xf32>
    %653 = vector.extract_strided_slice %25 {offsets = [2, 0, 0], sizes = [1, 16, 1], strides = [1, 1, 1]} : vector<4x16x1xf32> to vector<1x16x1xf32>
    %654 = vector.shape_cast %653 : vector<1x16x1xf32> to vector<16x1xf32>
    %655 = vector.extract_strided_slice %25 {offsets = [3, 0, 0], sizes = [1, 16, 1], strides = [1, 1, 1]} : vector<4x16x1xf32> to vector<1x16x1xf32>
    %656 = vector.shape_cast %655 : vector<1x16x1xf32> to vector<16x1xf32>
    %cst_202 = arith.constant dense<0.000000e+00> : vector<16xf32>
    %657 = vector.multi_reduction <add>, %652, %cst_202 [1] : vector<16x128xf32> to vector<16xf32>
    %658 = vector.shape_cast %657 : vector<16xf32> to vector<16x1xf32>
    %cst_203 = arith.constant 1.280000e+02 : f32
    %659 = vector.broadcast %cst_203 : f32 to vector<16x1xf32>
    %660 = arith.divf %658, %659 : vector<16x1xf32>
    %661 = vector.broadcast %660 : vector<16x1xf32> to vector<16x128xf32>
    %662 = arith.subf %652, %661 : vector<16x128xf32>
    %663 = arith.mulf %662, %662 : vector<16x128xf32>
    %cst_204 = arith.constant dense<0.000000e+00> : vector<16xf32>
    %664 = vector.multi_reduction <add>, %663, %cst_204 [1] : vector<16x128xf32> to vector<16xf32>
    %665 = vector.shape_cast %664 : vector<16xf32> to vector<16x1xf32>
    %cst_205 = arith.constant 1.280000e+02 : f32
    %666 = vector.broadcast %cst_205 : f32 to vector<16x1xf32>
    %667 = arith.divf %665, %666 : vector<16x1xf32>
    %668 = vector.broadcast %660 : vector<16x1xf32> to vector<16x128xf32>
    %669 = arith.subf %652, %668 : vector<16x128xf32>
    %cst_206 = arith.constant 9.99999974E-6 : f32
    %670 = vector.broadcast %cst_206 : f32 to vector<16x1xf32>
    %671 = arith.addf %667, %670 : vector<16x1xf32>
    %672 = math.rsqrt %671 : vector<16x1xf32>
    %673 = vector.broadcast %672 : vector<16x1xf32> to vector<16x128xf32>
    %674 = arith.mulf %669, %673 : vector<16x128xf32>
    %675 = vector.broadcast %654 : vector<16x1xf32> to vector<16x128xf32>
    %676 = arith.mulf %674, %675 : vector<16x128xf32>
    %677 = vector.broadcast %656 : vector<16x1xf32> to vector<16x128xf32>
    %678 = arith.addf %676, %677 : vector<16x128xf32>
    %679 = arith.negf %678 : vector<16x128xf32>
    %680 = math.exp %679 : vector<16x128xf32>
    %cst_207 = arith.constant 1.000000e+00 : f32
    %681 = vector.broadcast %cst_207 : f32 to vector<16x128xf32>
    %682 = arith.addf %681, %680 : vector<16x128xf32>
    %683 = arith.divf %681, %682 : vector<16x128xf32>
    %684 = arith.mulf %651, %683 : vector<16x128xf32>
    %685 = arith.addf %623, %684 : vector<16x128xf32>
    %cst_208 = arith.constant 0.707106769 : f32
    %686 = vector.broadcast %cst_208 : f32 to vector<16x128xf32>
    %687 = arith.mulf %685, %686 : vector<16x128xf32>
    %c1_209 = arith.constant 1 : index
    %c0_210 = arith.constant 0 : index
    %c0_211 = arith.constant 0 : index
    %688 = vector.load %arg12[%c1_209, %c0_210, %c0_211] : memref<2x16x128xf32, #tpu.memory_space<vmem>>, vector<1x16x128xf32>
    %689 = vector.shape_cast %688 : vector<1x16x128xf32> to vector<16x128xf32>
    %690 = vector.shape_cast %687 : vector<16x128xf32> to vector<1x16x128xf32>
    tpu.vector_store %arg12[%c1_209, %c0_210, %c0_211], %690 {strides = array<i32>} : memref<2x16x128xf32, #tpu.memory_space<vmem>>, vector<1x16x128xf32>,
    %691 = vector.shape_cast %433 : vector<1x1xf32> to vector<1x1x1xf32>
    %c0_212 = arith.constant 0 : index
    %c0_213 = arith.constant 0 : index
    %c0_214 = arith.constant 0 : index
    %692 = vector.load %arg13[%c0_212, %c0_213, %c0_214] : memref<1x1x1xf32, #tpu.memory_space<vmem>>, vector<1x1x1xf32>
    tpu.vector_store %arg13[%c0_212, %c0_213, %c0_214], %691 {strides = array<i32>} : memref<1x1x1xf32, #tpu.memory_space<vmem>>, vector<1x1x1xf32>,
    return
  }
  func.func @transform_0(%arg0: i32) -> (i32, i32, i32) {
    %c0_i32 = arith.constant 0 : i32
    %c0_i32_0 = arith.constant 0 : i32
    %c0_i32_1 = arith.constant 0 : i32
    return %arg0, %c0_i32, %c0_i32_0 : i32, i32, i32
  }
  func.func @transform_1(%arg0: i32) -> (i32, i32, i32) {
    %c0_i32 = arith.constant 0 : i32
    %c0_i32_0 = arith.constant 0 : i32
    %c0_i32_1 = arith.constant 0 : i32
    return %arg0, %c0_i32, %c0_i32_0 : i32, i32, i32
  }
  func.func @transform_2(%arg0: i32) -> (i32, i32, i32) {
    %c0_i32 = arith.constant 0 : i32
    %c0_i32_0 = arith.constant 0 : i32
    %c0_i32_1 = arith.constant 0 : i32
    return %arg0, %c0_i32, %c0_i32_0 : i32, i32, i32
  }
  func.func @transform_3(%arg0: i32) -> (i32, i32) {
    %c0_i32 = arith.constant 0 : i32
    %c0_i32_0 = arith.constant 0 : i32
    %c0_i32_1 = arith.constant 0 : i32
    return %c0_i32, %c0_i32_0 : i32, i32
  }
  func.func @transform_4(%arg0: i32) -> (i32, i32, i32) {
    %c0_i32 = arith.constant 0 : i32
    %c0_i32_0 = arith.constant 0 : i32
    %c0_i32_1 = arith.constant 0 : i32
    %c0_i32_2 = arith.constant 0 : i32
    return %c0_i32, %c0_i32_0, %c0_i32_1 : i32, i32, i32
  }
  func.func @transform_5(%arg0: i32) -> (i32, i32) {
    %c0_i32 = arith.constant 0 : i32
    %c0_i32_0 = arith.constant 0 : i32
    %c0_i32_1 = arith.constant 0 : i32
    return %c0_i32, %c0_i32_0 : i32, i32
  }
  func.func @transform_6(%arg0: i32) -> (i32, i32) {
    %c0_i32 = arith.constant 0 : i32
    %c0_i32_0 = arith.constant 0 : i32
    %c0_i32_1 = arith.constant 0 : i32
    return %c0_i32, %c0_i32_0 : i32, i32
  }
  func.func @transform_7(%arg0: i32) -> (i32, i32, i32) {
    %c0_i32 = arith.constant 0 : i32
    %c0_i32_0 = arith.constant 0 : i32
    %c0_i32_1 = arith.constant 0 : i32
    %c0_i32_2 = arith.constant 0 : i32
    return %c0_i32, %c0_i32_0, %c0_i32_1 : i32, i32, i32
  }
  func.func @transform_8(%arg0: i32) -> (i32, i32, i32) {
    %c0_i32 = arith.constant 0 : i32
    %c0_i32_0 = arith.constant 0 : i32
    %c0_i32_1 = arith.constant 0 : i32
    %c0_i32_2 = arith.constant 0 : i32
    return %c0_i32, %c0_i32_0, %c0_i32_1 : i32, i32, i32
  }
  func.func @transform_9(%arg0: i32) -> (i32, i32, i32) {
    %c0_i32 = arith.constant 0 : i32
    %c0_i32_0 = arith.constant 0 : i32
    %c0_i32_1 = arith.constant 0 : i32
    %c0_i32_2 = arith.constant 0 : i32
    return %c0_i32, %c0_i32_0, %c0_i32_1 : i32, i32, i32
  }
  func.func @transform_10(%arg0: i32) -> (i32, i32, i32, i32) {
    %c0_i32 = arith.constant 0 : i32
    %c0_i32_0 = arith.constant 0 : i32
    %c0_i32_1 = arith.constant 0 : i32
    %c0_i32_2 = arith.constant 0 : i32
    %c0_i32_3 = arith.constant 0 : i32
    return %c0_i32, %c0_i32_0, %c0_i32_1, %c0_i32_2 : i32, i32, i32, i32
  }
  func.func @transform_11(%arg0: i32) -> (i32, i32, i32) {
    %c0_i32 = arith.constant 0 : i32
    %c0_i32_0 = arith.constant 0 : i32
    %c0_i32_1 = arith.constant 0 : i32
    return %arg0, %c0_i32, %c0_i32_0 : i32, i32, i32
  }
  func.func @transform_12(%arg0: i32) -> (i32, i32, i32) {
    %c0_i32 = arith.constant 0 : i32
    %c0_i32_0 = arith.constant 0 : i32
    %c0_i32_1 = arith.constant 0 : i32
    return %arg0, %c0_i32, %c0_i32_0 : i32, i32, i32
  }
}

</mosaic_0001>

<llo_original>
// kernel: tpu_custom_call.1
$region0: #{tpu_custom_call.1}
  #allocation0 [shape = 'u32[]', space=smem, size = 0x4, offset = 0x4, fixed_abs, tag = 'smem constant byte address 0x4 - core index']
  #allocation1 [shape = 'u32[144,128]{1,0:T(1,128)}', space=vmem, size = 0x12000, scoped, tag = 'internal scratch']
  %s0 = inlined_call_operand.vmem [shape: f32[4,8,128], index: 0, kind: input, shape index: {}]
  %s1 = inlined_call_operand.vmem [shape: f32[4,16,128], index: 1, kind: input, shape index: {}]
  %s2 = inlined_call_operand.vmem [shape: f32[4,16,128], index: 2, kind: input, shape index: {}]
  %s3 = inlined_call_operand.vmem [shape: bf16[16,8], index: 3, kind: input, shape index: {}]
  %s4 = inlined_call_operand.vmem [shape: f32[2,16,1], index: 4, kind: input, shape index: {}]
  %s5 = inlined_call_operand.vmem [shape: bf16[16,16], index: 5, kind: input, shape index: {}]
  %s6 = inlined_call_operand.vmem [shape: bf16[16,16], index: 6, kind: input, shape index: {}]
  %s7 = inlined_call_operand.vmem [shape: f32[4,16,1], index: 7, kind: input, shape index: {}]
  %s8 = inlined_call_operand.vmem [shape: bf16[3,16,16], index: 8, kind: input, shape index: {}]
  %s9 = inlined_call_operand.vmem [shape: bf16[3,16,16], index: 9, kind: input, shape index: {}]
  %s10 = inlined_call_operand.vmem [shape: f32[3,4,16,1], index: 10, kind: input, shape index: {}]
  %s11 = inlined_call_operand.hbm [shape: f32[4,16,128], index: 11, kind: output, shape index: {0}]
  %s12 = inlined_call_operand.vmem [shape: f32[2,1,1], index: 12, kind: output, shape index: {1}]
  %13 = xla_tuple %s11, %s12
  %s14 = sld [smem:[#allocation0]]
  $region85: #{tpu_custom_call.1} parent=0
    _
  %s16 = ssub.s32 1, %s14
  %s17 = scalar_select 0, %s16, %s14
  $region1: #{tpu_custom_call.1} parent=0
    #allocation2 [shape = 'u8[32768]{0}', space=vmem, size = 0x8000, scoped, tag = 'output window, operand 0']
    #allocation3 [shape = 's32[2]{0}', space=sflag, size = 0x8, scoped, tag = 'scoped memory for tpu_custom_call.1']
    %18 = vsyncpa [#allocation3], 0
    %s19 = scalar_lea.sflag [#allocation3], 1
    %20 = vsyncpa %s19, 0
    loop: start=0, step=1, limit=4
    $region2: #{tpu_custom_call.1} parent=1 // loop_pre_header
      _
    $region3: #{tpu_custom_call.1} parent=1 // loop_header
      %s22 = sphi 0, %s26
      %p23 = scmp.ge.s32.totalorder %s22, 4
      %s32 = sphi 0, %s34
      %s35 = sphi 0, %s32
      %s36 = sphi 0, %s35
      %s52 = sphi 0, %s36
      %s58 = sphi 0, %s60
      %s61 = sphi 0, %s58
      %s62 = sphi 0, %s61
      %s78 = sphi 0, %s62
      %s84 = sphi 0, %s86
      %s87 = sphi 0, %s84
      %s88 = sphi 0, %s87
      %s104 = sphi 0, %s88
      %s108 = sphi 0, %s108
      %s110 = sphi 0, %s108
      %s111 = sphi 0, %s110
      %s125 = sphi 0, %s111
      %s129 = sphi 0, %s129
      %s131 = sphi 0, %s129
      %s132 = sphi 0, %s131
      %s146 = sphi 0, %s132
      %s150 = sphi 0, %s150
      %s152 = sphi 0, %s150
      %s153 = sphi 0, %s152
      %s167 = sphi 0, %s153
      %s171 = sphi 0, %s171
      %s173 = sphi 0, %s171
      %s174 = sphi 0, %s173
      %s188 = sphi 0, %s174
      %s192 = sphi 0, %s192
      %s194 = sphi 0, %s192
      %s195 = sphi 0, %s194
      %s209 = sphi 0, %s195
      %s213 = sphi 0, %s213
      %s215 = sphi 0, %s213
      %s216 = sphi 0, %s215
      %s230 = sphi 0, %s216
      %s234 = sphi 0, %s234
      %s236 = sphi 0, %s234
      %s237 = sphi 0, %s236
      %s251 = sphi 0, %s237
      %s255 = sphi 0, %s255
      %s257 = sphi 0, %s255
      %s258 = sphi 0, %s257
      %s272 = sphi 0, %s258
      %s278 = sphi 0, %s280
      %s281 = sphi 0, %s278
      %s282 = sphi 0, %s281
      %s298 = sphi 0, %s282
      %s304 = sphi 0, %s306
      %s307 = sphi 0, %s304
      %s308 = sphi 0, %s307
      %s324 = sphi 0, %s308
    $region4: #{tpu_custom_call.1} parent=1 // loop_header_branch
      %25 = sbr.rel (%p23) target = $region8
    $region5: #{tpu_custom_call.1} parent=1 // loop_body
      %s27 = ssub.s32 %s22, 1
      %s28 = ssub.s32 %s22, 2
      %s29 = sadd.s32 %s22, 1
      %s30 = ssub.s32 %s22, %s29
      %p31 = scmp.eq.s32.totalorder %s30, 0
      %s33 = sadd.s32 %s32, 1
      %s34 = scalar_select %p31, %s32, %s33
      %p37 = pneg %p31
      %p38 = scmp.eq.s32.totalorder %s22, 1
      %p39 = por %p37, %p38
      %p40 = scmp.ne.s32.totalorder %s32, %s35
      %p41 = scmp.eq.s32.totalorder %s22, 0
      %p42 = por %p40, %p41
      %p43 = scmp.ne.s32.totalorder %s32, %s35
      %p44 = scmp.eq.s32.totalorder %s27, 1
      %p45 = por %p43, %p44
      %p46 = scmp.ne.s32.totalorder %s35, %s36
      %p47 = scmp.eq.s32.totalorder %s27, 0
      %p48 = por %p46, %p47
      %p49 = scmp.ne.s32.totalorder %s35, %s36
      %p50 = scmp.eq.s32.totalorder %s28, 1
      %p51 = por %p49, %p50
      %p53 = scmp.ne.s32.totalorder %s36, %s52
      %p54 = scmp.eq.s32.totalorder %s28, 0
      %p55 = por %p53, %p54
      %s56 = ssub.s32 %s22, %s29
      %p57 = scmp.eq.s32.totalorder %s56, 0
      %s59 = sadd.s32 %s58, 1
      %s60 = scalar_select %p57, %s58, %s59
      %p63 = pneg %p57
      %p64 = scmp.eq.s32.totalorder %s22, 1
      %p65 = por %p63, %p64
      %p66 = scmp.ne.s32.totalorder %s58, %s61
      %p67 = scmp.eq.s32.totalorder %s22, 0
      %p68 = por %p66, %p67
      %p69 = scmp.ne.s32.totalorder %s58, %s61
      %p70 = scmp.eq.s32.totalorder %s27, 1
      %p71 = por %p69, %p70
      %p72 = scmp.ne.s32.totalorder %s61, %s62
      %p73 = scmp.eq.s32.totalorder %s27, 0
      %p74 = por %p72, %p73
      %p75 = scmp.ne.s32.totalorder %s61, %s62
      %p76 = scmp.eq.s32.totalorder %s28, 1
      %p77 = por %p75, %p76
      %p79 = scmp.ne.s32.totalorder %s62, %s78
      %p80 = scmp.eq.s32.totalorder %s28, 0
      %p81 = por %p79, %p80
      %s82 = ssub.s32 %s22, %s29
      %p83 = scmp.eq.s32.totalorder %s82, 0
      %s85 = sadd.s32 %s84, 1
      %s86 = scalar_select %p83, %s84, %s85
      %p89 = pneg %p83
      %p90 = scmp.eq.s32.totalorder %s22, 1
      %p91 = por %p89, %p90
      %p92 = scmp.ne.s32.totalorder %s84, %s87
      %p93 = scmp.eq.s32.totalorder %s22, 0
      %p94 = por %p92, %p93
      %p95 = scmp.ne.s32.totalorder %s84, %s87
      %p96 = scmp.eq.s32.totalorder %s27, 1
      %p97 = por %p95, %p96
      %p98 = scmp.ne.s32.totalorder %s87, %s88
      %p99 = scmp.eq.s32.totalorder %s27, 0
      %p100 = por %p98, %p99
      %p101 = scmp.ne.s32.totalorder %s87, %s88
      %p102 = scmp.eq.s32.totalorder %s28, 1
      %p103 = por %p101, %p102
      %p105 = scmp.ne.s32.totalorder %s88, %s104
      %p106 = scmp.eq.s32.totalorder %s28, 0
      %p107 = por %p105, %p106
      %s109 = sadd.s32 %s108, 1
      %p112 = scmp.eq.s32.totalorder %s22, 1
      %p113 = scmp.ne.s32.totalorder %s108, %s110
      %p114 = scmp.eq.s32.totalorder %s22, 0
      %p115 = por %p113, %p114
      %p116 = scmp.ne.s32.totalorder %s108, %s110
      %p117 = scmp.eq.s32.totalorder %s27, 1
      %p118 = por %p116, %p117
      %p119 = scmp.ne.s32.totalorder %s110, %s111
      %p120 = scmp.eq.s32.totalorder %s27, 0
      %p121 = por %p119, %p120
      %p122 = scmp.ne.s32.totalorder %s110, %s111
      %p123 = scmp.eq.s32.totalorder %s28, 1
      %p124 = por %p122, %p123
      %p126 = scmp.ne.s32.totalorder %s111, %s125
      %p127 = scmp.eq.s32.totalorder %s28, 0
      %p128 = por %p126, %p127
      %s130 = sadd.s32 %s129, 1
      %p133 = scmp.eq.s32.totalorder %s22, 1
      %p134 = scmp.ne.s32.totalorder %s129, %s131
      %p135 = scmp.eq.s32.totalorder %s22, 0
      %p136 = por %p134, %p135
      %p137 = scmp.ne.s32.totalorder %s129, %s131
      %p138 = scmp.eq.s32.totalorder %s27, 1
      %p139 = por %p137, %p138
      %p140 = scmp.ne.s32.totalorder %s131, %s132
      %p141 = scmp.eq.s32.totalorder %s27, 0
      %p142 = por %p140, %p141
      %p143 = scmp.ne.s32.totalorder %s131, %s132
      %p144 = scmp.eq.s32.totalorder %s28, 1
      %p145 = por %p143, %p144
      %p147 = scmp.ne.s32.totalorder %s132, %s146
      %p148 = scmp.eq.s32.totalorder %s28, 0
      %p149 = por %p147, %p148
      %s151 = sadd.s32 %s150, 1
      %p154 = scmp.eq.s32.totalorder %s22, 1
      %p155 = scmp.ne.s32.totalorder %s150, %s152
      %p156 = scmp.eq.s32.totalorder %s22, 0
      %p157 = por %p155, %p156
      %p158 = scmp.ne.s32.totalorder %s150, %s152
      %p159 = scmp.eq.s32.totalorder %s27, 1
      %p160 = por %p158, %p159
      %p161 = scmp.ne.s32.totalorder %s152, %s153
      %p162 = scmp.eq.s32.totalorder %s27, 0
      %p163 = por %p161, %p162
      %p164 = scmp.ne.s32.totalorder %s152, %s153
      %p165 = scmp.eq.s32.totalorder %s28, 1
      %p166 = por %p164, %p165
      %p168 = scmp.ne.s32.totalorder %s153, %s167
      %p169 = scmp.eq.s32.totalorder %s28, 0
      %p170 = por %p168, %p169
      %s172 = sadd.s32 %s171, 1
      %p175 = scmp.eq.s32.totalorder %s22, 1
      %p176 = scmp.ne.s32.totalorder %s171, %s173
      %p177 = scmp.eq.s32.totalorder %s22, 0
      %p178 = por %p176, %p177
      %p179 = scmp.ne.s32.totalorder %s171, %s173
      %p180 = scmp.eq.s32.totalorder %s27, 1
      %p181 = por %p179, %p180
      %p182 = scmp.ne.s32.totalorder %s173, %s174
      %p183 = scmp.eq.s32.totalorder %s27, 0
      %p184 = por %p182, %p183
      %p185 = scmp.ne.s32.totalorder %s173, %s174
      %p186 = scmp.eq.s32.totalorder %s28, 1
      %p187 = por %p185, %p186
      %p189 = scmp.ne.s32.totalorder %s174, %s188
      %p190 = scmp.eq.s32.totalorder %s28, 0
      %p191 = por %p189, %p190
      %s193 = sadd.s32 %s192, 1
      %p196 = scmp.eq.s32.totalorder %s22, 1
      %p197 = scmp.ne.s32.totalorder %s192, %s194
      %p198 = scmp.eq.s32.totalorder %s22, 0
      %p199 = por %p197, %p198
      %p200 = scmp.ne.s32.totalorder %s192, %s194
      %p201 = scmp.eq.s32.totalorder %s27, 1
      %p202 = por %p200, %p201
      %p203 = scmp.ne.s32.totalorder %s194, %s195
      %p204 = scmp.eq.s32.totalorder %s27, 0
      %p205 = por %p203, %p204
      %p206 = scmp.ne.s32.totalorder %s194, %s195
      %p207 = scmp.eq.s32.totalorder %s28, 1
      %p208 = por %p206, %p207
      %p210 = scmp.ne.s32.totalorder %s195, %s209
      %p211 = scmp.eq.s32.totalorder %s28, 0
      %p212 = por %p210, %p211
      %s214 = sadd.s32 %s213, 1
      %p217 = scmp.eq.s32.totalorder %s22, 1
      %p218 = scmp.ne.s32.totalorder %s213, %s215
      %p219 = scmp.eq.s32.totalorder %s22, 0
      %p220 = por %p218, %p219
      %p221 = scmp.ne.s32.totalorder %s213, %s215
      %p222 = scmp.eq.s32.totalorder %s27, 1
      %p223 = por %p221, %p222
      %p224 = scmp.ne.s32.totalorder %s215, %s216
      %p225 = scmp.eq.s32.totalorder %s27, 0
      %p226 = por %p224, %p225
      %p227 = scmp.ne.s32.totalorder %s215, %s216
      %p228 = scmp.eq.s32.totalorder %s28, 1
      %p229 = por %p227, %p228
      %p231 = scmp.ne.s32.totalorder %s216, %s230
      %p232 = scmp.eq.s32.totalorder %s28, 0
      %p233 = por %p231, %p232
      %s235 = sadd.s32 %s234, 1
      %p238 = scmp.eq.s32.totalorder %s22, 1
      %p239 = scmp.ne.s32.totalorder %s234, %s236
      %p240 = scmp.eq.s32.totalorder %s22, 0
      %p241 = por %p239, %p240
      %p242 = scmp.ne.s32.totalorder %s234, %s236
      %p243 = scmp.eq.s32.totalorder %s27, 1
      %p244 = por %p242, %p243
      %p245 = scmp.ne.s32.totalorder %s236, %s237
      %p246 = scmp.eq.s32.totalorder %s27, 0
      %p247 = por %p245, %p246
      %p248 = scmp.ne.s32.totalorder %s236, %s237
      %p249 = scmp.eq.s32.totalorder %s28, 1
      %p250 = por %p248, %p249
      %p252 = scmp.ne.s32.totalorder %s237, %s251
      %p253 = scmp.eq.s32.totalorder %s28, 0
      %p254 = por %p252, %p253
      %s256 = sadd.s32 %s255, 1
      %p259 = scmp.eq.s32.totalorder %s22, 1
      %p260 = scmp.ne.s32.totalorder %s255, %s257
      %p261 = scmp.eq.s32.totalorder %s22, 0
      %p262 = por %p260, %p261
      %p263 = scmp.ne.s32.totalorder %s255, %s257
      %p264 = scmp.eq.s32.totalorder %s27, 1
      %p265 = por %p263, %p264
      %p266 = scmp.ne.s32.totalorder %s257, %s258
      %p267 = scmp.eq.s32.totalorder %s27, 0
      %p268 = por %p266, %p267
      %p269 = scmp.ne.s32.totalorder %s257, %s258
      %p270 = scmp.eq.s32.totalorder %s28, 1
      %p271 = por %p269, %p270
      %p273 = scmp.ne.s32.totalorder %s258, %s272
      %p274 = scmp.eq.s32.totalorder %s28, 0
      %p275 = por %p273, %p274
      %s276 = ssub.s32 %s22, %s29
      %p277 = scmp.eq.s32.totalorder %s276, 0
      %s279 = sadd.s32 %s278, 1
      %s280 = scalar_select %p277, %s278, %s279
      %p283 = pneg %p277
      %p284 = scmp.eq.s32.totalorder %s22, 1
      %p285 = por %p283, %p284
      %p286 = scmp.ne.s32.totalorder %s278, %s281
      %p287 = scmp.eq.s32.totalorder %s22, 0
      %p288 = por %p286, %p287
      %p289 = scmp.ne.s32.totalorder %s278, %s281
      %p290 = scmp.eq.s32.totalorder %s27, 1
      %p291 = por %p289, %p290
      %p292 = scmp.ne.s32.totalorder %s281, %s282
      %p293 = scmp.eq.s32.totalorder %s27, 0
      %p294 = por %p292, %p293
      %p295 = scmp.ne.s32.totalorder %s281, %s282
      %p296 = scmp.eq.s32.totalorder %s28, 1
      %p297 = por %p295, %p296
      %p299 = scmp.ne.s32.totalorder %s282, %s298
      %p300 = scmp.eq.s32.totalorder %s28, 0
      %p301 = por %p299, %p300
      %s302 = ssub.s32 %s22, %s29
      %p303 = scmp.eq.s32.totalorder %s302, 0
      %s305 = sadd.s32 %s304, 1
      %s306 = scalar_select %p303, %s304, %s305
      %p309 = pneg %p303
      %p310 = scmp.eq.s32.totalorder %s22, 1
      %p311 = por %p309, %p310
      %p312 = scmp.ne.s32.totalorder %s304, %s307
      %p313 = scmp.eq.s32.totalorder %s22, 0
      %p314 = por %p312, %p313
      %p315 = scmp.ne.s32.totalorder %s304, %s307
      %p316 = scmp.eq.s32.totalorder %s27, 1
      %p317 = por %p315, %p316
      %p318 = scmp.ne.s32.totalorder %s307, %s308
      %p319 = scmp.eq.s32.totalorder %s27, 0
      %p320 = por %p318, %p319
      %p321 = scmp.ne.s32.totalorder %s307, %s308
      %p322 = scmp.eq.s32.totalorder %s28, 1
      %p323 = por %p321, %p322
      %p325 = scmp.ne.s32.totalorder %s308, %s324
      %p326 = scmp.eq.s32.totalorder %s28, 0
      %p327 = por %p325, %p326
      %p328 = scmp.le.s32.totalorder 1, %s22
      %p329 = scmp.lt.s32.totalorder %s22, 3
      %p330 = pnand %p328, %p329
      %p331 = pneg %p330
      // Predicated region
      $region9: #{tpu_custom_call.1} parent=5 // pred_check
        _
      $region10: #{tpu_custom_call.1} parent=5 // pred_check_branch
        %333 = sbr.rel (%p330) target = $region12
      $region11: #{tpu_custom_call.1} parent=5 // pred_region
        %s334 = ssub.s32 %s22, 1
        // Predicated region
        $region13: #{tpu_custom_call.1} parent=11 // pred_check
          %p335 = pneg %p121
        $region14: #{tpu_custom_call.1} parent=11 // pred_check_branch
          %337 = sbr.rel (%p335) target = $region16
        $region15: #{tpu_custom_call.1} parent=11 // pred_region
          _
        $region16: #{tpu_custom_call.1} parent=11 // pred_fallthru
          _
        // Predicated region
        $region17: #{tpu_custom_call.1} parent=11 // pred_check
          %p338 = pneg %p142
        $region18: #{tpu_custom_call.1} parent=11 // pred_check_branch
          %340 = sbr.rel (%p338) target = $region20
        $region19: #{tpu_custom_call.1} parent=11 // pred_region
          _
        $region20: #{tpu_custom_call.1} parent=11 // pred_fallthru
          _
        // Predicated region
        $region21: #{tpu_custom_call.1} parent=11 // pred_check
          %p341 = pneg %p163
        $region22: #{tpu_custom_call.1} parent=11 // pred_check_branch
          %343 = sbr.rel (%p341) target = $region24
        $region23: #{tpu_custom_call.1} parent=11 // pred_region
          _
        $region24: #{tpu_custom_call.1} parent=11 // pred_fallthru
          _
        // Predicated region
        $region25: #{tpu_custom_call.1} parent=11 // pred_check
          %p344 = pneg %p184
        $region26: #{tpu_custom_call.1} parent=11 // pred_check_branch
          %346 = sbr.rel (%p344) target = $region28
        $region27: #{tpu_custom_call.1} parent=11 // pred_region
          _
        $region28: #{tpu_custom_call.1} parent=11 // pred_fallthru
          _
        // Predicated region
        $region29: #{tpu_custom_call.1} parent=11 // pred_check
          %p347 = pneg %p205
        $region30: #{tpu_custom_call.1} parent=11 // pred_check_branch
          %349 = sbr.rel (%p347) target = $region32
        $region31: #{tpu_custom_call.1} parent=11 // pred_region
          _
        $region32: #{tpu_custom_call.1} parent=11 // pred_fallthru
          _
        // Predicated region
        $region33: #{tpu_custom_call.1} parent=11 // pred_check
          %p350 = pneg %p226
        $region34: #{tpu_custom_call.1} parent=11 // pred_check_branch
          %352 = sbr.rel (%p350) target = $region36
        $region35: #{tpu_custom_call.1} parent=11 // pred_region
          _
        $region36: #{tpu_custom_call.1} parent=11 // pred_fallthru
          _
        // Predicated region
        $region37: #{tpu_custom_call.1} parent=11 // pred_check
          %p353 = pneg %p247
        $region38: #{tpu_custom_call.1} parent=11 // pred_check_branch
          %355 = sbr.rel (%p353) target = $region40
        $region39: #{tpu_custom_call.1} parent=11 // pred_region
          _
        $region40: #{tpu_custom_call.1} parent=11 // pred_fallthru
          _
        // Predicated region
        $region41: #{tpu_custom_call.1} parent=11 // pred_check
          %p356 = pneg %p268
        $region42: #{tpu_custom_call.1} parent=11 // pred_check_branch
          %358 = sbr.rel (%p356) target = $region44
        $region43: #{tpu_custom_call.1} parent=11 // pred_region
          _
        $region44: #{tpu_custom_call.1} parent=11 // pred_fallthru
          _
      $region12: #{tpu_custom_call.1} parent=5 // pred_fallthru
        _
      %p359 = scmp.lt.s32.totalorder %s22, 2
      // Predicated region
      $region45: #{tpu_custom_call.1} parent=5 // pred_check
        %p360 = pneg %p359
      $region46: #{tpu_custom_call.1} parent=5 // pred_check_branch
        %362 = sbr.rel (%p360) target = $region48
      $region47: #{tpu_custom_call.1} parent=5 // pred_region
        // Predicated region
        $region49: #{tpu_custom_call.1} parent=47 // pred_check
          %p363 = pneg %p42
        $region50: #{tpu_custom_call.1} parent=47 // pred_check_branch
          %365 = sbr.rel (%p363) target = $region52
        $region51: #{tpu_custom_call.1} parent=47 // pred_region
          %s366 = smul.u32 2, %s22
          %p367 = scmp.lt.s32.totalorder %s366, 3
          %s368 = scalar_select %p367, %s366, 3
          %s369 = smul.addr %s368, 8
          %s370 = scalar_lea.vmem %s0, %s369
          %s371 = smul.u32 2, %s22
        $region52: #{tpu_custom_call.1} parent=47 // pred_fallthru
          _
        // Predicated region
        $region53: #{tpu_custom_call.1} parent=47 // pred_check
          %p372 = pneg %p68
        $region54: #{tpu_custom_call.1} parent=47 // pred_check_branch
          %374 = sbr.rel (%p372) target = $region56
        $region55: #{tpu_custom_call.1} parent=47 // pred_region
          %s375 = smul.u32 2, %s22
          %p376 = scmp.lt.s32.totalorder %s375, 3
          %s377 = scalar_select %p376, %s375, 3
          %s378 = smul.addr %s377, 2
          %s379 = smul.addr %s378, 8
          %s380 = scalar_lea.vmem %s1, %s379
          %s381 = smul.u32 2, %s22
        $region56: #{tpu_custom_call.1} parent=47 // pred_fallthru
          _
        // Predicated region
        $region57: #{tpu_custom_call.1} parent=47 // pred_check
          %p382 = pneg %p94
        $region58: #{tpu_custom_call.1} parent=47 // pred_check_branch
          %384 = sbr.rel (%p382) target = $region60
        $region59: #{tpu_custom_call.1} parent=47 // pred_region
          %s385 = smul.u32 2, %s22
          %p386 = scmp.lt.s32.totalorder %s385, 3
          %s387 = scalar_select %p386, %s385, 3
          %s388 = smul.addr %s387, 2
          %s389 = smul.addr %s388, 8
          %s390 = scalar_lea.vmem %s2, %s389
          %s391 = smul.u32 2, %s22
        $region60: #{tpu_custom_call.1} parent=47 // pred_fallthru
          _
      $region48: #{tpu_custom_call.1} parent=5 // pred_fallthru
        _
      %p392 = scmp.le.s32.totalorder 1, %s22
      %p393 = scmp.lt.s32.totalorder %s22, 3
      %p394 = pnand %p392, %p393
      %p395 = pneg %p394
      // Predicated region
      $region61: #{tpu_custom_call.1} parent=5 // pred_check
        _
      $region62: #{tpu_custom_call.1} parent=5 // pred_check_branch
        %397 = sbr.rel (%p394) target = $region64
      $region63: #{tpu_custom_call.1} parent=5 // pred_region
        %s398 = ssub.s32 %s22, 1
        %s399 = smul.u32 2, %s27
        %p400 = scmp.lt.s32.totalorder %s399, 3
        %s401 = scalar_select %p400, %s399, 3
        %s402 = smul.addr %s401, 8
        %s403 = scalar_lea.vmem %s0, %s402
        %p404 = pneg %p48
        %p405 = pneg %p45
        %s406 = smul.u32 2, %s27
        %p407 = scmp.lt.s32.totalorder %s406, 3
        %s408 = scalar_select %p407, %s406, 3
        %s409 = smul.addr %s408, 2
        %s410 = smul.addr %s409, 8
        %s411 = scalar_lea.vmem %s1, %s410
        %p412 = pneg %p74
        %p413 = pneg %p71
        %s414 = smul.u32 2, %s27
        %p415 = scmp.lt.s32.totalorder %s414, 3
        %s416 = scalar_select %p415, %s414, 3
        %s417 = smul.addr %s416, 2
        %s418 = smul.addr %s417, 8
        %s419 = scalar_lea.vmem %s2, %s418
        %p420 = pneg %p100
        %p421 = pneg %p97
        %p422 = pneg %p121
        %p423 = pneg %p118
        %p424 = pneg %p142
        %p425 = pneg %p139
        %p426 = pneg %p163
        %p427 = pneg %p160
        %p428 = pneg %p184
        %p429 = pneg %p181
        %p430 = pneg %p205
        %p431 = pneg %p202
        %p432 = pneg %p226
        %p433 = pneg %p223
        %p434 = pneg %p247
        %p435 = pneg %p244
        %p436 = pneg %p268
        %p437 = pneg %p265
        %p438 = pneg %p294
        %p439 = pneg %p291
        %s440 = sand.u32 %s281, 1
        %s441 = scalar_lea.sflag [#allocation3], %s440
        %s442 = sand.u32 %s281, 1
        %s443 = smul.addr %s442, 32
        %s444 = scalar_lea.vmem [#allocation2], %s443
        %p445 = pneg %p320
        %p446 = pneg %p317
        %p447 = scmp.lt.s32.totalorder %s27, 1
        %s448 = scalar_select %p447, %s27, 1
        %s449 = scalar_lea.vmem %s12, %s448
        %s450 = smul.u32 2, %s27
        %p451 = scmp.lt.s32.totalorder %s450, 3
        %s452 = scalar_select %p451, %s450, 3
        %s453 = smul.addr %s452, 8
        %s454 = scalar_lea.vmem %s0, %s453
        %s455 = smul.u32 2, %s27
        %s456 = smul.u32 2, %s27
        %p457 = scmp.lt.s32.totalorder %s456, 3
        %s458 = scalar_select %p457, %s456, 3
        %s459 = smul.addr %s458, 2
        %s460 = smul.addr %s459, 8
        %s461 = scalar_lea.vmem %s1, %s460
        %s462 = smul.u32 2, %s27
        %s463 = smul.u32 2, %s27
        %p464 = scmp.lt.s32.totalorder %s463, 3
        %s465 = scalar_select %p464, %s463, 3
        %s466 = smul.addr %s465, 2
        %s467 = smul.addr %s466, 8
        %s468 = scalar_lea.vmem %s2, %s467
        %s469 = smul.u32 2, %s27
        %s470 = smul.u32 2, %s27
        %p471 = scmp.lt.s32.totalorder %s27, 1
        %s472 = scalar_select %p471, %s27, 1
        %s473 = scalar_lea.vmem %s12, %s472
        %v475 = vld [vmem:[%s3] sm:$0xf]
        %v476 = vld [vmem:[%s3 + $0x4] sm:$0xf]
        %v477 = vld [vmem:[%s4] sm:$0xff]
        %v478 = vld [vmem:[%s4 + $0x8] sm:$0xff]
        %s479 = scalar_lea.vmem %s4, 16
        %v480 = vld [vmem:[%s479] sm:$0xff]
        %v481 = vld [vmem:[%s479 + $0x8] sm:$0xff]
        %v482 = vld [vmem:[%s5] sm:$0xf]
        %v483 = vld [vmem:[%s5 + $0x4] sm:$0xf]
        %v484 = vld [vmem:[%s6] sm:$0xf]
        %v485 = vld [vmem:[%s6 + $0x4] sm:$0xf]
        %v486 = vld [vmem:[%s7] sm:$0xff]
        %v487 = vld [vmem:[%s7 + $0x8] sm:$0xff]
        %v488 = vld [vmem:[%s7 + $0x10] sm:$0xff]
        %v489 = vld [vmem:[%s7 + $0x18] sm:$0xff]
        %v490 = vld [vmem:[%s7 + $0x20] sm:$0xff]
        %v491 = vld [vmem:[%s7 + $0x28] sm:$0xff]
        %v492 = vld [vmem:[%s7 + $0x30] sm:$0xff]
        %v493 = vld [vmem:[%s7 + $0x38] sm:$0xff]
        %v494 = vld [vmem:[%s8] sm:$0xf]
        %v495 = vld [vmem:[%s8 + $0x4] sm:$0xf]
        %s496 = scalar_lea.vmem %s8, 8
        %v497 = vld [vmem:[%s496] sm:$0xf]
        %v498 = vld [vmem:[%s496 + $0x4] sm:$0xf]
        %s499 = scalar_lea.vmem %s8, 16
        %v500 = vld [vmem:[%s499] sm:$0xf]
        %v501 = vld [vmem:[%s499 + $0x4] sm:$0xf]
        %v502 = vld [vmem:[%s9] sm:$0xf]
        %v503 = vld [vmem:[%s9 + $0x4] sm:$0xf]
        %s504 = scalar_lea.vmem %s9, 8
        %v505 = vld [vmem:[%s504] sm:$0xf]
        %v506 = vld [vmem:[%s504 + $0x4] sm:$0xf]
        %s507 = scalar_lea.vmem %s9, 16
        %v508 = vld [vmem:[%s507] sm:$0xf]
        %v509 = vld [vmem:[%s507 + $0x4] sm:$0xf]
        %v510 = vld [vmem:[%s10] sm:$0xff]
        %v511 = vld [vmem:[%s10 + $0x8] sm:$0xff]
        %v512 = vld [vmem:[%s10 + $0x10] sm:$0xff]
        %v513 = vld [vmem:[%s10 + $0x18] sm:$0xff]
        %v514 = vld [vmem:[%s10 + $0x20] sm:$0xff]
        %v515 = vld [vmem:[%s10 + $0x28] sm:$0xff]
        %v516 = vld [vmem:[%s10 + $0x30] sm:$0xff]
        %v517 = vld [vmem:[%s10 + $0x38] sm:$0xff]
        %s518 = scalar_lea.vmem %s10, 64
        %v519 = vld [vmem:[%s518] sm:$0xff]
        %v520 = vld [vmem:[%s518 + $0x8] sm:$0xff]
        %v521 = vld [vmem:[%s518 + $0x10] sm:$0xff]
        %v522 = vld [vmem:[%s518 + $0x18] sm:$0xff]
        %v523 = vld [vmem:[%s518 + $0x20] sm:$0xff]
        %v524 = vld [vmem:[%s518 + $0x28] sm:$0xff]
        %v525 = vld [vmem:[%s518 + $0x30] sm:$0xff]
        %v526 = vld [vmem:[%s518 + $0x38] sm:$0xff]
        %s527 = scalar_lea.vmem %s10, 128
        %v528 = vld [vmem:[%s527] sm:$0xff]
        %v529 = vld [vmem:[%s527 + $0x8] sm:$0xff]
        %v530 = vld [vmem:[%s527 + $0x10] sm:$0xff]
        %v531 = vld [vmem:[%s527 + $0x18] sm:$0xff]
        %v532 = vld [vmem:[%s527 + $0x20] sm:$0xff]
        %v533 = vld [vmem:[%s527 + $0x28] sm:$0xff]
        %v534 = vld [vmem:[%s527 + $0x30] sm:$0xff]
        %v535 = vld [vmem:[%s527 + $0x38] sm:$0xff]
        %v536 = vld [vmem:[%s454] sm:$0xff]
        %v537 = vpack.c.bf16 %v536, %v536
        %v538 = vld [vmem:[%s461] sm:$0xff]
        %v539 = vld [vmem:[%s461 + $0x8] sm:$0xff]
        %v540 = vld [vmem:[%s468] sm:$0xff]
        %v541 = vld [vmem:[%s468 + $0x8] sm:$0xff]
        %v544 = vunpack.c.l.b16 %v475
        %v545 = vunpack.c.l.b16 %v476
        %v546 = vpack.c.b16 %v545, %v544
        %vm547 = vcmask 64512
        %v549 = vsel %vm547, %v546, 0
        %vm551 = vcmask 1043456
        %v553 = vsel %vm551, %v537, 0
        %555 = vmatprep.subr.bf16.mxu0 0
        %556 = vmatpush1.bf16.msra.mxu0 %v553
        %557 = vmatprep.subr.bf16.mxu0 0
        %558 = vmatpush1.bf16.msra.mxu0 0
        %559 = vmatprep.subr.bf16.mxu0 0
        %560 = vmatpush1.bf16.msra.mxu0 0
        %561 = vmatprep.subr.bf16.mxu0 0
        %562 = vmatpush1.bf16.msra.mxu0 0
        %563 = vmatprep.subr.bf16.mxu0 0
        %564 = vmatpush1.bf16.msra.mxu0 0
        %565 = vmatprep.subr.bf16.mxu0 0
        %566 = vmatpush1.bf16.msra.mxu0 0
        %567 = vmatprep.subr.bf16.mxu0 0
        %568 = vmatpush1.bf16.msra.mxu0 0
        %569 = vmatprep.subr.bf16.mxu0 0
        %570 = vmatpush1.bf16.msra.mxu0 0
        %571 = vmatprep.subr.bf16.mxu0 0
        %572 = vmatpush1.bf16.msra.mxu0 0
        %573 = vmatprep.subr.bf16.mxu0 0
        %574 = vmatpush1.bf16.msra.mxu0 0
        %575 = vmatprep.subr.bf16.mxu0 0
        %576 = vmatpush1.bf16.msra.mxu0 0
        %577 = vmatprep.subr.bf16.mxu0 0
        %578 = vmatpush1.bf16.msra.mxu0 0
        %579 = vmatprep.subr.bf16.mxu0 0
        %580 = vmatpush1.bf16.msra.mxu0 0
        %581 = vmatprep.subr.bf16.mxu0 0
        %582 = vmatpush1.bf16.msra.mxu0 0
        %583 = vmatprep.subr.bf16.mxu0 0
        %584 = vmatpush1.bf16.msra.mxu0 0
        %585 = vmatprep.subr.bf16.mxu0 0
        %586 = vmatpush1.bf16.msra.mxu0 0
        %587 = vmatprep.mubr.bf16.mxu0 0
        %588 = vmatmul.mubr.bf16.gmra.mrb[0].mxu0 %v549
        %v589 = vpop.f32.mrb[0].mxu0
        %v590 = vadd.f32 0.0, %v589
        %v591 = vpop.f32.mrb[0].mxu0
        %v592 = vpop.f32.mrb[0].mxu0
        %v593 = vadd.f32 0.0, %v592
        %v594 = vpop.f32.mrb[0].mxu0
        %595 = vdwg.mxu0
        %596 = vadd.xlane.f32.xlu0 %v590
        %v597 = vpop.xlane.xlu0 %596
        %598 = vadd.xlane.f32.xlu0 %v593
        %v599 = vpop.xlane.xlu0 %598
        %v600 = vrcp.pop 128.0
        %v601 = vmul.f32 %v597, %v600
        %v602 = vmul.f32 %v599, %v600
        %v603 = vsub.f32 %v590, %v601
        %v604 = vsub.f32 %v593, %v602
        %v605 = vmul.f32 %v603, %v603
        %v606 = vmul.f32 %v604, %v604
        %607 = vadd.xlane.f32.xlu0 %v605
        %v608 = vpop.xlane.xlu0 %607
        %609 = vadd.xlane.f32.xlu0 %v606
        %v610 = vpop.xlane.xlu0 %609
        %v611 = vmul.f32 %v608, %v600
        %v612 = vmul.f32 %v610, %v600
        %v613 = vadd.f32 %v611, 1e-05
        %v614 = vadd.f32 %v612, 1e-05
        %v615 = vrsqrt.pop %v613
        %v616 = vrsqrt.pop %v614
        %v617 = vmul.f32 %v603, %v615
        %v618 = vmul.f32 %v604, %v616
        %620 = vset.pattern.permute.xlu0 0
        %621 = vperm.xlu0 %620, %v477
        %v622 = vpop.permute.xlu0 %621
        %625 = vset.pattern.permute.xlu0 0
        %626 = vperm.xlu0 %625, %v478
        %v627 = vpop.permute.xlu0 %626
        %v629 = vmul.f32 %v617, %v622
        %v630 = vmul.f32 %v618, %v627
        %632 = vset.pattern.permute.xlu0 0
        %633 = vperm.xlu0 %632, %v480
        %v634 = vpop.permute.xlu0 %633
        %637 = vset.pattern.permute.xlu0 0
        %638 = vperm.xlu0 %637, %v481
        %v639 = vpop.permute.xlu0 %638
        %v641 = vadd.f32 %v629, %v634
        %v642 = vadd.f32 %v630, %v639
        %v643 = vmul.f32 %v641, %v538
        %v644 = vmul.f32 %v642, %v539
        %v645 = vmax.f32 %v643, %v644
        %v646 = vrot.slane %v645, 4
        %v647 = vmax.f32 %v645, %v646
        %v648 = vrot.slane %v647, 2
        %v649 = vmax.f32 %v647, %v648
        %v650 = vrot.slane %v649, 1
        %v651 = vmax.f32 %v649, %v650
        %v652 = vsub.f32 %v643, %v651
        %v653 = vsub.f32 %v644, %v651
        %v656 = vcombine.high %v652, %v652
        %v658 = vunpack.c.l.s4 1966171168
        %v659 = vunpack.c.0.s8 %v658
        %v660 = vlaneseq
        %v661 = vshrl.u32 %v660, 7
        %v662 = vsub.s32 %v659, %v661
        %v663 = vrot.slane %v652, %v662
        %v665 = vunpack.c.l.s4 1966171168
        %v666 = vunpack.c.0.s8 %v665
        %v667 = vlaneseq
        %v668 = vshrl.u32 %v667, 7
        %v669 = vsub.s32 %v666, %v668
        %v670 = vrot.slane %v656, %v669
        %v671 = vcombine.high %v663, %v663
        %v672 = vcombine.high %v670, %v670
        %v674 = vunpack.c.l.s4 1966171168
        %v675 = vunpack.c.0.s8 %v674
        %v676 = vlaneseq
        %v677 = vshrl.u32 %v676, 7
        %v678 = vsub.s32 %v675, %v677
        %v679 = vrot.slane %v663, %v678
        %v681 = vunpack.c.l.s4 1966171168
        %v682 = vunpack.c.0.s8 %v681
        %v683 = vlaneseq
        %v684 = vshrl.u32 %v683, 7
        %v685 = vsub.s32 %v682, %v684
        %v686 = vrot.slane %v670, %v685
        %v688 = vunpack.c.l.s4 1966171168
        %v689 = vunpack.c.0.s8 %v688
        %v690 = vlaneseq
        %v691 = vshrl.u32 %v690, 7
        %v692 = vsub.s32 %v689, %v691
        %v693 = vrot.slane %v671, %v692
        %v695 = vunpack.c.l.s4 1966171168
        %v696 = vunpack.c.0.s8 %v695
        %v697 = vlaneseq
        %v698 = vshrl.u32 %v697, 7
        %v699 = vsub.s32 %v696, %v698
        %v700 = vrot.slane %v672, %v699
        %v701 = vcombine.high %v679, %v679
        %v702 = vcombine.high %v686, %v686
        %v703 = vcombine.high %v693, %v693
        %v704 = vcombine.high %v700, %v700
        %v705 = vcombine.high %v653, %v653
        %v707 = vunpack.c.l.s4 1966171168
        %v708 = vunpack.c.0.s8 %v707
        %v709 = vlaneseq
        %v710 = vshrl.u32 %v709, 7
        %v711 = vsub.s32 %v708, %v710
        %v712 = vrot.slane %v653, %v711
        %v714 = vunpack.c.l.s4 1966171168
        %v715 = vunpack.c.0.s8 %v714
        %v716 = vlaneseq
        %v717 = vshrl.u32 %v716, 7
        %v718 = vsub.s32 %v715, %v717
        %v719 = vrot.slane %v705, %v718
        %v720 = vcombine.high %v712, %v712
        %v721 = vcombine.high %v719, %v719
        %v723 = vunpack.c.l.s4 1966171168
        %v724 = vunpack.c.0.s8 %v723
        %v725 = vlaneseq
        %v726 = vshrl.u32 %v725, 7
        %v727 = vsub.s32 %v724, %v726
        %v728 = vrot.slane %v712, %v727
        %v730 = vunpack.c.l.s4 1966171168
        %v731 = vunpack.c.0.s8 %v730
        %v732 = vlaneseq
        %v733 = vshrl.u32 %v732, 7
        %v734 = vsub.s32 %v731, %v733
        %v735 = vrot.slane %v719, %v734
        %v737 = vunpack.c.l.s4 1966171168
        %v738 = vunpack.c.0.s8 %v737
        %v739 = vlaneseq
        %v740 = vshrl.u32 %v739, 7
        %v741 = vsub.s32 %v738, %v740
        %v742 = vrot.slane %v720, %v741
        %v744 = vunpack.c.l.s4 1966171168
        %v745 = vunpack.c.0.s8 %v744
        %v746 = vlaneseq
        %v747 = vshrl.u32 %v746, 7
        %v748 = vsub.s32 %v745, %v747
        %v749 = vrot.slane %v721, %v748
        %v750 = vcombine.high %v728, %v728
        %v751 = vcombine.high %v735, %v735
        %v752 = vcombine.high %v742, %v742
        %v753 = vcombine.high %v749, %v749
        %v754 = vlaneseq
        %v755 = vshrl.u32 %v754, 7
        %v756 = vsub.s32 0, %v755
        %v757 = vrot.slane %v679, %v756
        %v758 = vlaneseq
        %v759 = vshrl.u32 %v758, 7
        %v760 = vsub.s32 0, %v759
        %v761 = vrot.slane %v693, %v760
        %v762 = vlaneseq
        %v763 = vshrl.u32 %v762, 7
        %v764 = vsub.s32 0, %v763
        %v765 = vrot.slane %v701, %v764
        %v766 = vlaneseq
        %v767 = vshrl.u32 %v766, 7
        %v768 = vsub.s32 0, %v767
        %v769 = vrot.slane %v703, %v768
        %v770 = vlaneseq
        %v771 = vshrl.u32 %v770, 7
        %v772 = vsub.s32 0, %v771
        %v773 = vrot.slane %v686, %v772
        %v774 = vlaneseq
        %v775 = vshrl.u32 %v774, 7
        %v776 = vsub.s32 0, %v775
        %v777 = vrot.slane %v700, %v776
        %v778 = vlaneseq
        %v779 = vshrl.u32 %v778, 7
        %v780 = vsub.s32 0, %v779
        %v781 = vrot.slane %v702, %v780
        %v782 = vlaneseq
        %v783 = vshrl.u32 %v782, 7
        %v784 = vsub.s32 0, %v783
        %v785 = vrot.slane %v704, %v784
        %v786 = vlaneseq
        %v787 = vshrl.u32 %v786, 7
        %v788 = vsub.s32 0, %v787
        %v789 = vrot.slane %v728, %v788
        %v790 = vlaneseq
        %v791 = vshrl.u32 %v790, 7
        %v792 = vsub.s32 0, %v791
        %v793 = vrot.slane %v742, %v792
        %v794 = vlaneseq
        %v795 = vshrl.u32 %v794, 7
        %v796 = vsub.s32 0, %v795
        %v797 = vrot.slane %v750, %v796
        %v798 = vlaneseq
        %v799 = vshrl.u32 %v798, 7
        %v800 = vsub.s32 0, %v799
        %v801 = vrot.slane %v752, %v800
        %v802 = vlaneseq
        %v803 = vshrl.u32 %v802, 7
        %v804 = vsub.s32 0, %v803
        %v805 = vrot.slane %v735, %v804
        %v806 = vlaneseq
        %v807 = vshrl.u32 %v806, 7
        %v808 = vsub.s32 0, %v807
        %v809 = vrot.slane %v749, %v808
        %v810 = vlaneseq
        %v811 = vshrl.u32 %v810, 7
        %v812 = vsub.s32 0, %v811
        %v813 = vrot.slane %v751, %v812
        %v814 = vlaneseq
        %v815 = vshrl.u32 %v814, 7
        %v816 = vsub.s32 0, %v815
        %v817 = vrot.slane %v753, %v816
        %vm834 = vcmp.ge.f32.partialorder %v652, %v757
        %vm835 = vcmp.ge.f32.partialorder %v653, %v757
        %vm836 = vcmp.ge.f32.partialorder %v652, %v761
        %vm837 = vcmp.ge.f32.partialorder %v653, %v761
        %vm838 = vcmp.ge.f32.partialorder %v652, %v765
        %vm839 = vcmp.ge.f32.partialorder %v653, %v765
        %vm840 = vcmp.ge.f32.partialorder %v652, %v769
        %vm841 = vcmp.ge.f32.partialorder %v653, %v769
        %vm842 = vcmp.ge.f32.partialorder %v652, %v773
        %vm843 = vcmp.ge.f32.partialorder %v653, %v773
        %vm844 = vcmp.ge.f32.partialorder %v652, %v777
        %vm845 = vcmp.ge.f32.partialorder %v653, %v777
        %vm846 = vcmp.ge.f32.partialorder %v652, %v781
        %vm847 = vcmp.ge.f32.partialorder %v653, %v781
        %vm848 = vcmp.ge.f32.partialorder %v652, %v785
        %vm849 = vcmp.ge.f32.partialorder %v653, %v785
        %vm850 = vcmp.ge.f32.partialorder %v652, %v789
        %vm851 = vcmp.ge.f32.partialorder %v653, %v789
        %vm852 = vcmp.ge.f32.partialorder %v652, %v793
        %vm853 = vcmp.ge.f32.partialorder %v653, %v793
        %vm854 = vcmp.ge.f32.partialorder %v652, %v797
        %vm855 = vcmp.ge.f32.partialorder %v653, %v797
        %vm856 = vcmp.ge.f32.partialorder %v652, %v801
        %vm857 = vcmp.ge.f32.partialorder %v653, %v801
        %vm858 = vcmp.ge.f32.partialorder %v652, %v805
        %vm859 = vcmp.ge.f32.partialorder %v653, %v805
        %vm860 = vcmp.ge.f32.partialorder %v652, %v809
        %vm861 = vcmp.ge.f32.partialorder %v653, %v809
        %vm862 = vcmp.ge.f32.partialorder %v652, %v813
        %vm863 = vcmp.ge.f32.partialorder %v653, %v813
        %vm864 = vcmp.ge.f32.partialorder %v652, %v817
        %vm865 = vcmp.ge.f32.partialorder %v653, %v817
        %v866 = vsel %vm834, 1, 0
        %v867 = vsel %vm835, 1, 0
        %v868 = vsel %vm836, 1, 0
        %v869 = vsel %vm837, 1, 0
        %v870 = vsel %vm838, 1, 0
        %v871 = vsel %vm839, 1, 0
        %v872 = vsel %vm840, 1, 0
        %v873 = vsel %vm841, 1, 0
        %v874 = vsel %vm842, 1, 0
        %v875 = vsel %vm843, 1, 0
        %v876 = vsel %vm844, 1, 0
        %v877 = vsel %vm845, 1, 0
        %v878 = vsel %vm846, 1, 0
        %v879 = vsel %vm847, 1, 0
        %v880 = vsel %vm848, 1, 0
        %v881 = vsel %vm849, 1, 0
        %v882 = vsel %vm850, 1, 0
        %v883 = vsel %vm851, 1, 0
        %v884 = vsel %vm852, 1, 0
        %v885 = vsel %vm853, 1, 0
        %v886 = vsel %vm854, 1, 0
        %v887 = vsel %vm855, 1, 0
        %v888 = vsel %vm856, 1, 0
        %v889 = vsel %vm857, 1, 0
        %v890 = vsel %vm858, 1, 0
        %v891 = vsel %vm859, 1, 0
        %v892 = vsel %vm860, 1, 0
        %v893 = vsel %vm861, 1, 0
        %v894 = vsel %vm862, 1, 0
        %v895 = vsel %vm863, 1, 0
        %v896 = vsel %vm864, 1, 0
        %v897 = vsel %vm865, 1, 0
        %v898 = vcvt.s32.f32 %v866
        %v899 = vcvt.s32.f32 %v867
        %v900 = vcvt.s32.f32 %v868
        %v901 = vcvt.s32.f32 %v869
        %v902 = vcvt.s32.f32 %v870
        %v903 = vcvt.s32.f32 %v871
        %v904 = vcvt.s32.f32 %v872
        %v905 = vcvt.s32.f32 %v873
        %v906 = vcvt.s32.f32 %v874
        %v907 = vcvt.s32.f32 %v875
        %v908 = vcvt.s32.f32 %v876
        %v909 = vcvt.s32.f32 %v877
        %v910 = vcvt.s32.f32 %v878
        %v911 = vcvt.s32.f32 %v879
        %v912 = vcvt.s32.f32 %v880
        %v913 = vcvt.s32.f32 %v881
        %v914 = vcvt.s32.f32 %v882
        %v915 = vcvt.s32.f32 %v883
        %v916 = vcvt.s32.f32 %v884
        %v917 = vcvt.s32.f32 %v885
        %v918 = vcvt.s32.f32 %v886
        %v919 = vcvt.s32.f32 %v887
        %v920 = vcvt.s32.f32 %v888
        %v921 = vcvt.s32.f32 %v889
        %v922 = vcvt.s32.f32 %v890
        %v923 = vcvt.s32.f32 %v891
        %v924 = vcvt.s32.f32 %v892
        %v925 = vcvt.s32.f32 %v893
        %v926 = vcvt.s32.f32 %v894
        %v927 = vcvt.s32.f32 %v895
        %v928 = vcvt.s32.f32 %v896
        %v929 = vcvt.s32.f32 %v897
        %v930 = vadd.f32 %v898, %v899
        %v931 = vrot.slane %v930, 4
        %v932 = vadd.f32 %v930, %v931
        %v933 = vrot.slane %v932, 2
        %v934 = vadd.f32 %v932, %v933
        %v935 = vrot.slane %v934, 1
        %v936 = vadd.f32 %v934, %v935
        %v937 = vadd.f32 %v900, %v901
        %v938 = vrot.slane %v937, 4
        %v939 = vadd.f32 %v937, %v938
        %v940 = vrot.slane %v939, 2
        %v941 = vadd.f32 %v939, %v940
        %v942 = vrot.slane %v941, 1
        %v943 = vadd.f32 %v941, %v942
        %v944 = vadd.f32 %v902, %v903
        %v945 = vrot.slane %v944, 4
        %v946 = vadd.f32 %v944, %v945
        %v947 = vrot.slane %v946, 2
        %v948 = vadd.f32 %v946, %v947
        %v949 = vrot.slane %v948, 1
        %v950 = vadd.f32 %v948, %v949
        %v951 = vadd.f32 %v904, %v905
        %v952 = vrot.slane %v951, 4
        %v953 = vadd.f32 %v951, %v952
        %v954 = vrot.slane %v953, 2
        %v955 = vadd.f32 %v953, %v954
        %v956 = vrot.slane %v955, 1
        %v957 = vadd.f32 %v955, %v956
        %v958 = vadd.f32 %v906, %v907
        %v959 = vrot.slane %v958, 4
        %v960 = vadd.f32 %v958, %v959
        %v961 = vrot.slane %v960, 2
        %v962 = vadd.f32 %v960, %v961
        %v963 = vrot.slane %v962, 1
        %v964 = vadd.f32 %v962, %v963
        %v965 = vadd.f32 %v908, %v909
        %v966 = vrot.slane %v965, 4
        %v967 = vadd.f32 %v965, %v966
        %v968 = vrot.slane %v967, 2
        %v969 = vadd.f32 %v967, %v968
        %v970 = vrot.slane %v969, 1
        %v971 = vadd.f32 %v969, %v970
        %v972 = vadd.f32 %v910, %v911
        %v973 = vrot.slane %v972, 4
        %v974 = vadd.f32 %v972, %v973
        %v975 = vrot.slane %v974, 2
        %v976 = vadd.f32 %v974, %v975
        %v977 = vrot.slane %v976, 1
        %v978 = vadd.f32 %v976, %v977
        %v979 = vadd.f32 %v912, %v913
        %v980 = vrot.slane %v979, 4
        %v981 = vadd.f32 %v979, %v980
        %v982 = vrot.slane %v981, 2
        %v983 = vadd.f32 %v981, %v982
        %v984 = vrot.slane %v983, 1
        %v985 = vadd.f32 %v983, %v984
        %v986 = vadd.f32 %v914, %v915
        %v987 = vrot.slane %v986, 4
        %v988 = vadd.f32 %v986, %v987
        %v989 = vrot.slane %v988, 2
        %v990 = vadd.f32 %v988, %v989
        %v991 = vrot.slane %v990, 1
        %v992 = vadd.f32 %v990, %v991
        %v993 = vadd.f32 %v916, %v917
        %v994 = vrot.slane %v993, 4
        %v995 = vadd.f32 %v993, %v994
        %v996 = vrot.slane %v995, 2
        %v997 = vadd.f32 %v995, %v996
        %v998 = vrot.slane %v997, 1
        %v999 = vadd.f32 %v997, %v998
        %v1000 = vadd.f32 %v918, %v919
        %v1001 = vrot.slane %v1000, 4
        %v1002 = vadd.f32 %v1000, %v1001
        %v1003 = vrot.slane %v1002, 2
        %v1004 = vadd.f32 %v1002, %v1003
        %v1005 = vrot.slane %v1004, 1
        %v1006 = vadd.f32 %v1004, %v1005
        %v1007 = vadd.f32 %v920, %v921
        %v1008 = vrot.slane %v1007, 4
        %v1009 = vadd.f32 %v1007, %v1008
        %v1010 = vrot.slane %v1009, 2
        %v1011 = vadd.f32 %v1009, %v1010
        %v1012 = vrot.slane %v1011, 1
        %v1013 = vadd.f32 %v1011, %v1012
        %v1014 = vadd.f32 %v922, %v923
        %v1015 = vrot.slane %v1014, 4
        %v1016 = vadd.f32 %v1014, %v1015
        %v1017 = vrot.slane %v1016, 2
        %v1018 = vadd.f32 %v1016, %v1017
        %v1019 = vrot.slane %v1018, 1
        %v1020 = vadd.f32 %v1018, %v1019
        %v1021 = vadd.f32 %v924, %v925
        %v1022 = vrot.slane %v1021, 4
        %v1023 = vadd.f32 %v1021, %v1022
        %v1024 = vrot.slane %v1023, 2
        %v1025 = vadd.f32 %v1023, %v1024
        %v1026 = vrot.slane %v1025, 1
        %v1027 = vadd.f32 %v1025, %v1026
        %v1028 = vadd.f32 %v926, %v927
        %v1029 = vrot.slane %v1028, 4
        %v1030 = vadd.f32 %v1028, %v1029
        %v1031 = vrot.slane %v1030, 2
        %v1032 = vadd.f32 %v1030, %v1031
        %v1033 = vrot.slane %v1032, 1
        %v1034 = vadd.f32 %v1032, %v1033
        %v1035 = vadd.f32 %v928, %v929
        %v1036 = vrot.slane %v1035, 4
        %v1037 = vadd.f32 %v1035, %v1036
        %v1038 = vrot.slane %v1037, 2
        %v1039 = vadd.f32 %v1037, %v1038
        %v1040 = vrot.slane %v1039, 1
        %v1041 = vadd.f32 %v1039, %v1040
        %v1042 = vmul.f32 %v898, %v652
        %v1043 = vmul.f32 %v899, %v653
        %v1044 = vmul.f32 %v900, %v652
        %v1045 = vmul.f32 %v901, %v653
        %v1046 = vmul.f32 %v902, %v652
        %v1047 = vmul.f32 %v903, %v653
        %v1048 = vmul.f32 %v904, %v652
        %v1049 = vmul.f32 %v905, %v653
        %v1050 = vmul.f32 %v906, %v652
        %v1051 = vmul.f32 %v907, %v653
        %v1052 = vmul.f32 %v908, %v652
        %v1053 = vmul.f32 %v909, %v653
        %v1054 = vmul.f32 %v910, %v652
        %v1055 = vmul.f32 %v911, %v653
        %v1056 = vmul.f32 %v912, %v652
        %v1057 = vmul.f32 %v913, %v653
        %v1058 = vmul.f32 %v914, %v652
        %v1059 = vmul.f32 %v915, %v653
        %v1060 = vmul.f32 %v916, %v652
        %v1061 = vmul.f32 %v917, %v653
        %v1062 = vmul.f32 %v918, %v652
        %v1063 = vmul.f32 %v919, %v653
        %v1064 = vmul.f32 %v920, %v652
        %v1065 = vmul.f32 %v921, %v653
        %v1066 = vmul.f32 %v922, %v652
        %v1067 = vmul.f32 %v923, %v653
        %v1068 = vmul.f32 %v924, %v652
        %v1069 = vmul.f32 %v925, %v653
        %v1070 = vmul.f32 %v926, %v652
        %v1071 = vmul.f32 %v927, %v653
        %v1072 = vmul.f32 %v928, %v652
        %v1073 = vmul.f32 %v929, %v653
        %v1074 = vadd.f32 %v1042, %v1043
        %v1075 = vrot.slane %v1074, 4
        %v1076 = vadd.f32 %v1074, %v1075
        %v1077 = vrot.slane %v1076, 2
        %v1078 = vadd.f32 %v1076, %v1077
        %v1079 = vrot.slane %v1078, 1
        %v1080 = vadd.f32 %v1078, %v1079
        %v1081 = vadd.f32 %v1044, %v1045
        %v1082 = vrot.slane %v1081, 4
        %v1083 = vadd.f32 %v1081, %v1082
        %v1084 = vrot.slane %v1083, 2
        %v1085 = vadd.f32 %v1083, %v1084
        %v1086 = vrot.slane %v1085, 1
        %v1087 = vadd.f32 %v1085, %v1086
        %v1088 = vadd.f32 %v1046, %v1047
        %v1089 = vrot.slane %v1088, 4
        %v1090 = vadd.f32 %v1088, %v1089
        %v1091 = vrot.slane %v1090, 2
        %v1092 = vadd.f32 %v1090, %v1091
        %v1093 = vrot.slane %v1092, 1
        %v1094 = vadd.f32 %v1092, %v1093
        %v1095 = vadd.f32 %v1048, %v1049
        %v1096 = vrot.slane %v1095, 4
        %v1097 = vadd.f32 %v1095, %v1096
        %v1098 = vrot.slane %v1097, 2
        %v1099 = vadd.f32 %v1097, %v1098
        %v1100 = vrot.slane %v1099, 1
        %v1101 = vadd.f32 %v1099, %v1100
        %v1102 = vadd.f32 %v1050, %v1051
        %v1103 = vrot.slane %v1102, 4
        %v1104 = vadd.f32 %v1102, %v1103
        %v1105 = vrot.slane %v1104, 2
        %v1106 = vadd.f32 %v1104, %v1105
        %v1107 = vrot.slane %v1106, 1
        %v1108 = vadd.f32 %v1106, %v1107
        %v1109 = vadd.f32 %v1052, %v1053
        %v1110 = vrot.slane %v1109, 4
        %v1111 = vadd.f32 %v1109, %v1110
        %v1112 = vrot.slane %v1111, 2
        %v1113 = vadd.f32 %v1111, %v1112
        %v1114 = vrot.slane %v1113, 1
        %v1115 = vadd.f32 %v1113, %v1114
        %v1116 = vadd.f32 %v1054, %v1055
        %v1117 = vrot.slane %v1116, 4
        %v1118 = vadd.f32 %v1116, %v1117
        %v1119 = vrot.slane %v1118, 2
        %v1120 = vadd.f32 %v1118, %v1119
        %v1121 = vrot.slane %v1120, 1
        %v1122 = vadd.f32 %v1120, %v1121
        %v1123 = vadd.f32 %v1056, %v1057
        %v1124 = vrot.slane %v1123, 4
        %v1125 = vadd.f32 %v1123, %v1124
        %v1126 = vrot.slane %v1125, 2
        %v1127 = vadd.f32 %v1125, %v1126
        %v1128 = vrot.slane %v1127, 1
        %v1129 = vadd.f32 %v1127, %v1128
        %v1130 = vadd.f32 %v1058, %v1059
        %v1131 = vrot.slane %v1130, 4
        %v1132 = vadd.f32 %v1130, %v1131
        %v1133 = vrot.slane %v1132, 2
        %v1134 = vadd.f32 %v1132, %v1133
        %v1135 = vrot.slane %v1134, 1
        %v1136 = vadd.f32 %v1134, %v1135
        %v1137 = vadd.f32 %v1060, %v1061
        %v1138 = vrot.slane %v1137, 4
        %v1139 = vadd.f32 %v1137, %v1138
        %v1140 = vrot.slane %v1139, 2
        %v1141 = vadd.f32 %v1139, %v1140
        %v1142 = vrot.slane %v1141, 1
        %v1143 = vadd.f32 %v1141, %v1142
        %v1144 = vadd.f32 %v1062, %v1063
        %v1145 = vrot.slane %v1144, 4
        %v1146 = vadd.f32 %v1144, %v1145
        %v1147 = vrot.slane %v1146, 2
        %v1148 = vadd.f32 %v1146, %v1147
        %v1149 = vrot.slane %v1148, 1
        %v1150 = vadd.f32 %v1148, %v1149
        %v1151 = vadd.f32 %v1064, %v1065
        %v1152 = vrot.slane %v1151, 4
        %v1153 = vadd.f32 %v1151, %v1152
        %v1154 = vrot.slane %v1153, 2
        %v1155 = vadd.f32 %v1153, %v1154
        %v1156 = vrot.slane %v1155, 1
        %v1157 = vadd.f32 %v1155, %v1156
        %v1158 = vadd.f32 %v1066, %v1067
        %v1159 = vrot.slane %v1158, 4
        %v1160 = vadd.f32 %v1158, %v1159
        %v1161 = vrot.slane %v1160, 2
        %v1162 = vadd.f32 %v1160, %v1161
        %v1163 = vrot.slane %v1162, 1
        %v1164 = vadd.f32 %v1162, %v1163
        %v1165 = vadd.f32 %v1068, %v1069
        %v1166 = vrot.slane %v1165, 4
        %v1167 = vadd.f32 %v1165, %v1166
        %v1168 = vrot.slane %v1167, 2
        %v1169 = vadd.f32 %v1167, %v1168
        %v1170 = vrot.slane %v1169, 1
        %v1171 = vadd.f32 %v1169, %v1170
        %v1172 = vadd.f32 %v1070, %v1071
        %v1173 = vrot.slane %v1172, 4
        %v1174 = vadd.f32 %v1172, %v1173
        %v1175 = vrot.slane %v1174, 2
        %v1176 = vadd.f32 %v1174, %v1175
        %v1177 = vrot.slane %v1176, 1
        %v1178 = vadd.f32 %v1176, %v1177
        %v1179 = vadd.f32 %v1072, %v1073
        %v1180 = vrot.slane %v1179, 4
        %v1181 = vadd.f32 %v1179, %v1180
        %v1182 = vrot.slane %v1181, 2
        %v1183 = vadd.f32 %v1181, %v1182
        %v1184 = vrot.slane %v1183, 1
        %v1185 = vadd.f32 %v1183, %v1184
        %v1186 = vrot.slane %v652, 1
        %v1187 = vrot.slane %v652, 2
        %v1188 = vrot.slane %v652, 3
        %v1189 = vrot.slane %v652, 4
        %v1190 = vrot.slane %v652, 5
        %v1191 = vrot.slane %v652, 6
        %v1192 = vrot.slane %v652, 7
        %v1193 = vrot.slane %v653, 1
        %v1194 = vrot.slane %v653, 2
        %v1195 = vrot.slane %v653, 3
        %v1196 = vrot.slane %v653, 4
        %v1197 = vrot.slane %v653, 5
        %v1198 = vrot.slane %v653, 6
        %v1199 = vrot.slane %v653, 7
        %v1216 = vmul.f32 %v936, %v652
        %v1217 = vmul.f32 %v943, %v1186
        %v1218 = vmul.f32 %v950, %v1187
        %v1219 = vmul.f32 %v957, %v1188
        %v1220 = vmul.f32 %v964, %v1189
        %v1221 = vmul.f32 %v971, %v1190
        %v1222 = vmul.f32 %v978, %v1191
        %v1223 = vmul.f32 %v985, %v1192
        %v1224 = vmul.f32 %v992, %v653
        %v1225 = vmul.f32 %v999, %v1193
        %v1226 = vmul.f32 %v1006, %v1194
        %v1227 = vmul.f32 %v1013, %v1195
        %v1228 = vmul.f32 %v1020, %v1196
        %v1229 = vmul.f32 %v1027, %v1197
        %v1230 = vmul.f32 %v1034, %v1198
        %v1231 = vmul.f32 %v1041, %v1199
        %v1232 = vadd.f32 %v1216, 1.0
        %v1233 = vadd.f32 %v1217, 1.0
        %v1234 = vadd.f32 %v1218, 1.0
        %v1235 = vadd.f32 %v1219, 1.0
        %v1236 = vadd.f32 %v1220, 1.0
        %v1237 = vadd.f32 %v1221, 1.0
        %v1238 = vadd.f32 %v1222, 1.0
        %v1239 = vadd.f32 %v1223, 1.0
        %v1240 = vadd.f32 %v1224, 1.0
        %v1241 = vadd.f32 %v1225, 1.0
        %v1242 = vadd.f32 %v1226, 1.0
        %v1243 = vadd.f32 %v1227, 1.0
        %v1244 = vadd.f32 %v1228, 1.0
        %v1245 = vadd.f32 %v1229, 1.0
        %v1246 = vadd.f32 %v1230, 1.0
        %v1247 = vadd.f32 %v1231, 1.0
        %vm1248 = vcmp.gt.f32.partialorder %v1232, %v1080
        %vm1249 = vcmp.gt.f32.partialorder %v1233, %v1087
        %vm1250 = vcmp.gt.f32.partialorder %v1234, %v1094
        %vm1251 = vcmp.gt.f32.partialorder %v1235, %v1101
        %vm1252 = vcmp.gt.f32.partialorder %v1236, %v1108
        %vm1253 = vcmp.gt.f32.partialorder %v1237, %v1115
        %vm1254 = vcmp.gt.f32.partialorder %v1238, %v1122
        %vm1255 = vcmp.gt.f32.partialorder %v1239, %v1129
        %vm1256 = vcmp.gt.f32.partialorder %v1240, %v1136
        %vm1257 = vcmp.gt.f32.partialorder %v1241, %v1143
        %vm1258 = vcmp.gt.f32.partialorder %v1242, %v1150
        %vm1259 = vcmp.gt.f32.partialorder %v1243, %v1157
        %vm1260 = vcmp.gt.f32.partialorder %v1244, %v1164
        %vm1261 = vcmp.gt.f32.partialorder %v1245, %v1171
        %vm1262 = vcmp.gt.f32.partialorder %v1246, %v1178
        %vm1263 = vcmp.gt.f32.partialorder %v1247, %v1185
        %v1264 = vsel %vm1248, 1, 0
        %v1265 = vsel %vm1249, 1, 0
        %v1266 = vsel %vm1250, 1, 0
        %v1267 = vsel %vm1251, 1, 0
        %v1268 = vsel %vm1252, 1, 0
        %v1269 = vsel %vm1253, 1, 0
        %v1270 = vsel %vm1254, 1, 0
        %v1271 = vsel %vm1255, 1, 0
        %v1272 = vsel %vm1256, 1, 0
        %v1273 = vsel %vm1257, 1, 0
        %v1274 = vsel %vm1258, 1, 0
        %v1275 = vsel %vm1259, 1, 0
        %v1276 = vsel %vm1260, 1, 0
        %v1277 = vsel %vm1261, 1, 0
        %v1278 = vsel %vm1262, 1, 0
        %v1279 = vsel %vm1263, 1, 0
        %v1280 = vcvt.s32.f32 %v1264
        %v1281 = vcvt.s32.f32 %v1265
        %v1282 = vcvt.s32.f32 %v1266
        %v1283 = vcvt.s32.f32 %v1267
        %v1284 = vcvt.s32.f32 %v1268
        %v1285 = vcvt.s32.f32 %v1269
        %v1286 = vcvt.s32.f32 %v1270
        %v1287 = vcvt.s32.f32 %v1271
        %v1288 = vcvt.s32.f32 %v1272
        %v1289 = vcvt.s32.f32 %v1273
        %v1290 = vcvt.s32.f32 %v1274
        %v1291 = vcvt.s32.f32 %v1275
        %v1292 = vcvt.s32.f32 %v1276
        %v1293 = vcvt.s32.f32 %v1277
        %v1294 = vcvt.s32.f32 %v1278
        %v1295 = vcvt.s32.f32 %v1279
        %v1312 = vrot.slane %v1281, 7
        %vm1313 = vcmask 1041409
        %v1314 = vsel %vm1313, %v1312, %v1280
        %v1315 = vrot.slane %v1282, 6
        %vm1316 = vcmask 1042434
        %v1317 = vsel %vm1316, %v1315, %v1314
        %v1318 = vrot.slane %v1283, 5
        %vm1319 = vcmask 1043459
        %v1320 = vsel %vm1319, %v1318, %v1317
        %v1321 = vrot.slane %v1284, 4
        %vm1322 = vcmask 1044484
        %v1323 = vsel %vm1322, %v1321, %v1320
        %v1324 = vrot.slane %v1285, 3
        %vm1325 = vcmask 1045509
        %v1326 = vsel %vm1325, %v1324, %v1323
        %v1327 = vrot.slane %v1286, 2
        %vm1328 = vcmask 1046534
        %v1329 = vsel %vm1328, %v1327, %v1326
        %v1330 = vrot.slane %v1287, 1
        %vm1331 = vcmask 1047559
        %v1332 = vsel %vm1331, %v1330, %v1329
        %v1333 = vrot.slane %v1289, 7
        %v1334 = vsel %vm1313, %v1333, %v1288
        %v1335 = vrot.slane %v1290, 6
        %v1336 = vsel %vm1316, %v1335, %v1334
        %v1337 = vrot.slane %v1291, 5
        %v1338 = vsel %vm1319, %v1337, %v1336
        %v1339 = vrot.slane %v1292, 4
        %v1340 = vsel %vm1322, %v1339, %v1338
        %v1341 = vrot.slane %v1293, 3
        %v1342 = vsel %vm1325, %v1341, %v1340
        %v1343 = vrot.slane %v1294, 2
        %v1344 = vsel %vm1328, %v1343, %v1342
        %v1345 = vrot.slane %v1295, 1
        %v1346 = vsel %vm1331, %v1345, %v1344
        %v1349 = vadd.f32 %v1332, %v1346
        %v1350 = vrot.slane %v1349, 4
        %v1351 = vadd.f32 %v1349, %v1350
        %v1352 = vrot.slane %v1351, 2
        %v1353 = vadd.f32 %v1351, %v1352
        %v1354 = vrot.slane %v1353, 1
        %v1355 = vadd.f32 %v1353, %v1354
        %v1356 = vmul.f32 %v1280, %v652
        %v1357 = vmul.f32 %v1281, %v1186
        %v1358 = vmul.f32 %v1282, %v1187
        %v1359 = vmul.f32 %v1283, %v1188
        %v1360 = vmul.f32 %v1284, %v1189
        %v1361 = vmul.f32 %v1285, %v1190
        %v1362 = vmul.f32 %v1286, %v1191
        %v1363 = vmul.f32 %v1287, %v1192
        %v1364 = vmul.f32 %v1288, %v653
        %v1365 = vmul.f32 %v1289, %v1193
        %v1366 = vmul.f32 %v1290, %v1194
        %v1367 = vmul.f32 %v1291, %v1195
        %v1368 = vmul.f32 %v1292, %v1196
        %v1369 = vmul.f32 %v1293, %v1197
        %v1370 = vmul.f32 %v1294, %v1198
        %v1371 = vmul.f32 %v1295, %v1199
        %v1388 = vrot.slane %v1357, 7
        %v1389 = vsel %vm1313, %v1388, %v1356
        %v1390 = vrot.slane %v1358, 6
        %v1391 = vsel %vm1316, %v1390, %v1389
        %v1392 = vrot.slane %v1359, 5
        %v1393 = vsel %vm1319, %v1392, %v1391
        %v1394 = vrot.slane %v1360, 4
        %v1395 = vsel %vm1322, %v1394, %v1393
        %v1396 = vrot.slane %v1361, 3
        %v1397 = vsel %vm1325, %v1396, %v1395
        %v1398 = vrot.slane %v1362, 2
        %v1399 = vsel %vm1328, %v1398, %v1397
        %v1400 = vrot.slane %v1363, 1
        %v1401 = vsel %vm1331, %v1400, %v1399
        %v1402 = vrot.slane %v1365, 7
        %v1403 = vsel %vm1313, %v1402, %v1364
        %v1404 = vrot.slane %v1366, 6
        %v1405 = vsel %vm1316, %v1404, %v1403
        %v1406 = vrot.slane %v1367, 5
        %v1407 = vsel %vm1319, %v1406, %v1405
        %v1408 = vrot.slane %v1368, 4
        %v1409 = vsel %vm1322, %v1408, %v1407
        %v1410 = vrot.slane %v1369, 3
        %v1411 = vsel %vm1325, %v1410, %v1409
        %v1412 = vrot.slane %v1370, 2
        %v1413 = vsel %vm1328, %v1412, %v1411
        %v1414 = vrot.slane %v1371, 1
        %v1415 = vsel %vm1331, %v1414, %v1413
        %v1418 = vadd.f32 %v1401, %v1415
        %v1419 = vrot.slane %v1418, 4
        %v1420 = vadd.f32 %v1418, %v1419
        %v1421 = vrot.slane %v1420, 2
        %v1422 = vadd.f32 %v1420, %v1421
        %v1423 = vrot.slane %v1422, 1
        %v1424 = vadd.f32 %v1422, %v1423
        %v1425 = vsub.f32 %v1424, 1.0
        %v1426 = vrcp.pop %v1355
        %v1427 = vmul.f32 %v1425, %v1426
        %v1428 = vlaneseq
        %v1429 = vshrl.u32 %v1428, 7
        %v1430 = vsub.s32 0, %v1429
        %v1431 = vrot.slane %v1427, %v1430
        %v1432 = vsub.f32 %v652, %v1431
        %v1433 = vsub.f32 %v653, %v1431
        %v1434 = vmax.f32 %v1432, 0.0
        %v1435 = vmax.f32 %v1433, 0.0
        %v1436 = vsub.f32 0.0, %v1434
        %v1437 = vsub.f32 0.0, %v1435
        %v1438 = vadd.f32 %v1434, 1e-10
        %v1439 = vadd.f32 %v1435, 1e-10
        %v1440 = vlog2.pop %v1438
        %v1441 = vmul.f32 %v1440, 0.6931472
        %v1442 = vlog2.pop %v1439
        %v1443 = vmul.f32 %v1442, 0.6931472
        %v1444 = vmul.f32 %v1436, %v1441
        %v1445 = vmul.f32 %v1437, %v1443
        %v1446 = vadd.f32 %v1444, %v1445
        %v1447 = vrot.slane %v1446, 4
        %v1448 = vadd.f32 %v1446, %v1447
        %v1449 = vrot.slane %v1448, 2
        %v1450 = vadd.f32 %v1448, %v1449
        %v1451 = vrot.slane %v1450, 1
        %v1452 = vadd.f32 %v1450, %v1451
        %1453 = vadd.xlane.f32.xlu0 %v1452
        %v1454 = vpop.xlane.xlu0 %1453
        %v1455 = vadd.f32 %v1454, 0.0
        %v1456 = vmul.f32 %v540, %v1434
        %v1457 = vmul.f32 %v541, %v1435
        %v1458 = vpack.c.bf16 %v1457, %v1456
        %v1461 = vunpack.c.l.b16 %v482
        %v1462 = vunpack.c.l.b16 %v483
        %v1463 = vpack.c.b16 %v1462, %v1461
        %vm1464 = vcmask 130048
        %v1466 = vsel %vm1464, %v1463, 0
        %1468 = vmatprep.subr.bf16.mxu0 0
        %1469 = vmatpush1.bf16.msra.mxu0 %v1458
        %1470 = vmatprep.subr.bf16.mxu0 0
        %1471 = vmatpush1.bf16.msra.mxu0 0
        %1472 = vmatprep.subr.bf16.mxu0 0
        %1473 = vmatpush1.bf16.msra.mxu0 0
        %1474 = vmatprep.subr.bf16.mxu0 0
        %1475 = vmatpush1.bf16.msra.mxu0 0
        %1476 = vmatprep.subr.bf16.mxu0 0
        %1477 = vmatpush1.bf16.msra.mxu0 0
        %1478 = vmatprep.subr.bf16.mxu0 0
        %1479 = vmatpush1.bf16.msra.mxu0 0
        %1480 = vmatprep.subr.bf16.mxu0 0
        %1481 = vmatpush1.bf16.msra.mxu0 0
        %1482 = vmatprep.subr.bf16.mxu0 0
        %1483 = vmatpush1.bf16.msra.mxu0 0
        %1484 = vmatprep.subr.bf16.mxu0 0
        %1485 = vmatpush1.bf16.msra.mxu0 0
        %1486 = vmatprep.subr.bf16.mxu0 0
        %1487 = vmatpush1.bf16.msra.mxu0 0
        %1488 = vmatprep.subr.bf16.mxu0 0
        %1489 = vmatpush1.bf16.msra.mxu0 0
        %1490 = vmatprep.subr.bf16.mxu0 0
        %1491 = vmatpush1.bf16.msra.mxu0 0
        %1492 = vmatprep.subr.bf16.mxu0 0
        %1493 = vmatpush1.bf16.msra.mxu0 0
        %1494 = vmatprep.subr.bf16.mxu0 0
        %1495 = vmatpush1.bf16.msra.mxu0 0
        %1496 = vmatprep.subr.bf16.mxu0 0
        %1497 = vmatpush1.bf16.msra.mxu0 0
        %1498 = vmatprep.subr.bf16.mxu0 0
        %1499 = vmatpush1.bf16.msra.mxu0 0
        %1500 = vmatprep.mubr.bf16.mxu0 0
        %1501 = vmatmul.mubr.bf16.gmra.mrb[0].mxu0 %v1466
        %v1502 = vpop.f32.mrb[0].mxu0
        %v1503 = vadd.f32 0.0, %v1502
        %v1504 = vpop.f32.mrb[0].mxu0
        %v1505 = vpop.f32.mrb[0].mxu0
        %v1506 = vadd.f32 0.0, %v1505
        %v1507 = vpop.f32.mrb[0].mxu0
        %1508 = vdwg.mxu0
        %1509 = vadd.xlane.f32.xlu0 %v1503
        %v1510 = vpop.xlane.xlu0 %1509
        %1511 = vadd.xlane.f32.xlu0 %v1506
        %v1512 = vpop.xlane.xlu0 %1511
        %v1513 = vmul.f32 %v1510, %v600
        %v1514 = vmul.f32 %v1512, %v600
        %v1515 = vsub.f32 %v1503, %v1513
        %v1516 = vsub.f32 %v1506, %v1514
        %v1517 = vmul.f32 %v1515, %v1515
        %v1518 = vmul.f32 %v1516, %v1516
        %1519 = vadd.xlane.f32.xlu0 %v1517
        %v1520 = vpop.xlane.xlu0 %1519
        %1521 = vadd.xlane.f32.xlu0 %v1518
        %v1522 = vpop.xlane.xlu0 %1521
        %v1523 = vmul.f32 %v1520, %v600
        %v1524 = vmul.f32 %v1522, %v600
        %v1525 = vadd.f32 %v1523, 1e-05
        %v1526 = vadd.f32 %v1524, 1e-05
        %v1527 = vrsqrt.pop %v1525
        %v1528 = vrsqrt.pop %v1526
        %v1529 = vmul.f32 %v1515, %v1527
        %v1530 = vmul.f32 %v1516, %v1528
        %1532 = vset.pattern.permute.xlu0 0
        %1533 = vperm.xlu0 %1532, %v486
        %v1534 = vpop.permute.xlu0 %1533
        %1537 = vset.pattern.permute.xlu0 0
        %1538 = vperm.xlu0 %1537, %v487
        %v1539 = vpop.permute.xlu0 %1538
        %v1541 = vmul.f32 %v1529, %v1534
        %v1542 = vmul.f32 %v1530, %v1539
        %1544 = vset.pattern.permute.xlu0 0
        %1545 = vperm.xlu0 %1544, %v488
        %v1546 = vpop.permute.xlu0 %1545
        %1549 = vset.pattern.permute.xlu0 0
        %1550 = vperm.xlu0 %1549, %v489
        %v1551 = vpop.permute.xlu0 %1550
        %v1553 = vadd.f32 %v1541, %v1546
        %v1554 = vadd.f32 %v1542, %v1551
        %v1557 = vunpack.c.l.b16 %v484
        %v1558 = vunpack.c.l.b16 %v485
        %v1559 = vpack.c.b16 %v1558, %v1557
        %v1561 = vsel %vm1464, %v1559, 0
        %1563 = vmatprep.subr.bf16.mxu0 0
        %1564 = vmatpush1.bf16.msra.mxu0 %v1458
        %1565 = vmatprep.subr.bf16.mxu0 0
        %1566 = vmatpush1.bf16.msra.mxu0 0
        %1567 = vmatprep.subr.bf16.mxu0 0
        %1568 = vmatpush1.bf16.msra.mxu0 0
        %1569 = vmatprep.subr.bf16.mxu0 0
        %1570 = vmatpush1.bf16.msra.mxu0 0
        %1571 = vmatprep.subr.bf16.mxu0 0
        %1572 = vmatpush1.bf16.msra.mxu0 0
        %1573 = vmatprep.subr.bf16.mxu0 0
        %1574 = vmatpush1.bf16.msra.mxu0 0
        %1575 = vmatprep.subr.bf16.mxu0 0
        %1576 = vmatpush1.bf16.msra.mxu0 0
        %1577 = vmatprep.subr.bf16.mxu0 0
        %1578 = vmatpush1.bf16.msra.mxu0 0
        %1579 = vmatprep.subr.bf16.mxu0 0
        %1580 = vmatpush1.bf16.msra.mxu0 0
        %1581 = vmatprep.subr.bf16.mxu0 0
        %1582 = vmatpush1.bf16.msra.mxu0 0
        %1583 = vmatprep.subr.bf16.mxu0 0
        %1584 = vmatpush1.bf16.msra.mxu0 0
        %1585 = vmatprep.subr.bf16.mxu0 0
        %1586 = vmatpush1.bf16.msra.mxu0 0
        %1587 = vmatprep.subr.bf16.mxu0 0
        %1588 = vmatpush1.bf16.msra.mxu0 0
        %1589 = vmatprep.subr.bf16.mxu0 0
        %1590 = vmatpush1.bf16.msra.mxu0 0
        %1591 = vmatprep.subr.bf16.mxu0 0
        %1592 = vmatpush1.bf16.msra.mxu0 0
        %1593 = vmatprep.subr.bf16.mxu0 0
        %1594 = vmatpush1.bf16.msra.mxu0 0
        %1595 = vmatprep.mubr.bf16.mxu0 0
        %1596 = vmatmul.mubr.bf16.gmra.mrb[0].mxu0 %v1561
        %v1597 = vpop.f32.mrb[0].mxu0
        %v1598 = vadd.f32 0.0, %v1597
        %v1599 = vpop.f32.mrb[0].mxu0
        %v1600 = vpop.f32.mrb[0].mxu0
        %v1601 = vadd.f32 0.0, %v1600
        %v1602 = vpop.f32.mrb[0].mxu0
        %1603 = vdwg.mxu0
        %1604 = vadd.xlane.f32.xlu0 %v1598
        %v1605 = vpop.xlane.xlu0 %1604
        %1606 = vadd.xlane.f32.xlu0 %v1601
        %v1607 = vpop.xlane.xlu0 %1606
        %v1608 = vmul.f32 %v1605, %v600
        %v1609 = vmul.f32 %v1607, %v600
        %v1610 = vsub.f32 %v1598, %v1608
        %v1611 = vsub.f32 %v1601, %v1609
        %v1612 = vmul.f32 %v1610, %v1610
        %v1613 = vmul.f32 %v1611, %v1611
        %1614 = vadd.xlane.f32.xlu0 %v1612
        %v1615 = vpop.xlane.xlu0 %1614
        %1616 = vadd.xlane.f32.xlu0 %v1613
        %v1617 = vpop.xlane.xlu0 %1616
        %v1618 = vmul.f32 %v1615, %v600
        %v1619 = vmul.f32 %v1617, %v600
        %v1620 = vadd.f32 %v1618, 1e-05
        %v1621 = vadd.f32 %v1619, 1e-05
        %v1622 = vrsqrt.pop %v1620
        %v1623 = vrsqrt.pop %v1621
        %v1624 = vmul.f32 %v1610, %v1622
        %v1625 = vmul.f32 %v1611, %v1623
        %1627 = vset.pattern.permute.xlu0 0
        %1628 = vperm.xlu0 %1627, %v490
        %v1629 = vpop.permute.xlu0 %1628
        %1632 = vset.pattern.permute.xlu0 0
        %1633 = vperm.xlu0 %1632, %v491
        %v1634 = vpop.permute.xlu0 %1633
        %v1636 = vmul.f32 %v1624, %v1629
        %v1637 = vmul.f32 %v1625, %v1634
        %1639 = vset.pattern.permute.xlu0 0
        %1640 = vperm.xlu0 %1639, %v492
        %v1641 = vpop.permute.xlu0 %1640
        %1644 = vset.pattern.permute.xlu0 0
        %1645 = vperm.xlu0 %1644, %v493
        %v1646 = vpop.permute.xlu0 %1645
        %v1648 = vadd.f32 %v1636, %v1641
        %v1649 = vadd.f32 %v1637, %v1646
        %v1650 = vxor.u32 %v1648, 2147483648
        %v1651 = vxor.u32 %v1649, 2147483648
        %v1652 = vmul.f32 %v1650, 1.442695
        %v1653 = vpow.pop %v1652
        %v1654 = vmul.f32 %v1651, 1.442695
        %v1655 = vpow.pop %v1654
        %v1656 = vadd.f32 %v1653, 1.0
        %v1657 = vadd.f32 %v1655, 1.0
        %v1658 = vrcp.pop %v1656
        %v1659 = vmul.f32 1.0, %v1658
        %v1660 = vrcp.pop %v1657
        %v1661 = vmul.f32 1.0, %v1660
        %v1662 = vmul.f32 %v1553, %v1659
        %v1663 = vmul.f32 %v1554, %v1661
        %v1664 = vpack.c.bf16 %v1663, %v1662
        %v1667 = vunpack.c.l.b16 %v494
        %v1668 = vunpack.c.l.b16 %v495
        %v1669 = vpack.c.b16 %v1668, %v1667
        %v1671 = vsel %vm1464, %v1669, 0
        %1673 = vmatprep.subr.bf16.mxu0 0
        %1674 = vmatpush1.bf16.msra.mxu0 %v1664
        %1675 = vmatprep.subr.bf16.mxu0 0
        %1676 = vmatpush1.bf16.msra.mxu0 0
        %1677 = vmatprep.subr.bf16.mxu0 0
        %1678 = vmatpush1.bf16.msra.mxu0 0
        %1679 = vmatprep.subr.bf16.mxu0 0
        %1680 = vmatpush1.bf16.msra.mxu0 0
        %1681 = vmatprep.subr.bf16.mxu0 0
        %1682 = vmatpush1.bf16.msra.mxu0 0
        %1683 = vmatprep.subr.bf16.mxu0 0
        %1684 = vmatpush1.bf16.msra.mxu0 0
        %1685 = vmatprep.subr.bf16.mxu0 0
        %1686 = vmatpush1.bf16.msra.mxu0 0
        %1687 = vmatprep.subr.bf16.mxu0 0
        %1688 = vmatpush1.bf16.msra.mxu0 0
        %1689 = vmatprep.subr.bf16.mxu0 0
        %1690 = vmatpush1.bf16.msra.mxu0 0
        %1691 = vmatprep.subr.bf16.mxu0 0
        %1692 = vmatpush1.bf16.msra.mxu0 0
        %1693 = vmatprep.subr.bf16.mxu0 0
        %1694 = vmatpush1.bf16.msra.mxu0 0
        %1695 = vmatprep.subr.bf16.mxu0 0
        %1696 = vmatpush1.bf16.msra.mxu0 0
        %1697 = vmatprep.subr.bf16.mxu0 0
        %1698 = vmatpush1.bf16.msra.mxu0 0
        %1699 = vmatprep.subr.bf16.mxu0 0
        %1700 = vmatpush1.bf16.msra.mxu0 0
        %1701 = vmatprep.subr.bf16.mxu0 0
        %1702 = vmatpush1.bf16.msra.mxu0 0
        %1703 = vmatprep.subr.bf16.mxu0 0
        %1704 = vmatpush1.bf16.msra.mxu0 0
        %1705 = vmatprep.mubr.bf16.mxu0 0
        %1706 = vmatmul.mubr.bf16.gmra.mrb[0].mxu0 %v1671
        %v1707 = vpop.f32.mrb[0].mxu0
        %v1708 = vadd.f32 0.0, %v1707
        %v1709 = vpop.f32.mrb[0].mxu0
        %v1710 = vpop.f32.mrb[0].mxu0
        %v1711 = vadd.f32 0.0, %v1710
        %v1712 = vpop.f32.mrb[0].mxu0
        %1713 = vdwg.mxu0
        %1714 = vadd.xlane.f32.xlu0 %v1708
        %v1715 = vpop.xlane.xlu0 %1714
        %1716 = vadd.xlane.f32.xlu0 %v1711
        %v1717 = vpop.xlane.xlu0 %1716
        %v1718 = vmul.f32 %v1715, %v600
        %v1719 = vmul.f32 %v1717, %v600
        %v1720 = vsub.f32 %v1708, %v1718
        %v1721 = vsub.f32 %v1711, %v1719
        %v1722 = vmul.f32 %v1720, %v1720
        %v1723 = vmul.f32 %v1721, %v1721
        %1724 = vadd.xlane.f32.xlu0 %v1722
        %v1725 = vpop.xlane.xlu0 %1724
        %1726 = vadd.xlane.f32.xlu0 %v1723
        %v1727 = vpop.xlane.xlu0 %1726
        %v1728 = vmul.f32 %v1725, %v600
        %v1729 = vmul.f32 %v1727, %v600
        %v1730 = vadd.f32 %v1728, 1e-05
        %v1731 = vadd.f32 %v1729, 1e-05
        %v1732 = vrsqrt.pop %v1730
        %v1733 = vrsqrt.pop %v1731
        %v1734 = vmul.f32 %v1720, %v1732
        %v1735 = vmul.f32 %v1721, %v1733
        %1737 = vset.pattern.permute.xlu0 0
        %1738 = vperm.xlu0 %1737, %v510
        %v1739 = vpop.permute.xlu0 %1738
        %1742 = vset.pattern.permute.xlu0 0
        %1743 = vperm.xlu0 %1742, %v511
        %v1744 = vpop.permute.xlu0 %1743
        %v1746 = vmul.f32 %v1734, %v1739
        %v1747 = vmul.f32 %v1735, %v1744
        %1749 = vset.pattern.permute.xlu0 0
        %1750 = vperm.xlu0 %1749, %v512
        %v1751 = vpop.permute.xlu0 %1750
        %1754 = vset.pattern.permute.xlu0 0
        %1755 = vperm.xlu0 %1754, %v513
        %v1756 = vpop.permute.xlu0 %1755
        %v1758 = vadd.f32 %v1746, %v1751
        %v1759 = vadd.f32 %v1747, %v1756
        %v1762 = vunpack.c.l.b16 %v502
        %v1763 = vunpack.c.l.b16 %v503
        %v1764 = vpack.c.b16 %v1763, %v1762
        %v1766 = vsel %vm1464, %v1764, 0
        %1768 = vmatprep.subr.bf16.mxu0 0
        %1769 = vmatpush1.bf16.msra.mxu0 %v1664
        %1770 = vmatprep.subr.bf16.mxu0 0
        %1771 = vmatpush1.bf16.msra.mxu0 0
        %1772 = vmatprep.subr.bf16.mxu0 0
        %1773 = vmatpush1.bf16.msra.mxu0 0
        %1774 = vmatprep.subr.bf16.mxu0 0
        %1775 = vmatpush1.bf16.msra.mxu0 0
        %1776 = vmatprep.subr.bf16.mxu0 0
        %1777 = vmatpush1.bf16.msra.mxu0 0
        %1778 = vmatprep.subr.bf16.mxu0 0
        %1779 = vmatpush1.bf16.msra.mxu0 0
        %1780 = vmatprep.subr.bf16.mxu0 0
        %1781 = vmatpush1.bf16.msra.mxu0 0
        %1782 = vmatprep.subr.bf16.mxu0 0
        %1783 = vmatpush1.bf16.msra.mxu0 0
        %1784 = vmatprep.subr.bf16.mxu0 0
        %1785 = vmatpush1.bf16.msra.mxu0 0
        %1786 = vmatprep.subr.bf16.mxu0 0
        %1787 = vmatpush1.bf16.msra.mxu0 0
        %1788 = vmatprep.subr.bf16.mxu0 0
        %1789 = vmatpush1.bf16.msra.mxu0 0
        %1790 = vmatprep.subr.bf16.mxu0 0
        %1791 = vmatpush1.bf16.msra.mxu0 0
        %1792 = vmatprep.subr.bf16.mxu0 0
        %1793 = vmatpush1.bf16.msra.mxu0 0
        %1794 = vmatprep.subr.bf16.mxu0 0
        %1795 = vmatpush1.bf16.msra.mxu0 0
        %1796 = vmatprep.subr.bf16.mxu0 0
        %1797 = vmatpush1.bf16.msra.mxu0 0
        %1798 = vmatprep.subr.bf16.mxu0 0
        %1799 = vmatpush1.bf16.msra.mxu0 0
        %1800 = vmatprep.mubr.bf16.mxu0 0
        %1801 = vmatmul.mubr.bf16.gmra.mrb[0].mxu0 %v1766
        %v1802 = vpop.f32.mrb[0].mxu0
        %v1803 = vadd.f32 0.0, %v1802
        %v1804 = vpop.f32.mrb[0].mxu0
        %v1805 = vpop.f32.mrb[0].mxu0
        %v1806 = vadd.f32 0.0, %v1805
        %v1807 = vpop.f32.mrb[0].mxu0
        %1808 = vdwg.mxu0
        %1809 = vadd.xlane.f32.xlu0 %v1803
        %v1810 = vpop.xlane.xlu0 %1809
        %1811 = vadd.xlane.f32.xlu0 %v1806
        %v1812 = vpop.xlane.xlu0 %1811
        %v1813 = vmul.f32 %v1810, %v600
        %v1814 = vmul.f32 %v1812, %v600
        %v1815 = vsub.f32 %v1803, %v1813
        %v1816 = vsub.f32 %v1806, %v1814
        %v1817 = vmul.f32 %v1815, %v1815
        %v1818 = vmul.f32 %v1816, %v1816
        %1819 = vadd.xlane.f32.xlu0 %v1817
        %v1820 = vpop.xlane.xlu0 %1819
        %1821 = vadd.xlane.f32.xlu0 %v1818
        %v1822 = vpop.xlane.xlu0 %1821
        %v1823 = vmul.f32 %v1820, %v600
        %v1824 = vmul.f32 %v1822, %v600
        %v1825 = vadd.f32 %v1823, 1e-05
        %v1826 = vadd.f32 %v1824, 1e-05
        %v1827 = vrsqrt.pop %v1825
        %v1828 = vrsqrt.pop %v1826
        %v1829 = vmul.f32 %v1815, %v1827
        %v1830 = vmul.f32 %v1816, %v1828
        %1832 = vset.pattern.permute.xlu0 0
        %1833 = vperm.xlu0 %1832, %v514
        %v1834 = vpop.permute.xlu0 %1833
        %1837 = vset.pattern.permute.xlu0 0
        %1838 = vperm.xlu0 %1837, %v515
        %v1839 = vpop.permute.xlu0 %1838
        %v1841 = vmul.f32 %v1829, %v1834
        %v1842 = vmul.f32 %v1830, %v1839
        %1844 = vset.pattern.permute.xlu0 0
        %1845 = vperm.xlu0 %1844, %v516
        %v1846 = vpop.permute.xlu0 %1845
        %1849 = vset.pattern.permute.xlu0 0
        %1850 = vperm.xlu0 %1849, %v517
        %v1851 = vpop.permute.xlu0 %1850
        %v1853 = vadd.f32 %v1841, %v1846
        %v1854 = vadd.f32 %v1842, %v1851
        %v1855 = vxor.u32 %v1853, 2147483648
        %v1856 = vxor.u32 %v1854, 2147483648
        %v1857 = vmul.f32 %v1855, 1.442695
        %v1858 = vpow.pop %v1857
        %v1859 = vmul.f32 %v1856, 1.442695
        %v1860 = vpow.pop %v1859
        %v1861 = vadd.f32 %v1858, 1.0
        %v1862 = vadd.f32 %v1860, 1.0
        %v1863 = vrcp.pop %v1861
        %v1864 = vmul.f32 1.0, %v1863
        %v1865 = vrcp.pop %v1862
        %v1866 = vmul.f32 1.0, %v1865
        %v1867 = vmul.f32 %v1758, %v1864
        %v1868 = vmul.f32 %v1759, %v1866
        %v1869 = vadd.f32 %v1662, %v1867
        %v1870 = vadd.f32 %v1663, %v1868
        %v1871 = vmul.f32 %v1869, 0.70710677
        %v1872 = vmul.f32 %v1870, 0.70710677
        %v1873 = vpack.c.bf16 %v1872, %v1871
        %v1876 = vunpack.c.l.b16 %v497
        %v1877 = vunpack.c.l.b16 %v498
        %v1878 = vpack.c.b16 %v1877, %v1876
        %v1880 = vsel %vm1464, %v1878, 0
        %1882 = vmatprep.subr.bf16.mxu0 0
        %1883 = vmatpush1.bf16.msra.mxu0 %v1873
        %1884 = vmatprep.subr.bf16.mxu0 0
        %1885 = vmatpush1.bf16.msra.mxu0 0
        %1886 = vmatprep.subr.bf16.mxu0 0
        %1887 = vmatpush1.bf16.msra.mxu0 0
        %1888 = vmatprep.subr.bf16.mxu0 0
        %1889 = vmatpush1.bf16.msra.mxu0 0
        %1890 = vmatprep.subr.bf16.mxu0 0
        %1891 = vmatpush1.bf16.msra.mxu0 0
        %1892 = vmatprep.subr.bf16.mxu0 0
        %1893 = vmatpush1.bf16.msra.mxu0 0
        %1894 = vmatprep.subr.bf16.mxu0 0
        %1895 = vmatpush1.bf16.msra.mxu0 0
        %1896 = vmatprep.subr.bf16.mxu0 0
        %1897 = vmatpush1.bf16.msra.mxu0 0
        %1898 = vmatprep.subr.bf16.mxu0 0
        %1899 = vmatpush1.bf16.msra.mxu0 0
        %1900 = vmatprep.subr.bf16.mxu0 0
        %1901 = vmatpush1.bf16.msra.mxu0 0
        %1902 = vmatprep.subr.bf16.mxu0 0
        %1903 = vmatpush1.bf16.msra.mxu0 0
        %1904 = vmatprep.subr.bf16.mxu0 0
        %1905 = vmatpush1.bf16.msra.mxu0 0
        %1906 = vmatprep.subr.bf16.mxu0 0
        %1907 = vmatpush1.bf16.msra.mxu0 0
        %1908 = vmatprep.subr.bf16.mxu0 0
        %1909 = vmatpush1.bf16.msra.mxu0 0
        %1910 = vmatprep.subr.bf16.mxu0 0
        %1911 = vmatpush1.bf16.msra.mxu0 0
        %1912 = vmatprep.subr.bf16.mxu0 0
        %1913 = vmatpush1.bf16.msra.mxu0 0
        %1914 = vmatprep.mubr.bf16.mxu0 0
        %1915 = vmatmul.mubr.bf16.gmra.mrb[0].mxu0 %v1880
        %v1916 = vpop.f32.mrb[0].mxu0
        %v1917 = vadd.f32 0.0, %v1916
        %v1918 = vpop.f32.mrb[0].mxu0
        %v1919 = vpop.f32.mrb[0].mxu0
        %v1920 = vadd.f32 0.0, %v1919
        %v1921 = vpop.f32.mrb[0].mxu0
        %1922 = vdwg.mxu0
        %1923 = vadd.xlane.f32.xlu0 %v1917
        %v1924 = vpop.xlane.xlu0 %1923
        %1925 = vadd.xlane.f32.xlu0 %v1920
        %v1926 = vpop.xlane.xlu0 %1925
        %v1927 = vmul.f32 %v1924, %v600
        %v1928 = vmul.f32 %v1926, %v600
        %v1929 = vsub.f32 %v1917, %v1927
        %v1930 = vsub.f32 %v1920, %v1928
        %v1931 = vmul.f32 %v1929, %v1929
        %v1932 = vmul.f32 %v1930, %v1930
        %1933 = vadd.xlane.f32.xlu0 %v1931
        %v1934 = vpop.xlane.xlu0 %1933
        %1935 = vadd.xlane.f32.xlu0 %v1932
        %v1936 = vpop.xlane.xlu0 %1935
        %v1937 = vmul.f32 %v1934, %v600
        %v1938 = vmul.f32 %v1936, %v600
        %v1939 = vadd.f32 %v1937, 1e-05
        %v1940 = vadd.f32 %v1938, 1e-05
        %v1941 = vrsqrt.pop %v1939
        %v1942 = vrsqrt.pop %v1940
        %v1943 = vmul.f32 %v1929, %v1941
        %v1944 = vmul.f32 %v1930, %v1942
        %1946 = vset.pattern.permute.xlu0 0
        %1947 = vperm.xlu0 %1946, %v519
        %v1948 = vpop.permute.xlu0 %1947
        %1951 = vset.pattern.permute.xlu0 0
        %1952 = vperm.xlu0 %1951, %v520
        %v1953 = vpop.permute.xlu0 %1952
        %v1955 = vmul.f32 %v1943, %v1948
        %v1956 = vmul.f32 %v1944, %v1953
        %1958 = vset.pattern.permute.xlu0 0
        %1959 = vperm.xlu0 %1958, %v521
        %v1960 = vpop.permute.xlu0 %1959
        %1963 = vset.pattern.permute.xlu0 0
        %1964 = vperm.xlu0 %1963, %v522
        %v1965 = vpop.permute.xlu0 %1964
        %v1967 = vadd.f32 %v1955, %v1960
        %v1968 = vadd.f32 %v1956, %v1965
        %v1971 = vunpack.c.l.b16 %v505
        %v1972 = vunpack.c.l.b16 %v506
        %v1973 = vpack.c.b16 %v1972, %v1971
        %v1975 = vsel %vm1464, %v1973, 0
        %1977 = vmatprep.subr.bf16.mxu0 0
        %1978 = vmatpush1.bf16.msra.mxu0 %v1873
        %1979 = vmatprep.subr.bf16.mxu0 0
        %1980 = vmatpush1.bf16.msra.mxu0 0
        %1981 = vmatprep.subr.bf16.mxu0 0
        %1982 = vmatpush1.bf16.msra.mxu0 0
        %1983 = vmatprep.subr.bf16.mxu0 0
        %1984 = vmatpush1.bf16.msra.mxu0 0
        %1985 = vmatprep.subr.bf16.mxu0 0
        %1986 = vmatpush1.bf16.msra.mxu0 0
        %1987 = vmatprep.subr.bf16.mxu0 0
        %1988 = vmatpush1.bf16.msra.mxu0 0
        %1989 = vmatprep.subr.bf16.mxu0 0
        %1990 = vmatpush1.bf16.msra.mxu0 0
        %1991 = vmatprep.subr.bf16.mxu0 0
        %1992 = vmatpush1.bf16.msra.mxu0 0
        %1993 = vmatprep.subr.bf16.mxu0 0
        %1994 = vmatpush1.bf16.msra.mxu0 0
        %1995 = vmatprep.subr.bf16.mxu0 0
        %1996 = vmatpush1.bf16.msra.mxu0 0
        %1997 = vmatprep.subr.bf16.mxu0 0
        %1998 = vmatpush1.bf16.msra.mxu0 0
        %1999 = vmatprep.subr.bf16.mxu0 0
        %2000 = vmatpush1.bf16.msra.mxu0 0
        %2001 = vmatprep.subr.bf16.mxu0 0
        %2002 = vmatpush1.bf16.msra.mxu0 0
        %2003 = vmatprep.subr.bf16.mxu0 0
        %2004 = vmatpush1.bf16.msra.mxu0 0
        %2005 = vmatprep.subr.bf16.mxu0 0
        %2006 = vmatpush1.bf16.msra.mxu0 0
        %2007 = vmatprep.subr.bf16.mxu0 0
        %2008 = vmatpush1.bf16.msra.mxu0 0
        %2009 = vmatprep.mubr.bf16.mxu0 0
        %2010 = vmatmul.mubr.bf16.gmra.mrb[0].mxu0 %v1975
        %v2011 = vpop.f32.mrb[0].mxu0
        %v2012 = vadd.f32 0.0, %v2011
        %v2013 = vpop.f32.mrb[0].mxu0
        %v2014 = vpop.f32.mrb[0].mxu0
        %v2015 = vadd.f32 0.0, %v2014
        %v2016 = vpop.f32.mrb[0].mxu0
        %2017 = vdwg.mxu0
        %2018 = vadd.xlane.f32.xlu0 %v2012
        %v2019 = vpop.xlane.xlu0 %2018
        %2020 = vadd.xlane.f32.xlu0 %v2015
        %v2021 = vpop.xlane.xlu0 %2020
        %v2022 = vmul.f32 %v2019, %v600
        %v2023 = vmul.f32 %v2021, %v600
        %v2024 = vsub.f32 %v2012, %v2022
        %v2025 = vsub.f32 %v2015, %v2023
        %v2026 = vmul.f32 %v2024, %v2024
        %v2027 = vmul.f32 %v2025, %v2025
        %2028 = vadd.xlane.f32.xlu0 %v2026
        %v2029 = vpop.xlane.xlu0 %2028
        %2030 = vadd.xlane.f32.xlu0 %v2027
        %v2031 = vpop.xlane.xlu0 %2030
        %v2032 = vmul.f32 %v2029, %v600
        %v2033 = vmul.f32 %v2031, %v600
        %v2034 = vadd.f32 %v2032, 1e-05
        %v2035 = vadd.f32 %v2033, 1e-05
        %v2036 = vrsqrt.pop %v2034
        %v2037 = vrsqrt.pop %v2035
        %v2038 = vmul.f32 %v2024, %v2036
        %v2039 = vmul.f32 %v2025, %v2037
        %2041 = vset.pattern.permute.xlu0 0
        %2042 = vperm.xlu0 %2041, %v523
        %v2043 = vpop.permute.xlu0 %2042
        %2046 = vset.pattern.permute.xlu0 0
        %2047 = vperm.xlu0 %2046, %v524
        %v2048 = vpop.permute.xlu0 %2047
        %v2050 = vmul.f32 %v2038, %v2043
        %v2051 = vmul.f32 %v2039, %v2048
        %2053 = vset.pattern.permute.xlu0 0
        %2054 = vperm.xlu0 %2053, %v525
        %v2055 = vpop.permute.xlu0 %2054
        %2058 = vset.pattern.permute.xlu0 0
        %2059 = vperm.xlu0 %2058, %v526
        %v2060 = vpop.permute.xlu0 %2059
        %v2062 = vadd.f32 %v2050, %v2055
        %v2063 = vadd.f32 %v2051, %v2060
        %v2064 = vxor.u32 %v2062, 2147483648
        %v2065 = vxor.u32 %v2063, 2147483648
        %v2066 = vmul.f32 %v2064, 1.442695
        %v2067 = vpow.pop %v2066
        %v2068 = vmul.f32 %v2065, 1.442695
        %v2069 = vpow.pop %v2068
        %v2070 = vadd.f32 %v2067, 1.0
        %v2071 = vadd.f32 %v2069, 1.0
        %v2072 = vrcp.pop %v2070
        %v2073 = vmul.f32 1.0, %v2072
        %v2074 = vrcp.pop %v2071
        %v2075 = vmul.f32 1.0, %v2074
        %v2076 = vmul.f32 %v1967, %v2073
        %v2077 = vmul.f32 %v1968, %v2075
        %v2078 = vadd.f32 %v1871, %v2076
        %v2079 = vadd.f32 %v1872, %v2077
        %v2080 = vmul.f32 %v2078, 0.70710677
        %v2081 = vmul.f32 %v2079, 0.70710677
        %v2082 = vpack.c.bf16 %v2081, %v2080
        %v2085 = vunpack.c.l.b16 %v500
        %v2086 = vunpack.c.l.b16 %v501
        %v2087 = vpack.c.b16 %v2086, %v2085
        %v2089 = vsel %vm1464, %v2087, 0
        %2091 = vmatprep.subr.bf16.mxu0 0
        %2092 = vmatpush1.bf16.msra.mxu0 %v2082
        %2093 = vmatprep.subr.bf16.mxu0 0
        %2094 = vmatpush1.bf16.msra.mxu0 0
        %2095 = vmatprep.subr.bf16.mxu0 0
        %2096 = vmatpush1.bf16.msra.mxu0 0
        %2097 = vmatprep.subr.bf16.mxu0 0
        %2098 = vmatpush1.bf16.msra.mxu0 0
        %2099 = vmatprep.subr.bf16.mxu0 0
        %2100 = vmatpush1.bf16.msra.mxu0 0
        %2101 = vmatprep.subr.bf16.mxu0 0
        %2102 = vmatpush1.bf16.msra.mxu0 0
        %2103 = vmatprep.subr.bf16.mxu0 0
        %2104 = vmatpush1.bf16.msra.mxu0 0
        %2105 = vmatprep.subr.bf16.mxu0 0
        %2106 = vmatpush1.bf16.msra.mxu0 0
        %2107 = vmatprep.subr.bf16.mxu0 0
        %2108 = vmatpush1.bf16.msra.mxu0 0
        %2109 = vmatprep.subr.bf16.mxu0 0
        %2110 = vmatpush1.bf16.msra.mxu0 0
        %2111 = vmatprep.subr.bf16.mxu0 0
        %2112 = vmatpush1.bf16.msra.mxu0 0
        %2113 = vmatprep.subr.bf16.mxu0 0
        %2114 = vmatpush1.bf16.msra.mxu0 0
        %2115 = vmatprep.subr.bf16.mxu0 0
        %2116 = vmatpush1.bf16.msra.mxu0 0
        %2117 = vmatprep.subr.bf16.mxu0 0
        %2118 = vmatpush1.bf16.msra.mxu0 0
        %2119 = vmatprep.subr.bf16.mxu0 0
        %2120 = vmatpush1.bf16.msra.mxu0 0
        %2121 = vmatprep.subr.bf16.mxu0 0
        %2122 = vmatpush1.bf16.msra.mxu0 0
        %2123 = vmatprep.mubr.bf16.mxu0 0
        %2124 = vmatmul.mubr.bf16.gmra.mrb[0].mxu0 %v2089
        %v2125 = vpop.f32.mrb[0].mxu0
        %v2126 = vadd.f32 0.0, %v2125
        %v2127 = vpop.f32.mrb[0].mxu0
        %v2128 = vpop.f32.mrb[0].mxu0
        %v2129 = vadd.f32 0.0, %v2128
        %v2130 = vpop.f32.mrb[0].mxu0
        %2131 = vdwg.mxu0
        %2132 = vadd.xlane.f32.xlu0 %v2126
        %v2133 = vpop.xlane.xlu0 %2132
        %2134 = vadd.xlane.f32.xlu0 %v2129
        %v2135 = vpop.xlane.xlu0 %2134
        %v2136 = vmul.f32 %v2133, %v600
        %v2137 = vmul.f32 %v2135, %v600
        %v2138 = vsub.f32 %v2126, %v2136
        %v2139 = vsub.f32 %v2129, %v2137
        %v2140 = vmul.f32 %v2138, %v2138
        %v2141 = vmul.f32 %v2139, %v2139
        %2142 = vadd.xlane.f32.xlu0 %v2140
        %v2143 = vpop.xlane.xlu0 %2142
        %2144 = vadd.xlane.f32.xlu0 %v2141
        %v2145 = vpop.xlane.xlu0 %2144
        %v2146 = vmul.f32 %v2143, %v600
        %v2147 = vmul.f32 %v2145, %v600
        %v2148 = vadd.f32 %v2146, 1e-05
        %v2149 = vadd.f32 %v2147, 1e-05
        %v2150 = vrsqrt.pop %v2148
        %v2151 = vrsqrt.pop %v2149
        %v2152 = vmul.f32 %v2138, %v2150
        %v2153 = vmul.f32 %v2139, %v2151
        %2155 = vset.pattern.permute.xlu0 0
        %2156 = vperm.xlu0 %2155, %v528
        %v2157 = vpop.permute.xlu0 %2156
        %2160 = vset.pattern.permute.xlu0 0
        %2161 = vperm.xlu0 %2160, %v529
        %v2162 = vpop.permute.xlu0 %2161
        %v2164 = vmul.f32 %v2152, %v2157
        %v2165 = vmul.f32 %v2153, %v2162
        %2167 = vset.pattern.permute.xlu0 0
        %2168 = vperm.xlu0 %2167, %v530
        %v2169 = vpop.permute.xlu0 %2168
        %2172 = vset.pattern.permute.xlu0 0
        %2173 = vperm.xlu0 %2172, %v531
        %v2174 = vpop.permute.xlu0 %2173
        %v2176 = vadd.f32 %v2164, %v2169
        %v2177 = vadd.f32 %v2165, %v2174
        %v2180 = vunpack.c.l.b16 %v508
        %v2181 = vunpack.c.l.b16 %v509
        %v2182 = vpack.c.b16 %v2181, %v2180
        %v2184 = vsel %vm1464, %v2182, 0
        %2186 = vmatprep.subr.bf16.mxu0 0
        %2187 = vmatpush1.bf16.msra.mxu0 %v2082
        %2188 = vmatprep.subr.bf16.mxu0 0
        %2189 = vmatpush1.bf16.msra.mxu0 0
        %2190 = vmatprep.subr.bf16.mxu0 0
        %2191 = vmatpush1.bf16.msra.mxu0 0
        %2192 = vmatprep.subr.bf16.mxu0 0
        %2193 = vmatpush1.bf16.msra.mxu0 0
        %2194 = vmatprep.subr.bf16.mxu0 0
        %2195 = vmatpush1.bf16.msra.mxu0 0
        %2196 = vmatprep.subr.bf16.mxu0 0
        %2197 = vmatpush1.bf16.msra.mxu0 0
        %2198 = vmatprep.subr.bf16.mxu0 0
        %2199 = vmatpush1.bf16.msra.mxu0 0
        %2200 = vmatprep.subr.bf16.mxu0 0
        %2201 = vmatpush1.bf16.msra.mxu0 0
        %2202 = vmatprep.subr.bf16.mxu0 0
        %2203 = vmatpush1.bf16.msra.mxu0 0
        %2204 = vmatprep.subr.bf16.mxu0 0
        %2205 = vmatpush1.bf16.msra.mxu0 0
        %2206 = vmatprep.subr.bf16.mxu0 0
        %2207 = vmatpush1.bf16.msra.mxu0 0
        %2208 = vmatprep.subr.bf16.mxu0 0
        %2209 = vmatpush1.bf16.msra.mxu0 0
        %2210 = vmatprep.subr.bf16.mxu0 0
        %2211 = vmatpush1.bf16.msra.mxu0 0
        %2212 = vmatprep.subr.bf16.mxu0 0
        %2213 = vmatpush1.bf16.msra.mxu0 0
        %2214 = vmatprep.subr.bf16.mxu0 0
        %2215 = vmatpush1.bf16.msra.mxu0 0
        %2216 = vmatprep.subr.bf16.mxu0 0
        %2217 = vmatpush1.bf16.msra.mxu0 0
        %2218 = vmatprep.mubr.bf16.mxu0 0
        %2219 = vmatmul.mubr.bf16.gmra.mrb[0].mxu0 %v2184
        %v2220 = vpop.f32.mrb[0].mxu0
        %v2221 = vadd.f32 0.0, %v2220
        %v2222 = vpop.f32.mrb[0].mxu0
        %v2223 = vpop.f32.mrb[0].mxu0
        %v2224 = vadd.f32 0.0, %v2223
        %v2225 = vpop.f32.mrb[0].mxu0
        %2226 = vdwg.mxu0
        %2227 = vadd.xlane.f32.xlu0 %v2221
        %v2228 = vpop.xlane.xlu0 %2227
        %2229 = vadd.xlane.f32.xlu0 %v2224
        %v2230 = vpop.xlane.xlu0 %2229
        %v2231 = vmul.f32 %v2228, %v600
        %v2232 = vmul.f32 %v2230, %v600
        %v2233 = vsub.f32 %v2221, %v2231
        %v2234 = vsub.f32 %v2224, %v2232
        %v2235 = vmul.f32 %v2233, %v2233
        %v2236 = vmul.f32 %v2234, %v2234
        %2237 = vadd.xlane.f32.xlu0 %v2235
        %v2238 = vpop.xlane.xlu0 %2237
        %2239 = vadd.xlane.f32.xlu0 %v2236
        %v2240 = vpop.xlane.xlu0 %2239
        %v2241 = vmul.f32 %v2238, %v600
        %v2242 = vmul.f32 %v2240, %v600
        %v2243 = vadd.f32 %v2241, 1e-05
        %v2244 = vadd.f32 %v2242, 1e-05
        %v2245 = vrsqrt.pop %v2243
        %v2246 = vrsqrt.pop %v2244
        %v2247 = vmul.f32 %v2233, %v2245
        %v2248 = vmul.f32 %v2234, %v2246
        %2250 = vset.pattern.permute.xlu0 0
        %2251 = vperm.xlu0 %2250, %v532
        %v2252 = vpop.permute.xlu0 %2251
        %2255 = vset.pattern.permute.xlu0 0
        %2256 = vperm.xlu0 %2255, %v533
        %v2257 = vpop.permute.xlu0 %2256
        %v2259 = vmul.f32 %v2247, %v2252
        %v2260 = vmul.f32 %v2248, %v2257
        %2262 = vset.pattern.permute.xlu0 0
        %2263 = vperm.xlu0 %2262, %v534
        %v2264 = vpop.permute.xlu0 %2263
        %2267 = vset.pattern.permute.xlu0 0
        %2268 = vperm.xlu0 %2267, %v535
        %v2269 = vpop.permute.xlu0 %2268
        %v2271 = vadd.f32 %v2259, %v2264
        %v2272 = vadd.f32 %v2260, %v2269
        %v2273 = vxor.u32 %v2271, 2147483648
        %v2274 = vxor.u32 %v2272, 2147483648
        %v2275 = vmul.f32 %v2273, 1.442695
        %v2276 = vpow.pop %v2275
        %v2277 = vmul.f32 %v2274, 1.442695
        %v2278 = vpow.pop %v2277
        %v2279 = vadd.f32 %v2276, 1.0
        %v2280 = vadd.f32 %v2278, 1.0
        %v2281 = vrcp.pop %v2279
        %v2282 = vmul.f32 1.0, %v2281
        %v2283 = vrcp.pop %v2280
        %v2284 = vmul.f32 1.0, %v2283
        %v2285 = vmul.f32 %v2176, %v2282
        %v2286 = vmul.f32 %v2177, %v2284
        %v2287 = vadd.f32 %v2080, %v2285
        %v2288 = vadd.f32 %v2081, %v2286
        %v2289 = vmul.f32 %v2287, 0.70710677
        %v2290 = vmul.f32 %v2288, 0.70710677
        %2291 = vst [vmem:[%s444] sm:$0xff] %v2289
        %2292 = vst [vmem:[%s444 + $0x8] sm:$0xff] %v2290
        %s2293 = scalar_lea.vmem %s454, 8
        %v2294 = vld [vmem:[%s2293] sm:$0xff]
        %v2295 = vpack.c.bf16 %v2294, %v2294
        %s2296 = scalar_lea.vmem %s461, 16
        %v2297 = vld [vmem:[%s2296] sm:$0xff]
        %v2298 = vld [vmem:[%s2296 + $0x8] sm:$0xff]
        %s2299 = scalar_lea.vmem %s468, 16
        %v2300 = vld [vmem:[%s2299] sm:$0xff]
        %v2301 = vld [vmem:[%s2299 + $0x8] sm:$0xff]
        %v2303 = vsel %vm551, %v2295, 0
        %2305 = vmatprep.subr.bf16.mxu0 0
        %2306 = vmatpush1.bf16.msra.mxu0 %v2303
        %2307 = vmatprep.subr.bf16.mxu0 0
        %2308 = vmatpush1.bf16.msra.mxu0 0
        %2309 = vmatprep.subr.bf16.mxu0 0
        %2310 = vmatpush1.bf16.msra.mxu0 0
        %2311 = vmatprep.subr.bf16.mxu0 0
        %2312 = vmatpush1.bf16.msra.mxu0 0
        %2313 = vmatprep.subr.bf16.mxu0 0
        %2314 = vmatpush1.bf16.msra.mxu0 0
        %2315 = vmatprep.subr.bf16.mxu0 0
        %2316 = vmatpush1.bf16.msra.mxu0 0
        %2317 = vmatprep.subr.bf16.mxu0 0
        %2318 = vmatpush1.bf16.msra.mxu0 0
        %2319 = vmatprep.subr.bf16.mxu0 0
        %2320 = vmatpush1.bf16.msra.mxu0 0
        %2321 = vmatprep.subr.bf16.mxu0 0
        %2322 = vmatpush1.bf16.msra.mxu0 0
        %2323 = vmatprep.subr.bf16.mxu0 0
        %2324 = vmatpush1.bf16.msra.mxu0 0
        %2325 = vmatprep.subr.bf16.mxu0 0
        %2326 = vmatpush1.bf16.msra.mxu0 0
        %2327 = vmatprep.subr.bf16.mxu0 0
        %2328 = vmatpush1.bf16.msra.mxu0 0
        %2329 = vmatprep.subr.bf16.mxu0 0
        %2330 = vmatpush1.bf16.msra.mxu0 0
        %2331 = vmatprep.subr.bf16.mxu0 0
        %2332 = vmatpush1.bf16.msra.mxu0 0
        %2333 = vmatprep.subr.bf16.mxu0 0
        %2334 = vmatpush1.bf16.msra.mxu0 0
        %2335 = vmatprep.subr.bf16.mxu0 0
        %2336 = vmatpush1.bf16.msra.mxu0 0
        %2337 = vmatprep.mubr.bf16.mxu0 0
        %2338 = vmatmul.mubr.bf16.gmra.mrb[0].mxu0 %v549
        %v2339 = vpop.f32.mrb[0].mxu0
        %v2340 = vadd.f32 0.0, %v2339
        %v2341 = vpop.f32.mrb[0].mxu0
        %v2342 = vpop.f32.mrb[0].mxu0
        %v2343 = vadd.f32 0.0, %v2342
        %v2344 = vpop.f32.mrb[0].mxu0
        %2345 = vdwg.mxu0
        %2346 = vadd.xlane.f32.xlu0 %v2340
        %v2347 = vpop.xlane.xlu0 %2346
        %2348 = vadd.xlane.f32.xlu0 %v2343
        %v2349 = vpop.xlane.xlu0 %2348
        %v2350 = vmul.f32 %v2347, %v600
        %v2351 = vmul.f32 %v2349, %v600
        %v2352 = vsub.f32 %v2340, %v2350
        %v2353 = vsub.f32 %v2343, %v2351
        %v2354 = vmul.f32 %v2352, %v2352
        %v2355 = vmul.f32 %v2353, %v2353
        %2356 = vadd.xlane.f32.xlu0 %v2354
        %v2357 = vpop.xlane.xlu0 %2356
        %2358 = vadd.xlane.f32.xlu0 %v2355
        %v2359 = vpop.xlane.xlu0 %2358
        %v2360 = vmul.f32 %v2357, %v600
        %v2361 = vmul.f32 %v2359, %v600
        %v2362 = vadd.f32 %v2360, 1e-05
        %v2363 = vadd.f32 %v2361, 1e-05
        %v2364 = vrsqrt.pop %v2362
        %v2365 = vrsqrt.pop %v2363
        %v2366 = vmul.f32 %v2352, %v2364
        %v2367 = vmul.f32 %v2353, %v2365
        %v2368 = vmul.f32 %v2366, %v622
        %v2369 = vmul.f32 %v2367, %v627
        %v2370 = vadd.f32 %v2368, %v634
        %v2371 = vadd.f32 %v2369, %v639
        %v2372 = vmul.f32 %v2370, %v2297
        %v2373 = vmul.f32 %v2371, %v2298
        %v2374 = vmax.f32 %v2372, %v2373
        %v2375 = vrot.slane %v2374, 4
        %v2376 = vmax.f32 %v2374, %v2375
        %v2377 = vrot.slane %v2376, 2
        %v2378 = vmax.f32 %v2376, %v2377
        %v2379 = vrot.slane %v2378, 1
        %v2380 = vmax.f32 %v2378, %v2379
        %v2381 = vsub.f32 %v2372, %v2380
        %v2382 = vsub.f32 %v2373, %v2380
        %v2385 = vcombine.high %v2381, %v2381
        %v2387 = vunpack.c.l.s4 1966171168
        %v2388 = vunpack.c.0.s8 %v2387
        %v2389 = vlaneseq
        %v2390 = vshrl.u32 %v2389, 7
        %v2391 = vsub.s32 %v2388, %v2390
        %v2392 = vrot.slane %v2381, %v2391
        %v2394 = vunpack.c.l.s4 1966171168
        %v2395 = vunpack.c.0.s8 %v2394
        %v2396 = vlaneseq
        %v2397 = vshrl.u32 %v2396, 7
        %v2398 = vsub.s32 %v2395, %v2397
        %v2399 = vrot.slane %v2385, %v2398
        %v2400 = vcombine.high %v2392, %v2392
        %v2401 = vcombine.high %v2399, %v2399
        %v2403 = vunpack.c.l.s4 1966171168
        %v2404 = vunpack.c.0.s8 %v2403
        %v2405 = vlaneseq
        %v2406 = vshrl.u32 %v2405, 7
        %v2407 = vsub.s32 %v2404, %v2406
        %v2408 = vrot.slane %v2392, %v2407
        %v2410 = vunpack.c.l.s4 1966171168
        %v2411 = vunpack.c.0.s8 %v2410
        %v2412 = vlaneseq
        %v2413 = vshrl.u32 %v2412, 7
        %v2414 = vsub.s32 %v2411, %v2413
        %v2415 = vrot.slane %v2399, %v2414
        %v2417 = vunpack.c.l.s4 1966171168
        %v2418 = vunpack.c.0.s8 %v2417
        %v2419 = vlaneseq
        %v2420 = vshrl.u32 %v2419, 7
        %v2421 = vsub.s32 %v2418, %v2420
        %v2422 = vrot.slane %v2400, %v2421
        %v2424 = vunpack.c.l.s4 1966171168
        %v2425 = vunpack.c.0.s8 %v2424
        %v2426 = vlaneseq
        %v2427 = vshrl.u32 %v2426, 7
        %v2428 = vsub.s32 %v2425, %v2427
        %v2429 = vrot.slane %v2401, %v2428
        %v2430 = vcombine.high %v2408, %v2408
        %v2431 = vcombine.high %v2415, %v2415
        %v2432 = vcombine.high %v2422, %v2422
        %v2433 = vcombine.high %v2429, %v2429
        %v2434 = vcombine.high %v2382, %v2382
        %v2436 = vunpack.c.l.s4 1966171168
        %v2437 = vunpack.c.0.s8 %v2436
        %v2438 = vlaneseq
        %v2439 = vshrl.u32 %v2438, 7
        %v2440 = vsub.s32 %v2437, %v2439
        %v2441 = vrot.slane %v2382, %v2440
        %v2443 = vunpack.c.l.s4 1966171168
        %v2444 = vunpack.c.0.s8 %v2443
        %v2445 = vlaneseq
        %v2446 = vshrl.u32 %v2445, 7
        %v2447 = vsub.s32 %v2444, %v2446
        %v2448 = vrot.slane %v2434, %v2447
        %v2449 = vcombine.high %v2441, %v2441
        %v2450 = vcombine.high %v2448, %v2448
        %v2452 = vunpack.c.l.s4 1966171168
        %v2453 = vunpack.c.0.s8 %v2452
        %v2454 = vlaneseq
        %v2455 = vshrl.u32 %v2454, 7
        %v2456 = vsub.s32 %v2453, %v2455
        %v2457 = vrot.slane %v2441, %v2456
        %v2459 = vunpack.c.l.s4 1966171168
        %v2460 = vunpack.c.0.s8 %v2459
        %v2461 = vlaneseq
        %v2462 = vshrl.u32 %v2461, 7
        %v2463 = vsub.s32 %v2460, %v2462
        %v2464 = vrot.slane %v2448, %v2463
        %v2466 = vunpack.c.l.s4 1966171168
        %v2467 = vunpack.c.0.s8 %v2466
        %v2468 = vlaneseq
        %v2469 = vshrl.u32 %v2468, 7
        %v2470 = vsub.s32 %v2467, %v2469
        %v2471 = vrot.slane %v2449, %v2470
        %v2473 = vunpack.c.l.s4 1966171168
        %v2474 = vunpack.c.0.s8 %v2473
        %v2475 = vlaneseq
        %v2476 = vshrl.u32 %v2475, 7
        %v2477 = vsub.s32 %v2474, %v2476
        %v2478 = vrot.slane %v2450, %v2477
        %v2479 = vcombine.high %v2457, %v2457
        %v2480 = vcombine.high %v2464, %v2464
        %v2481 = vcombine.high %v2471, %v2471
        %v2482 = vcombine.high %v2478, %v2478
        %v2483 = vlaneseq
        %v2484 = vshrl.u32 %v2483, 7
        %v2485 = vsub.s32 0, %v2484
        %v2486 = vrot.slane %v2408, %v2485
        %v2487 = vlaneseq
        %v2488 = vshrl.u32 %v2487, 7
        %v2489 = vsub.s32 0, %v2488
        %v2490 = vrot.slane %v2422, %v2489
        %v2491 = vlaneseq
        %v2492 = vshrl.u32 %v2491, 7
        %v2493 = vsub.s32 0, %v2492
        %v2494 = vrot.slane %v2430, %v2493
        %v2495 = vlaneseq
        %v2496 = vshrl.u32 %v2495, 7
        %v2497 = vsub.s32 0, %v2496
        %v2498 = vrot.slane %v2432, %v2497
        %v2499 = vlaneseq
        %v2500 = vshrl.u32 %v2499, 7
        %v2501 = vsub.s32 0, %v2500
        %v2502 = vrot.slane %v2415, %v2501
        %v2503 = vlaneseq
        %v2504 = vshrl.u32 %v2503, 7
        %v2505 = vsub.s32 0, %v2504
        %v2506 = vrot.slane %v2429, %v2505
        %v2507 = vlaneseq
        %v2508 = vshrl.u32 %v2507, 7
        %v2509 = vsub.s32 0, %v2508
        %v2510 = vrot.slane %v2431, %v2509
        %v2511 = vlaneseq
        %v2512 = vshrl.u32 %v2511, 7
        %v2513 = vsub.s32 0, %v2512
        %v2514 = vrot.slane %v2433, %v2513
        %v2515 = vlaneseq
        %v2516 = vshrl.u32 %v2515, 7
        %v2517 = vsub.s32 0, %v2516
        %v2518 = vrot.slane %v2457, %v2517
        %v2519 = vlaneseq
        %v2520 = vshrl.u32 %v2519, 7
        %v2521 = vsub.s32 0, %v2520
        %v2522 = vrot.slane %v2471, %v2521
        %v2523 = vlaneseq
        %v2524 = vshrl.u32 %v2523, 7
        %v2525 = vsub.s32 0, %v2524
        %v2526 = vrot.slane %v2479, %v2525
        %v2527 = vlaneseq
        %v2528 = vshrl.u32 %v2527, 7
        %v2529 = vsub.s32 0, %v2528
        %v2530 = vrot.slane %v2481, %v2529
        %v2531 = vlaneseq
        %v2532 = vshrl.u32 %v2531, 7
        %v2533 = vsub.s32 0, %v2532
        %v2534 = vrot.slane %v2464, %v2533
        %v2535 = vlaneseq
        %v2536 = vshrl.u32 %v2535, 7
        %v2537 = vsub.s32 0, %v2536
        %v2538 = vrot.slane %v2478, %v2537
        %v2539 = vlaneseq
        %v2540 = vshrl.u32 %v2539, 7
        %v2541 = vsub.s32 0, %v2540
        %v2542 = vrot.slane %v2480, %v2541
        %v2543 = vlaneseq
        %v2544 = vshrl.u32 %v2543, 7
        %v2545 = vsub.s32 0, %v2544
        %v2546 = vrot.slane %v2482, %v2545
        %vm2563 = vcmp.ge.f32.partialorder %v2381, %v2486
        %vm2564 = vcmp.ge.f32.partialorder %v2382, %v2486
        %vm2565 = vcmp.ge.f32.partialorder %v2381, %v2490
        %vm2566 = vcmp.ge.f32.partialorder %v2382, %v2490
        %vm2567 = vcmp.ge.f32.partialorder %v2381, %v2494
        %vm2568 = vcmp.ge.f32.partialorder %v2382, %v2494
        %vm2569 = vcmp.ge.f32.partialorder %v2381, %v2498
        %vm2570 = vcmp.ge.f32.partialorder %v2382, %v2498
        %vm2571 = vcmp.ge.f32.partialorder %v2381, %v2502
        %vm2572 = vcmp.ge.f32.partialorder %v2382, %v2502
        %vm2573 = vcmp.ge.f32.partialorder %v2381, %v2506
        %vm2574 = vcmp.ge.f32.partialorder %v2382, %v2506
        %vm2575 = vcmp.ge.f32.partialorder %v2381, %v2510
        %vm2576 = vcmp.ge.f32.partialorder %v2382, %v2510
        %vm2577 = vcmp.ge.f32.partialorder %v2381, %v2514
        %vm2578 = vcmp.ge.f32.partialorder %v2382, %v2514
        %vm2579 = vcmp.ge.f32.partialorder %v2381, %v2518
        %vm2580 = vcmp.ge.f32.partialorder %v2382, %v2518
        %vm2581 = vcmp.ge.f32.partialorder %v2381, %v2522
        %vm2582 = vcmp.ge.f32.partialorder %v2382, %v2522
        %vm2583 = vcmp.ge.f32.partialorder %v2381, %v2526
        %vm2584 = vcmp.ge.f32.partialorder %v2382, %v2526
        %vm2585 = vcmp.ge.f32.partialorder %v2381, %v2530
        %vm2586 = vcmp.ge.f32.partialorder %v2382, %v2530
        %vm2587 = vcmp.ge.f32.partialorder %v2381, %v2534
        %vm2588 = vcmp.ge.f32.partialorder %v2382, %v2534
        %vm2589 = vcmp.ge.f32.partialorder %v2381, %v2538
        %vm2590 = vcmp.ge.f32.partialorder %v2382, %v2538
        %vm2591 = vcmp.ge.f32.partialorder %v2381, %v2542
        %vm2592 = vcmp.ge.f32.partialorder %v2382, %v2542
        %vm2593 = vcmp.ge.f32.partialorder %v2381, %v2546
        %vm2594 = vcmp.ge.f32.partialorder %v2382, %v2546
        %v2595 = vsel %vm2563, 1, 0
        %v2596 = vsel %vm2564, 1, 0
        %v2597 = vsel %vm2565, 1, 0
        %v2598 = vsel %vm2566, 1, 0
        %v2599 = vsel %vm2567, 1, 0
        %v2600 = vsel %vm2568, 1, 0
        %v2601 = vsel %vm2569, 1, 0
        %v2602 = vsel %vm2570, 1, 0
        %v2603 = vsel %vm2571, 1, 0
        %v2604 = vsel %vm2572, 1, 0
        %v2605 = vsel %vm2573, 1, 0
        %v2606 = vsel %vm2574, 1, 0
        %v2607 = vsel %vm2575, 1, 0
        %v2608 = vsel %vm2576, 1, 0
        %v2609 = vsel %vm2577, 1, 0
        %v2610 = vsel %vm2578, 1, 0
        %v2611 = vsel %vm2579, 1, 0
        %v2612 = vsel %vm2580, 1, 0
        %v2613 = vsel %vm2581, 1, 0
        %v2614 = vsel %vm2582, 1, 0
        %v2615 = vsel %vm2583, 1, 0
        %v2616 = vsel %vm2584, 1, 0
        %v2617 = vsel %vm2585, 1, 0
        %v2618 = vsel %vm2586, 1, 0
        %v2619 = vsel %vm2587, 1, 0
        %v2620 = vsel %vm2588, 1, 0
        %v2621 = vsel %vm2589, 1, 0
        %v2622 = vsel %vm2590, 1, 0
        %v2623 = vsel %vm2591, 1, 0
        %v2624 = vsel %vm2592, 1, 0
        %v2625 = vsel %vm2593, 1, 0
        %v2626 = vsel %vm2594, 1, 0
        %v2627 = vcvt.s32.f32 %v2595
        %v2628 = vcvt.s32.f32 %v2596
        %v2629 = vcvt.s32.f32 %v2597
        %v2630 = vcvt.s32.f32 %v2598
        %v2631 = vcvt.s32.f32 %v2599
        %v2632 = vcvt.s32.f32 %v2600
        %v2633 = vcvt.s32.f32 %v2601
        %v2634 = vcvt.s32.f32 %v2602
        %v2635 = vcvt.s32.f32 %v2603
        %v2636 = vcvt.s32.f32 %v2604
        %v2637 = vcvt.s32.f32 %v2605
        %v2638 = vcvt.s32.f32 %v2606
        %v2639 = vcvt.s32.f32 %v2607
        %v2640 = vcvt.s32.f32 %v2608
        %v2641 = vcvt.s32.f32 %v2609
        %v2642 = vcvt.s32.f32 %v2610
        %v2643 = vcvt.s32.f32 %v2611
        %v2644 = vcvt.s32.f32 %v2612
        %v2645 = vcvt.s32.f32 %v2613
        %v2646 = vcvt.s32.f32 %v2614
        %v2647 = vcvt.s32.f32 %v2615
        %v2648 = vcvt.s32.f32 %v2616
        %v2649 = vcvt.s32.f32 %v2617
        %v2650 = vcvt.s32.f32 %v2618
        %v2651 = vcvt.s32.f32 %v2619
        %v2652 = vcvt.s32.f32 %v2620
        %v2653 = vcvt.s32.f32 %v2621
        %v2654 = vcvt.s32.f32 %v2622
        %v2655 = vcvt.s32.f32 %v2623
        %v2656 = vcvt.s32.f32 %v2624
        %v2657 = vcvt.s32.f32 %v2625
        %v2658 = vcvt.s32.f32 %v2626
        %v2659 = vadd.f32 %v2627, %v2628
        %v2660 = vrot.slane %v2659, 4
        %v2661 = vadd.f32 %v2659, %v2660
        %v2662 = vrot.slane %v2661, 2
        %v2663 = vadd.f32 %v2661, %v2662
        %v2664 = vrot.slane %v2663, 1
        %v2665 = vadd.f32 %v2663, %v2664
        %v2666 = vadd.f32 %v2629, %v2630
        %v2667 = vrot.slane %v2666, 4
        %v2668 = vadd.f32 %v2666, %v2667
        %v2669 = vrot.slane %v2668, 2
        %v2670 = vadd.f32 %v2668, %v2669
        %v2671 = vrot.slane %v2670, 1
        %v2672 = vadd.f32 %v2670, %v2671
        %v2673 = vadd.f32 %v2631, %v2632
        %v2674 = vrot.slane %v2673, 4
        %v2675 = vadd.f32 %v2673, %v2674
        %v2676 = vrot.slane %v2675, 2
        %v2677 = vadd.f32 %v2675, %v2676
        %v2678 = vrot.slane %v2677, 1
        %v2679 = vadd.f32 %v2677, %v2678
        %v2680 = vadd.f32 %v2633, %v2634
        %v2681 = vrot.slane %v2680, 4
        %v2682 = vadd.f32 %v2680, %v2681
        %v2683 = vrot.slane %v2682, 2
        %v2684 = vadd.f32 %v2682, %v2683
        %v2685 = vrot.slane %v2684, 1
        %v2686 = vadd.f32 %v2684, %v2685
        %v2687 = vadd.f32 %v2635, %v2636
        %v2688 = vrot.slane %v2687, 4
        %v2689 = vadd.f32 %v2687, %v2688
        %v2690 = vrot.slane %v2689, 2
        %v2691 = vadd.f32 %v2689, %v2690
        %v2692 = vrot.slane %v2691, 1
        %v2693 = vadd.f32 %v2691, %v2692
        %v2694 = vadd.f32 %v2637, %v2638
        %v2695 = vrot.slane %v2694, 4
        %v2696 = vadd.f32 %v2694, %v2695
        %v2697 = vrot.slane %v2696, 2
        %v2698 = vadd.f32 %v2696, %v2697
        %v2699 = vrot.slane %v2698, 1
        %v2700 = vadd.f32 %v2698, %v2699
        %v2701 = vadd.f32 %v2639, %v2640
        %v2702 = vrot.slane %v2701, 4
        %v2703 = vadd.f32 %v2701, %v2702
        %v2704 = vrot.slane %v2703, 2
        %v2705 = vadd.f32 %v2703, %v2704
        %v2706 = vrot.slane %v2705, 1
        %v2707 = vadd.f32 %v2705, %v2706
        %v2708 = vadd.f32 %v2641, %v2642
        %v2709 = vrot.slane %v2708, 4
        %v2710 = vadd.f32 %v2708, %v2709
        %v2711 = vrot.slane %v2710, 2
        %v2712 = vadd.f32 %v2710, %v2711
        %v2713 = vrot.slane %v2712, 1
        %v2714 = vadd.f32 %v2712, %v2713
        %v2715 = vadd.f32 %v2643, %v2644
        %v2716 = vrot.slane %v2715, 4
        %v2717 = vadd.f32 %v2715, %v2716
        %v2718 = vrot.slane %v2717, 2
        %v2719 = vadd.f32 %v2717, %v2718
        %v2720 = vrot.slane %v2719, 1
        %v2721 = vadd.f32 %v2719, %v2720
        %v2722 = vadd.f32 %v2645, %v2646
        %v2723 = vrot.slane %v2722, 4
        %v2724 = vadd.f32 %v2722, %v2723
        %v2725 = vrot.slane %v2724, 2
        %v2726 = vadd.f32 %v2724, %v2725
        %v2727 = vrot.slane %v2726, 1
        %v2728 = vadd.f32 %v2726, %v2727
        %v2729 = vadd.f32 %v2647, %v2648
        %v2730 = vrot.slane %v2729, 4
        %v2731 = vadd.f32 %v2729, %v2730
        %v2732 = vrot.slane %v2731, 2
        %v2733 = vadd.f32 %v2731, %v2732
        %v2734 = vrot.slane %v2733, 1
        %v2735 = vadd.f32 %v2733, %v2734
        %v2736 = vadd.f32 %v2649, %v2650
        %v2737 = vrot.slane %v2736, 4
        %v2738 = vadd.f32 %v2736, %v2737
        %v2739 = vrot.slane %v2738, 2
        %v2740 = vadd.f32 %v2738, %v2739
        %v2741 = vrot.slane %v2740, 1
        %v2742 = vadd.f32 %v2740, %v2741
        %v2743 = vadd.f32 %v2651, %v2652
        %v2744 = vrot.slane %v2743, 4
        %v2745 = vadd.f32 %v2743, %v2744
        %v2746 = vrot.slane %v2745, 2
        %v2747 = vadd.f32 %v2745, %v2746
        %v2748 = vrot.slane %v2747, 1
        %v2749 = vadd.f32 %v2747, %v2748
        %v2750 = vadd.f32 %v2653, %v2654
        %v2751 = vrot.slane %v2750, 4
        %v2752 = vadd.f32 %v2750, %v2751
        %v2753 = vrot.slane %v2752, 2
        %v2754 = vadd.f32 %v2752, %v2753
        %v2755 = vrot.slane %v2754, 1
        %v2756 = vadd.f32 %v2754, %v2755
        %v2757 = vadd.f32 %v2655, %v2656
        %v2758 = vrot.slane %v2757, 4
        %v2759 = vadd.f32 %v2757, %v2758
        %v2760 = vrot.slane %v2759, 2
        %v2761 = vadd.f32 %v2759, %v2760
        %v2762 = vrot.slane %v2761, 1
        %v2763 = vadd.f32 %v2761, %v2762
        %v2764 = vadd.f32 %v2657, %v2658
        %v2765 = vrot.slane %v2764, 4
        %v2766 = vadd.f32 %v2764, %v2765
        %v2767 = vrot.slane %v2766, 2
        %v2768 = vadd.f32 %v2766, %v2767
        %v2769 = vrot.slane %v2768, 1
        %v2770 = vadd.f32 %v2768, %v2769
        %v2771 = vmul.f32 %v2627, %v2381
        %v2772 = vmul.f32 %v2628, %v2382
        %v2773 = vmul.f32 %v2629, %v2381
        %v2774 = vmul.f32 %v2630, %v2382
        %v2775 = vmul.f32 %v2631, %v2381
        %v2776 = vmul.f32 %v2632, %v2382
        %v2777 = vmul.f32 %v2633, %v2381
        %v2778 = vmul.f32 %v2634, %v2382
        %v2779 = vmul.f32 %v2635, %v2381
        %v2780 = vmul.f32 %v2636, %v2382
        %v2781 = vmul.f32 %v2637, %v2381
        %v2782 = vmul.f32 %v2638, %v2382
        %v2783 = vmul.f32 %v2639, %v2381
        %v2784 = vmul.f32 %v2640, %v2382
        %v2785 = vmul.f32 %v2641, %v2381
        %v2786 = vmul.f32 %v2642, %v2382
        %v2787 = vmul.f32 %v2643, %v2381
        %v2788 = vmul.f32 %v2644, %v2382
        %v2789 = vmul.f32 %v2645, %v2381
        %v2790 = vmul.f32 %v2646, %v2382
        %v2791 = vmul.f32 %v2647, %v2381
        %v2792 = vmul.f32 %v2648, %v2382
        %v2793 = vmul.f32 %v2649, %v2381
        %v2794 = vmul.f32 %v2650, %v2382
        %v2795 = vmul.f32 %v2651, %v2381
        %v2796 = vmul.f32 %v2652, %v2382
        %v2797 = vmul.f32 %v2653, %v2381
        %v2798 = vmul.f32 %v2654, %v2382
        %v2799 = vmul.f32 %v2655, %v2381
        %v2800 = vmul.f32 %v2656, %v2382
        %v2801 = vmul.f32 %v2657, %v2381
        %v2802 = vmul.f32 %v2658, %v2382
        %v2803 = vadd.f32 %v2771, %v2772
        %v2804 = vrot.slane %v2803, 4
        %v2805 = vadd.f32 %v2803, %v2804
        %v2806 = vrot.slane %v2805, 2
        %v2807 = vadd.f32 %v2805, %v2806
        %v2808 = vrot.slane %v2807, 1
        %v2809 = vadd.f32 %v2807, %v2808
        %v2810 = vadd.f32 %v2773, %v2774
        %v2811 = vrot.slane %v2810, 4
        %v2812 = vadd.f32 %v2810, %v2811
        %v2813 = vrot.slane %v2812, 2
        %v2814 = vadd.f32 %v2812, %v2813
        %v2815 = vrot.slane %v2814, 1
        %v2816 = vadd.f32 %v2814, %v2815
        %v2817 = vadd.f32 %v2775, %v2776
        %v2818 = vrot.slane %v2817, 4
        %v2819 = vadd.f32 %v2817, %v2818
        %v2820 = vrot.slane %v2819, 2
        %v2821 = vadd.f32 %v2819, %v2820
        %v2822 = vrot.slane %v2821, 1
        %v2823 = vadd.f32 %v2821, %v2822
        %v2824 = vadd.f32 %v2777, %v2778
        %v2825 = vrot.slane %v2824, 4
        %v2826 = vadd.f32 %v2824, %v2825
        %v2827 = vrot.slane %v2826, 2
        %v2828 = vadd.f32 %v2826, %v2827
        %v2829 = vrot.slane %v2828, 1
        %v2830 = vadd.f32 %v2828, %v2829
        %v2831 = vadd.f32 %v2779, %v2780
        %v2832 = vrot.slane %v2831, 4
        %v2833 = vadd.f32 %v2831, %v2832
        %v2834 = vrot.slane %v2833, 2
        %v2835 = vadd.f32 %v2833, %v2834
        %v2836 = vrot.slane %v2835, 1
        %v2837 = vadd.f32 %v2835, %v2836
        %v2838 = vadd.f32 %v2781, %v2782
        %v2839 = vrot.slane %v2838, 4
        %v2840 = vadd.f32 %v2838, %v2839
        %v2841 = vrot.slane %v2840, 2
        %v2842 = vadd.f32 %v2840, %v2841
        %v2843 = vrot.slane %v2842, 1
        %v2844 = vadd.f32 %v2842, %v2843
        %v2845 = vadd.f32 %v2783, %v2784
        %v2846 = vrot.slane %v2845, 4
        %v2847 = vadd.f32 %v2845, %v2846
        %v2848 = vrot.slane %v2847, 2
        %v2849 = vadd.f32 %v2847, %v2848
        %v2850 = vrot.slane %v2849, 1
        %v2851 = vadd.f32 %v2849, %v2850
        %v2852 = vadd.f32 %v2785, %v2786
        %v2853 = vrot.slane %v2852, 4
        %v2854 = vadd.f32 %v2852, %v2853
        %v2855 = vrot.slane %v2854, 2
        %v2856 = vadd.f32 %v2854, %v2855
        %v2857 = vrot.slane %v2856, 1
        %v2858 = vadd.f32 %v2856, %v2857
        %v2859 = vadd.f32 %v2787, %v2788
        %v2860 = vrot.slane %v2859, 4
        %v2861 = vadd.f32 %v2859, %v2860
        %v2862 = vrot.slane %v2861, 2
        %v2863 = vadd.f32 %v2861, %v2862
        %v2864 = vrot.slane %v2863, 1
        %v2865 = vadd.f32 %v2863, %v2864
        %v2866 = vadd.f32 %v2789, %v2790
        %v2867 = vrot.slane %v2866, 4
        %v2868 = vadd.f32 %v2866, %v2867
        %v2869 = vrot.slane %v2868, 2
        %v2870 = vadd.f32 %v2868, %v2869
        %v2871 = vrot.slane %v2870, 1
        %v2872 = vadd.f32 %v2870, %v2871
        %v2873 = vadd.f32 %v2791, %v2792
        %v2874 = vrot.slane %v2873, 4
        %v2875 = vadd.f32 %v2873, %v2874
        %v2876 = vrot.slane %v2875, 2
        %v2877 = vadd.f32 %v2875, %v2876
        %v2878 = vrot.slane %v2877, 1
        %v2879 = vadd.f32 %v2877, %v2878
        %v2880 = vadd.f32 %v2793, %v2794
        %v2881 = vrot.slane %v2880, 4
        %v2882 = vadd.f32 %v2880, %v2881
        %v2883 = vrot.slane %v2882, 2
        %v2884 = vadd.f32 %v2882, %v2883
        %v2885 = vrot.slane %v2884, 1
        %v2886 = vadd.f32 %v2884, %v2885
        %v2887 = vadd.f32 %v2795, %v2796
        %v2888 = vrot.slane %v2887, 4
        %v2889 = vadd.f32 %v2887, %v2888
        %v2890 = vrot.slane %v2889, 2
        %v2891 = vadd.f32 %v2889, %v2890
        %v2892 = vrot.slane %v2891, 1
        %v2893 = vadd.f32 %v2891, %v2892
        %v2894 = vadd.f32 %v2797, %v2798
        %v2895 = vrot.slane %v2894, 4
        %v2896 = vadd.f32 %v2894, %v2895
        %v2897 = vrot.slane %v2896, 2
        %v2898 = vadd.f32 %v2896, %v2897
        %v2899 = vrot.slane %v2898, 1
        %v2900 = vadd.f32 %v2898, %v2899
        %v2901 = vadd.f32 %v2799, %v2800
        %v2902 = vrot.slane %v2901, 4
        %v2903 = vadd.f32 %v2901, %v2902
        %v2904 = vrot.slane %v2903, 2
        %v2905 = vadd.f32 %v2903, %v2904
        %v2906 = vrot.slane %v2905, 1
        %v2907 = vadd.f32 %v2905, %v2906
        %v2908 = vadd.f32 %v2801, %v2802
        %v2909 = vrot.slane %v2908, 4
        %v2910 = vadd.f32 %v2908, %v2909
        %v2911 = vrot.slane %v2910, 2
        %v2912 = vadd.f32 %v2910, %v2911
        %v2913 = vrot.slane %v2912, 1
        %v2914 = vadd.f32 %v2912, %v2913
        %v2915 = vrot.slane %v2381, 1
        %v2916 = vrot.slane %v2381, 2
        %v2917 = vrot.slane %v2381, 3
        %v2918 = vrot.slane %v2381, 4
        %v2919 = vrot.slane %v2381, 5
        %v2920 = vrot.slane %v2381, 6
        %v2921 = vrot.slane %v2381, 7
        %v2922 = vrot.slane %v2382, 1
        %v2923 = vrot.slane %v2382, 2
        %v2924 = vrot.slane %v2382, 3
        %v2925 = vrot.slane %v2382, 4
        %v2926 = vrot.slane %v2382, 5
        %v2927 = vrot.slane %v2382, 6
        %v2928 = vrot.slane %v2382, 7
        %v2945 = vmul.f32 %v2665, %v2381
        %v2946 = vmul.f32 %v2672, %v2915
        %v2947 = vmul.f32 %v2679, %v2916
        %v2948 = vmul.f32 %v2686, %v2917
        %v2949 = vmul.f32 %v2693, %v2918
        %v2950 = vmul.f32 %v2700, %v2919
        %v2951 = vmul.f32 %v2707, %v2920
        %v2952 = vmul.f32 %v2714, %v2921
        %v2953 = vmul.f32 %v2721, %v2382
        %v2954 = vmul.f32 %v2728, %v2922
        %v2955 = vmul.f32 %v2735, %v2923
        %v2956 = vmul.f32 %v2742, %v2924
        %v2957 = vmul.f32 %v2749, %v2925
        %v2958 = vmul.f32 %v2756, %v2926
        %v2959 = vmul.f32 %v2763, %v2927
        %v2960 = vmul.f32 %v2770, %v2928
        %v2961 = vadd.f32 %v2945, 1.0
        %v2962 = vadd.f32 %v2946, 1.0
        %v2963 = vadd.f32 %v2947, 1.0
        %v2964 = vadd.f32 %v2948, 1.0
        %v2965 = vadd.f32 %v2949, 1.0
        %v2966 = vadd.f32 %v2950, 1.0
        %v2967 = vadd.f32 %v2951, 1.0
        %v2968 = vadd.f32 %v2952, 1.0
        %v2969 = vadd.f32 %v2953, 1.0
        %v2970 = vadd.f32 %v2954, 1.0
        %v2971 = vadd.f32 %v2955, 1.0
        %v2972 = vadd.f32 %v2956, 1.0
        %v2973 = vadd.f32 %v2957, 1.0
        %v2974 = vadd.f32 %v2958, 1.0
        %v2975 = vadd.f32 %v2959, 1.0
        %v2976 = vadd.f32 %v2960, 1.0
        %vm2977 = vcmp.gt.f32.partialorder %v2961, %v2809
        %vm2978 = vcmp.gt.f32.partialorder %v2962, %v2816
        %vm2979 = vcmp.gt.f32.partialorder %v2963, %v2823
        %vm2980 = vcmp.gt.f32.partialorder %v2964, %v2830
        %vm2981 = vcmp.gt.f32.partialorder %v2965, %v2837
        %vm2982 = vcmp.gt.f32.partialorder %v2966, %v2844
        %vm2983 = vcmp.gt.f32.partialorder %v2967, %v2851
        %vm2984 = vcmp.gt.f32.partialorder %v2968, %v2858
        %vm2985 = vcmp.gt.f32.partialorder %v2969, %v2865
        %vm2986 = vcmp.gt.f32.partialorder %v2970, %v2872
        %vm2987 = vcmp.gt.f32.partialorder %v2971, %v2879
        %vm2988 = vcmp.gt.f32.partialorder %v2972, %v2886
        %vm2989 = vcmp.gt.f32.partialorder %v2973, %v2893
        %vm2990 = vcmp.gt.f32.partialorder %v2974, %v2900
        %vm2991 = vcmp.gt.f32.partialorder %v2975, %v2907
        %vm2992 = vcmp.gt.f32.partialorder %v2976, %v2914
        %v2993 = vsel %vm2977, 1, 0
        %v2994 = vsel %vm2978, 1, 0
        %v2995 = vsel %vm2979, 1, 0
        %v2996 = vsel %vm2980, 1, 0
        %v2997 = vsel %vm2981, 1, 0
        %v2998 = vsel %vm2982, 1, 0
        %v2999 = vsel %vm2983, 1, 0
        %v3000 = vsel %vm2984, 1, 0
        %v3001 = vsel %vm2985, 1, 0
        %v3002 = vsel %vm2986, 1, 0
        %v3003 = vsel %vm2987, 1, 0
        %v3004 = vsel %vm2988, 1, 0
        %v3005 = vsel %vm2989, 1, 0
        %v3006 = vsel %vm2990, 1, 0
        %v3007 = vsel %vm2991, 1, 0
        %v3008 = vsel %vm2992, 1, 0
        %v3009 = vcvt.s32.f32 %v2993
        %v3010 = vcvt.s32.f32 %v2994
        %v3011 = vcvt.s32.f32 %v2995
        %v3012 = vcvt.s32.f32 %v2996
        %v3013 = vcvt.s32.f32 %v2997
        %v3014 = vcvt.s32.f32 %v2998
        %v3015 = vcvt.s32.f32 %v2999
        %v3016 = vcvt.s32.f32 %v3000
        %v3017 = vcvt.s32.f32 %v3001
        %v3018 = vcvt.s32.f32 %v3002
        %v3019 = vcvt.s32.f32 %v3003
        %v3020 = vcvt.s32.f32 %v3004
        %v3021 = vcvt.s32.f32 %v3005
        %v3022 = vcvt.s32.f32 %v3006
        %v3023 = vcvt.s32.f32 %v3007
        %v3024 = vcvt.s32.f32 %v3008
        %v3041 = vrot.slane %v3010, 7
        %v3042 = vsel %vm1313, %v3041, %v3009
        %v3043 = vrot.slane %v3011, 6
        %v3044 = vsel %vm1316, %v3043, %v3042
        %v3045 = vrot.slane %v3012, 5
        %v3046 = vsel %vm1319, %v3045, %v3044
        %v3047 = vrot.slane %v3013, 4
        %v3048 = vsel %vm1322, %v3047, %v3046
        %v3049 = vrot.slane %v3014, 3
        %v3050 = vsel %vm1325, %v3049, %v3048
        %v3051 = vrot.slane %v3015, 2
        %v3052 = vsel %vm1328, %v3051, %v3050
        %v3053 = vrot.slane %v3016, 1
        %v3054 = vsel %vm1331, %v3053, %v3052
        %v3055 = vrot.slane %v3018, 7
        %v3056 = vsel %vm1313, %v3055, %v3017
        %v3057 = vrot.slane %v3019, 6
        %v3058 = vsel %vm1316, %v3057, %v3056
        %v3059 = vrot.slane %v3020, 5
        %v3060 = vsel %vm1319, %v3059, %v3058
        %v3061 = vrot.slane %v3021, 4
        %v3062 = vsel %vm1322, %v3061, %v3060
        %v3063 = vrot.slane %v3022, 3
        %v3064 = vsel %vm1325, %v3063, %v3062
        %v3065 = vrot.slane %v3023, 2
        %v3066 = vsel %vm1328, %v3065, %v3064
        %v3067 = vrot.slane %v3024, 1
        %v3068 = vsel %vm1331, %v3067, %v3066
        %v3071 = vadd.f32 %v3054, %v3068
        %v3072 = vrot.slane %v3071, 4
        %v3073 = vadd.f32 %v3071, %v3072
        %v3074 = vrot.slane %v3073, 2
        %v3075 = vadd.f32 %v3073, %v3074
        %v3076 = vrot.slane %v3075, 1
        %v3077 = vadd.f32 %v3075, %v3076
        %v3078 = vmul.f32 %v3009, %v2381
        %v3079 = vmul.f32 %v3010, %v2915
        %v3080 = vmul.f32 %v3011, %v2916
        %v3081 = vmul.f32 %v3012, %v2917
        %v3082 = vmul.f32 %v3013, %v2918
        %v3083 = vmul.f32 %v3014, %v2919
        %v3084 = vmul.f32 %v3015, %v2920
        %v3085 = vmul.f32 %v3016, %v2921
        %v3086 = vmul.f32 %v3017, %v2382
        %v3087 = vmul.f32 %v3018, %v2922
        %v3088 = vmul.f32 %v3019, %v2923
        %v3089 = vmul.f32 %v3020, %v2924
        %v3090 = vmul.f32 %v3021, %v2925
        %v3091 = vmul.f32 %v3022, %v2926
        %v3092 = vmul.f32 %v3023, %v2927
        %v3093 = vmul.f32 %v3024, %v2928
        %v3110 = vrot.slane %v3079, 7
        %v3111 = vsel %vm1313, %v3110, %v3078
        %v3112 = vrot.slane %v3080, 6
        %v3113 = vsel %vm1316, %v3112, %v3111
        %v3114 = vrot.slane %v3081, 5
        %v3115 = vsel %vm1319, %v3114, %v3113
        %v3116 = vrot.slane %v3082, 4
        %v3117 = vsel %vm1322, %v3116, %v3115
        %v3118 = vrot.slane %v3083, 3
        %v3119 = vsel %vm1325, %v3118, %v3117
        %v3120 = vrot.slane %v3084, 2
        %v3121 = vsel %vm1328, %v3120, %v3119
        %v3122 = vrot.slane %v3085, 1
        %v3123 = vsel %vm1331, %v3122, %v3121
        %v3124 = vrot.slane %v3087, 7
        %v3125 = vsel %vm1313, %v3124, %v3086
        %v3126 = vrot.slane %v3088, 6
        %v3127 = vsel %vm1316, %v3126, %v3125
        %v3128 = vrot.slane %v3089, 5
        %v3129 = vsel %vm1319, %v3128, %v3127
        %v3130 = vrot.slane %v3090, 4
        %v3131 = vsel %vm1322, %v3130, %v3129
        %v3132 = vrot.slane %v3091, 3
        %v3133 = vsel %vm1325, %v3132, %v3131
        %v3134 = vrot.slane %v3092, 2
        %v3135 = vsel %vm1328, %v3134, %v3133
        %v3136 = vrot.slane %v3093, 1
        %v3137 = vsel %vm1331, %v3136, %v3135
        %v3140 = vadd.f32 %v3123, %v3137
        %v3141 = vrot.slane %v3140, 4
        %v3142 = vadd.f32 %v3140, %v3141
        %v3143 = vrot.slane %v3142, 2
        %v3144 = vadd.f32 %v3142, %v3143
        %v3145 = vrot.slane %v3144, 1
        %v3146 = vadd.f32 %v3144, %v3145
        %v3147 = vsub.f32 %v3146, 1.0
        %v3148 = vrcp.pop %v3077
        %v3149 = vmul.f32 %v3147, %v3148
        %v3150 = vlaneseq
        %v3151 = vshrl.u32 %v3150, 7
        %v3152 = vsub.s32 0, %v3151
        %v3153 = vrot.slane %v3149, %v3152
        %v3154 = vsub.f32 %v2381, %v3153
        %v3155 = vsub.f32 %v2382, %v3153
        %v3156 = vmax.f32 %v3154, 0.0
        %v3157 = vmax.f32 %v3155, 0.0
        %v3158 = vsub.f32 0.0, %v3156
        %v3159 = vsub.f32 0.0, %v3157
        %v3160 = vadd.f32 %v3156, 1e-10
        %v3161 = vadd.f32 %v3157, 1e-10
        %v3162 = vlog2.pop %v3160
        %v3163 = vmul.f32 %v3162, 0.6931472
        %v3164 = vlog2.pop %v3161
        %v3165 = vmul.f32 %v3164, 0.6931472
        %v3166 = vmul.f32 %v3158, %v3163
        %v3167 = vmul.f32 %v3159, %v3165
        %v3168 = vadd.f32 %v3166, %v3167
        %v3169 = vrot.slane %v3168, 4
        %v3170 = vadd.f32 %v3168, %v3169
        %v3171 = vrot.slane %v3170, 2
        %v3172 = vadd.f32 %v3170, %v3171
        %v3173 = vrot.slane %v3172, 1
        %v3174 = vadd.f32 %v3172, %v3173
        %3175 = vadd.xlane.f32.xlu0 %v3174
        %v3176 = vpop.xlane.xlu0 %3175
        %v3177 = vadd.f32 %v1455, %v3176
        %v3178 = vmul.f32 %v2300, %v3156
        %v3179 = vmul.f32 %v2301, %v3157
        %v3180 = vpack.c.bf16 %v3179, %v3178
        %3181 = vmatprep.subr.bf16.mxu0 0
        %3182 = vmatpush1.bf16.msra.mxu0 %v3180
        %3183 = vmatprep.subr.bf16.mxu0 0
        %3184 = vmatpush1.bf16.msra.mxu0 0
        %3185 = vmatprep.subr.bf16.mxu0 0
        %3186 = vmatpush1.bf16.msra.mxu0 0
        %3187 = vmatprep.subr.bf16.mxu0 0
        %3188 = vmatpush1.bf16.msra.mxu0 0
        %3189 = vmatprep.subr.bf16.mxu0 0
        %3190 = vmatpush1.bf16.msra.mxu0 0
        %3191 = vmatprep.subr.bf16.mxu0 0
        %3192 = vmatpush1.bf16.msra.mxu0 0
        %3193 = vmatprep.subr.bf16.mxu0 0
        %3194 = vmatpush1.bf16.msra.mxu0 0
        %3195 = vmatprep.subr.bf16.mxu0 0
        %3196 = vmatpush1.bf16.msra.mxu0 0
        %3197 = vmatprep.subr.bf16.mxu0 0
        %3198 = vmatpush1.bf16.msra.mxu0 0
        %3199 = vmatprep.subr.bf16.mxu0 0
        %3200 = vmatpush1.bf16.msra.mxu0 0
        %3201 = vmatprep.subr.bf16.mxu0 0
        %3202 = vmatpush1.bf16.msra.mxu0 0
        %3203 = vmatprep.subr.bf16.mxu0 0
        %3204 = vmatpush1.bf16.msra.mxu0 0
        %3205 = vmatprep.subr.bf16.mxu0 0
        %3206 = vmatpush1.bf16.msra.mxu0 0
        %3207 = vmatprep.subr.bf16.mxu0 0
        %3208 = vmatpush1.bf16.msra.mxu0 0
        %3209 = vmatprep.subr.bf16.mxu0 0
        %3210 = vmatpush1.bf16.msra.mxu0 0
        %3211 = vmatprep.subr.bf16.mxu0 0
        %3212 = vmatpush1.bf16.msra.mxu0 0
        %3213 = vmatprep.mubr.bf16.mxu0 0
        %3214 = vmatmul.mubr.bf16.gmra.mrb[0].mxu0 %v1466
        %v3215 = vpop.f32.mrb[0].mxu0
        %v3216 = vadd.f32 0.0, %v3215
        %v3217 = vpop.f32.mrb[0].mxu0
        %v3218 = vpop.f32.mrb[0].mxu0
        %v3219 = vadd.f32 0.0, %v3218
        %v3220 = vpop.f32.mrb[0].mxu0
        %3221 = vdwg.mxu0
        %3222 = vadd.xlane.f32.xlu0 %v3216
        %v3223 = vpop.xlane.xlu0 %3222
        %3224 = vadd.xlane.f32.xlu0 %v3219
        %v3225 = vpop.xlane.xlu0 %3224
        %v3226 = vmul.f32 %v3223, %v600
        %v3227 = vmul.f32 %v3225, %v600
        %v3228 = vsub.f32 %v3216, %v3226
        %v3229 = vsub.f32 %v3219, %v3227
        %v3230 = vmul.f32 %v3228, %v3228
        %v3231 = vmul.f32 %v3229, %v3229
        %3232 = vadd.xlane.f32.xlu0 %v3230
        %v3233 = vpop.xlane.xlu0 %3232
        %3234 = vadd.xlane.f32.xlu0 %v3231
        %v3235 = vpop.xlane.xlu0 %3234
        %v3236 = vmul.f32 %v3233, %v600
        %v3237 = vmul.f32 %v3235, %v600
        %v3238 = vadd.f32 %v3236, 1e-05
        %v3239 = vadd.f32 %v3237, 1e-05
        %v3240 = vrsqrt.pop %v3238
        %v3241 = vrsqrt.pop %v3239
        %v3242 = vmul.f32 %v3228, %v3240
        %v3243 = vmul.f32 %v3229, %v3241
        %v3244 = vmul.f32 %v3242, %v1534
        %v3245 = vmul.f32 %v3243, %v1539
        %v3246 = vadd.f32 %v3244, %v1546
        %v3247 = vadd.f32 %v3245, %v1551
        %3248 = vmatprep.subr.bf16.mxu0 0
        %3249 = vmatpush1.bf16.msra.mxu0 %v3180
        %3250 = vmatprep.subr.bf16.mxu0 0
        %3251 = vmatpush1.bf16.msra.mxu0 0
        %3252 = vmatprep.subr.bf16.mxu0 0
        %3253 = vmatpush1.bf16.msra.mxu0 0
        %3254 = vmatprep.subr.bf16.mxu0 0
        %3255 = vmatpush1.bf16.msra.mxu0 0
        %3256 = vmatprep.subr.bf16.mxu0 0
        %3257 = vmatpush1.bf16.msra.mxu0 0
        %3258 = vmatprep.subr.bf16.mxu0 0
        %3259 = vmatpush1.bf16.msra.mxu0 0
        %3260 = vmatprep.subr.bf16.mxu0 0
        %3261 = vmatpush1.bf16.msra.mxu0 0
        %3262 = vmatprep.subr.bf16.mxu0 0
        %3263 = vmatpush1.bf16.msra.mxu0 0
        %3264 = vmatprep.subr.bf16.mxu0 0
        %3265 = vmatpush1.bf16.msra.mxu0 0
        %3266 = vmatprep.subr.bf16.mxu0 0
        %3267 = vmatpush1.bf16.msra.mxu0 0
        %3268 = vmatprep.subr.bf16.mxu0 0
        %3269 = vmatpush1.bf16.msra.mxu0 0
        %3270 = vmatprep.subr.bf16.mxu0 0
        %3271 = vmatpush1.bf16.msra.mxu0 0
        %3272 = vmatprep.subr.bf16.mxu0 0
        %3273 = vmatpush1.bf16.msra.mxu0 0
        %3274 = vmatprep.subr.bf16.mxu0 0
        %3275 = vmatpush1.bf16.msra.mxu0 0
        %3276 = vmatprep.subr.bf16.mxu0 0
        %3277 = vmatpush1.bf16.msra.mxu0 0
        %3278 = vmatprep.subr.bf16.mxu0 0
        %3279 = vmatpush1.bf16.msra.mxu0 0
        %3280 = vmatprep.mubr.bf16.mxu0 0
        %3281 = vmatmul.mubr.bf16.gmra.mrb[0].mxu0 %v1561
        %v3282 = vpop.f32.mrb[0].mxu0
        %v3283 = vadd.f32 0.0, %v3282
        %v3284 = vpop.f32.mrb[0].mxu0
        %v3285 = vpop.f32.mrb[0].mxu0
        %v3286 = vadd.f32 0.0, %v3285
        %v3287 = vpop.f32.mrb[0].mxu0
        %3288 = vdwg.mxu0
        %3289 = vadd.xlane.f32.xlu0 %v3283
        %v3290 = vpop.xlane.xlu0 %3289
        %3291 = vadd.xlane.f32.xlu0 %v3286
        %v3292 = vpop.xlane.xlu0 %3291
        %v3293 = vmul.f32 %v3290, %v600
        %v3294 = vmul.f32 %v3292, %v600
        %v3295 = vsub.f32 %v3283, %v3293
        %v3296 = vsub.f32 %v3286, %v3294
        %v3297 = vmul.f32 %v3295, %v3295
        %v3298 = vmul.f32 %v3296, %v3296
        %3299 = vadd.xlane.f32.xlu0 %v3297
        %v3300 = vpop.xlane.xlu0 %3299
        %3301 = vadd.xlane.f32.xlu0 %v3298
        %v3302 = vpop.xlane.xlu0 %3301
        %v3303 = vmul.f32 %v3300, %v600
        %v3304 = vmul.f32 %v3302, %v600
        %v3305 = vadd.f32 %v3303, 1e-05
        %v3306 = vadd.f32 %v3304, 1e-05
        %v3307 = vrsqrt.pop %v3305
        %v3308 = vrsqrt.pop %v3306
        %v3309 = vmul.f32 %v3295, %v3307
        %v3310 = vmul.f32 %v3296, %v3308
        %v3311 = vmul.f32 %v3309, %v1629
        %v3312 = vmul.f32 %v3310, %v1634
        %v3313 = vadd.f32 %v3311, %v1641
        %v3314 = vadd.f32 %v3312, %v1646
        %v3315 = vxor.u32 %v3313, 2147483648
        %v3316 = vxor.u32 %v3314, 2147483648
        %v3317 = vmul.f32 %v3315, 1.442695
        %v3318 = vpow.pop %v3317
        %v3319 = vmul.f32 %v3316, 1.442695
        %v3320 = vpow.pop %v3319
        %v3321 = vadd.f32 %v3318, 1.0
        %v3322 = vadd.f32 %v3320, 1.0
        %v3323 = vrcp.pop %v3321
        %v3324 = vmul.f32 1.0, %v3323
        %v3325 = vrcp.pop %v3322
        %v3326 = vmul.f32 1.0, %v3325
        %v3327 = vmul.f32 %v3246, %v3324
        %v3328 = vmul.f32 %v3247, %v3326
        %v3329 = vpack.c.bf16 %v3328, %v3327
        %3330 = vmatprep.subr.bf16.mxu0 0
        %3331 = vmatpush1.bf16.msra.mxu0 %v3329
        %3332 = vmatprep.subr.bf16.mxu0 0
        %3333 = vmatpush1.bf16.msra.mxu0 0
        %3334 = vmatprep.subr.bf16.mxu0 0
        %3335 = vmatpush1.bf16.msra.mxu0 0
        %3336 = vmatprep.subr.bf16.mxu0 0
        %3337 = vmatpush1.bf16.msra.mxu0 0
        %3338 = vmatprep.subr.bf16.mxu0 0
        %3339 = vmatpush1.bf16.msra.mxu0 0
        %3340 = vmatprep.subr.bf16.mxu0 0
        %3341 = vmatpush1.bf16.msra.mxu0 0
        %3342 = vmatprep.subr.bf16.mxu0 0
        %3343 = vmatpush1.bf16.msra.mxu0 0
        %3344 = vmatprep.subr.bf16.mxu0 0
        %3345 = vmatpush1.bf16.msra.mxu0 0
        %3346 = vmatprep.subr.bf16.mxu0 0
        %3347 = vmatpush1.bf16.msra.mxu0 0
        %3348 = vmatprep.subr.bf16.mxu0 0
        %3349 = vmatpush1.bf16.msra.mxu0 0
        %3350 = vmatprep.subr.bf16.mxu0 0
        %3351 = vmatpush1.bf16.msra.mxu0 0
        %3352 = vmatprep.subr.bf16.mxu0 0
        %3353 = vmatpush1.bf16.msra.mxu0 0
        %3354 = vmatprep.subr.bf16.mxu0 0
        %3355 = vmatpush1.bf16.msra.mxu0 0
        %3356 = vmatprep.subr.bf16.mxu0 0
        %3357 = vmatpush1.bf16.msra.mxu0 0
        %3358 = vmatprep.subr.bf16.mxu0 0
        %3359 = vmatpush1.bf16.msra.mxu0 0
        %3360 = vmatprep.subr.bf16.mxu0 0
        %3361 = vmatpush1.bf16.msra.mxu0 0
        %3362 = vmatprep.mubr.bf16.mxu0 0
        %3363 = vmatmul.mubr.bf16.gmra.mrb[0].mxu0 %v1671
        %v3364 = vpop.f32.mrb[0].mxu0
        %v3365 = vadd.f32 0.0, %v3364
        %v3366 = vpop.f32.mrb[0].mxu0
        %v3367 = vpop.f32.mrb[0].mxu0
        %v3368 = vadd.f32 0.0, %v3367
        %v3369 = vpop.f32.mrb[0].mxu0
        %3370 = vdwg.mxu0
        %3371 = vadd.xlane.f32.xlu0 %v3365
        %v3372 = vpop.xlane.xlu0 %3371
        %3373 = vadd.xlane.f32.xlu0 %v3368
        %v3374 = vpop.xlane.xlu0 %3373
        %v3375 = vmul.f32 %v3372, %v600
        %v3376 = vmul.f32 %v3374, %v600
        %v3377 = vsub.f32 %v3365, %v3375
        %v3378 = vsub.f32 %v3368, %v3376
        %v3379 = vmul.f32 %v3377, %v3377
        %v3380 = vmul.f32 %v3378, %v3378
        %3381 = vadd.xlane.f32.xlu0 %v3379
        %v3382 = vpop.xlane.xlu0 %3381
        %3383 = vadd.xlane.f32.xlu0 %v3380
        %v3384 = vpop.xlane.xlu0 %3383
        %v3385 = vmul.f32 %v3382, %v600
        %v3386 = vmul.f32 %v3384, %v600
        %v3387 = vadd.f32 %v3385, 1e-05
        %v3388 = vadd.f32 %v3386, 1e-05
        %v3389 = vrsqrt.pop %v3387
        %v3390 = vrsqrt.pop %v3388
        %v3391 = vmul.f32 %v3377, %v3389
        %v3392 = vmul.f32 %v3378, %v3390
        %v3393 = vmul.f32 %v3391, %v1739
        %v3394 = vmul.f32 %v3392, %v1744
        %v3395 = vadd.f32 %v3393, %v1751
        %v3396 = vadd.f32 %v3394, %v1756
        %3397 = vmatprep.subr.bf16.mxu0 0
        %3398 = vmatpush1.bf16.msra.mxu0 %v3329
        %3399 = vmatprep.subr.bf16.mxu0 0
        %3400 = vmatpush1.bf16.msra.mxu0 0
        %3401 = vmatprep.subr.bf16.mxu0 0
        %3402 = vmatpush1.bf16.msra.mxu0 0
        %3403 = vmatprep.subr.bf16.mxu0 0
        %3404 = vmatpush1.bf16.msra.mxu0 0
        %3405 = vmatprep.subr.bf16.mxu0 0
        %3406 = vmatpush1.bf16.msra.mxu0 0
        %3407 = vmatprep.subr.bf16.mxu0 0
        %3408 = vmatpush1.bf16.msra.mxu0 0
        %3409 = vmatprep.subr.bf16.mxu0 0
        %3410 = vmatpush1.bf16.msra.mxu0 0
        %3411 = vmatprep.subr.bf16.mxu0 0
        %3412 = vmatpush1.bf16.msra.mxu0 0
        %3413 = vmatprep.subr.bf16.mxu0 0
        %3414 = vmatpush1.bf16.msra.mxu0 0
        %3415 = vmatprep.subr.bf16.mxu0 0
        %3416 = vmatpush1.bf16.msra.mxu0 0
        %3417 = vmatprep.subr.bf16.mxu0 0
        %3418 = vmatpush1.bf16.msra.mxu0 0
        %3419 = vmatprep.subr.bf16.mxu0 0
        %3420 = vmatpush1.bf16.msra.mxu0 0
        %3421 = vmatprep.subr.bf16.mxu0 0
        %3422 = vmatpush1.bf16.msra.mxu0 0
        %3423 = vmatprep.subr.bf16.mxu0 0
        %3424 = vmatpush1.bf16.msra.mxu0 0
        %3425 = vmatprep.subr.bf16.mxu0 0
        %3426 = vmatpush1.bf16.msra.mxu0 0
        %3427 = vmatprep.subr.bf16.mxu0 0
        %3428 = vmatpush1.bf16.msra.mxu0 0
        %3429 = vmatprep.mubr.bf16.mxu0 0
        %3430 = vmatmul.mubr.bf16.gmra.mrb[0].mxu0 %v1766
        %v3431 = vpop.f32.mrb[0].mxu0
        %v3432 = vadd.f32 0.0, %v3431
        %v3433 = vpop.f32.mrb[0].mxu0
        %v3434 = vpop.f32.mrb[0].mxu0
        %v3435 = vadd.f32 0.0, %v3434
        %v3436 = vpop.f32.mrb[0].mxu0
        %3437 = vdwg.mxu0
        %3438 = vadd.xlane.f32.xlu0 %v3432
        %v3439 = vpop.xlane.xlu0 %3438
        %3440 = vadd.xlane.f32.xlu0 %v3435
        %v3441 = vpop.xlane.xlu0 %3440
        %v3442 = vmul.f32 %v3439, %v600
        %v3443 = vmul.f32 %v3441, %v600
        %v3444 = vsub.f32 %v3432, %v3442
        %v3445 = vsub.f32 %v3435, %v3443
        %v3446 = vmul.f32 %v3444, %v3444
        %v3447 = vmul.f32 %v3445, %v3445
        %3448 = vadd.xlane.f32.xlu0 %v3446
        %v3449 = vpop.xlane.xlu0 %3448
        %3450 = vadd.xlane.f32.xlu0 %v3447
        %v3451 = vpop.xlane.xlu0 %3450
        %v3452 = vmul.f32 %v3449, %v600
        %v3453 = vmul.f32 %v3451, %v600
        %v3454 = vadd.f32 %v3452, 1e-05
        %v3455 = vadd.f32 %v3453, 1e-05
        %v3456 = vrsqrt.pop %v3454
        %v3457 = vrsqrt.pop %v3455
        %v3458 = vmul.f32 %v3444, %v3456
        %v3459 = vmul.f32 %v3445, %v3457
        %v3460 = vmul.f32 %v3458, %v1834
        %v3461 = vmul.f32 %v3459, %v1839
        %v3462 = vadd.f32 %v3460, %v1846
        %v3463 = vadd.f32 %v3461, %v1851
        %v3464 = vxor.u32 %v3462, 2147483648
        %v3465 = vxor.u32 %v3463, 2147483648
        %v3466 = vmul.f32 %v3464, 1.442695
        %v3467 = vpow.pop %v3466
        %v3468 = vmul.f32 %v3465, 1.442695
        %v3469 = vpow.pop %v3468
        %v3470 = vadd.f32 %v3467, 1.0
        %v3471 = vadd.f32 %v3469, 1.0
        %v3472 = vrcp.pop %v3470
        %v3473 = vmul.f32 1.0, %v3472
        %v3474 = vrcp.pop %v3471
        %v3475 = vmul.f32 1.0, %v3474
        %v3476 = vmul.f32 %v3395, %v3473
        %v3477 = vmul.f32 %v3396, %v3475
        %v3478 = vadd.f32 %v3327, %v3476
        %v3479 = vadd.f32 %v3328, %v3477
        %v3480 = vmul.f32 %v3478, 0.70710677
        %v3481 = vmul.f32 %v3479, 0.70710677
        %v3482 = vpack.c.bf16 %v3481, %v3480
        %3483 = vmatprep.subr.bf16.mxu0 0
        %3484 = vmatpush1.bf16.msra.mxu0 %v3482
        %3485 = vmatprep.subr.bf16.mxu0 0
        %3486 = vmatpush1.bf16.msra.mxu0 0
        %3487 = vmatprep.subr.bf16.mxu0 0
        %3488 = vmatpush1.bf16.msra.mxu0 0
        %3489 = vmatprep.subr.bf16.mxu0 0
        %3490 = vmatpush1.bf16.msra.mxu0 0
        %3491 = vmatprep.subr.bf16.mxu0 0
        %3492 = vmatpush1.bf16.msra.mxu0 0
        %3493 = vmatprep.subr.bf16.mxu0 0
        %3494 = vmatpush1.bf16.msra.mxu0 0
        %3495 = vmatprep.subr.bf16.mxu0 0
        %3496 = vmatpush1.bf16.msra.mxu0 0
        %3497 = vmatprep.subr.bf16.mxu0 0
        %3498 = vmatpush1.bf16.msra.mxu0 0
        %3499 = vmatprep.subr.bf16.mxu0 0
        %3500 = vmatpush1.bf16.msra.mxu0 0
        %3501 = vmatprep.subr.bf16.mxu0 0
        %3502 = vmatpush1.bf16.msra.mxu0 0
        %3503 = vmatprep.subr.bf16.mxu0 0
        %3504 = vmatpush1.bf16.msra.mxu0 0
        %3505 = vmatprep.subr.bf16.mxu0 0
        %3506 = vmatpush1.bf16.msra.mxu0 0
        %3507 = vmatprep.subr.bf16.mxu0 0
        %3508 = vmatpush1.bf16.msra.mxu0 0
        %3509 = vmatprep.subr.bf16.mxu0 0
        %3510 = vmatpush1.bf16.msra.mxu0 0
        %3511 = vmatprep.subr.bf16.mxu0 0
        %3512 = vmatpush1.bf16.msra.mxu0 0
        %3513 = vmatprep.subr.bf16.mxu0 0
        %3514 = vmatpush1.bf16.msra.mxu0 0
        %3515 = vmatprep.mubr.bf16.mxu0 0
        %3516 = vmatmul.mubr.bf16.gmra.mrb[0].mxu0 %v1880
        %v3517 = vpop.f32.mrb[0].mxu0
        %v3518 = vadd.f32 0.0, %v3517
        %v3519 = vpop.f32.mrb[0].mxu0
        %v3520 = vpop.f32.mrb[0].mxu0
        %v3521 = vadd.f32 0.0, %v3520
        %v3522 = vpop.f32.mrb[0].mxu0
        %3523 = vdwg.mxu0
        %3524 = vadd.xlane.f32.xlu0 %v3518
        %v3525 = vpop.xlane.xlu0 %3524
        %3526 = vadd.xlane.f32.xlu0 %v3521
        %v3527 = vpop.xlane.xlu0 %3526
        %v3528 = vmul.f32 %v3525, %v600
        %v3529 = vmul.f32 %v3527, %v600
        %v3530 = vsub.f32 %v3518, %v3528
        %v3531 = vsub.f32 %v3521, %v3529
        %v3532 = vmul.f32 %v3530, %v3530
        %v3533 = vmul.f32 %v3531, %v3531
        %3534 = vadd.xlane.f32.xlu0 %v3532
        %v3535 = vpop.xlane.xlu0 %3534
        %3536 = vadd.xlane.f32.xlu0 %v3533
        %v3537 = vpop.xlane.xlu0 %3536
        %v3538 = vmul.f32 %v3535, %v600
        %v3539 = vmul.f32 %v3537, %v600
        %v3540 = vadd.f32 %v3538, 1e-05
        %v3541 = vadd.f32 %v3539, 1e-05
        %v3542 = vrsqrt.pop %v3540
        %v3543 = vrsqrt.pop %v3541
        %v3544 = vmul.f32 %v3530, %v3542
        %v3545 = vmul.f32 %v3531, %v3543
        %v3546 = vmul.f32 %v3544, %v1948
        %v3547 = vmul.f32 %v3545, %v1953
        %v3548 = vadd.f32 %v3546, %v1960
        %v3549 = vadd.f32 %v3547, %v1965
        %3550 = vmatprep.subr.bf16.mxu0 0
        %3551 = vmatpush1.bf16.msra.mxu0 %v3482
        %3552 = vmatprep.subr.bf16.mxu0 0
        %3553 = vmatpush1.bf16.msra.mxu0 0
        %3554 = vmatprep.subr.bf16.mxu0 0
        %3555 = vmatpush1.bf16.msra.mxu0 0
        %3556 = vmatprep.subr.bf16.mxu0 0
        %3557 = vmatpush1.bf16.msra.mxu0 0
        %3558 = vmatprep.subr.bf16.mxu0 0
        %3559 = vmatpush1.bf16.msra.mxu0 0
        %3560 = vmatprep.subr.bf16.mxu0 0
        %3561 = vmatpush1.bf16.msra.mxu0 0
        %3562 = vmatprep.subr.bf16.mxu0 0
        %3563 = vmatpush1.bf16.msra.mxu0 0
        %3564 = vmatprep.subr.bf16.mxu0 0
        %3565 = vmatpush1.bf16.msra.mxu0 0
        %3566 = vmatprep.subr.bf16.mxu0 0
        %3567 = vmatpush1.bf16.msra.mxu0 0
        %3568 = vmatprep.subr.bf16.mxu0 0
        %3569 = vmatpush1.bf16.msra.mxu0 0
        %3570 = vmatprep.subr.bf16.mxu0 0
        %3571 = vmatpush1.bf16.msra.mxu0 0
        %3572 = vmatprep.subr.bf16.mxu0 0
        %3573 = vmatpush1.bf16.msra.mxu0 0
        %3574 = vmatprep.subr.bf16.mxu0 0
        %3575 = vmatpush1.bf16.msra.mxu0 0
        %3576 = vmatprep.subr.bf16.mxu0 0
        %3577 = vmatpush1.bf16.msra.mxu0 0
        %3578 = vmatprep.subr.bf16.mxu0 0
        %3579 = vmatpush1.bf16.msra.mxu0 0
        %3580 = vmatprep.subr.bf16.mxu0 0
        %3581 = vmatpush1.bf16.msra.mxu0 0
        %3582 = vmatprep.mubr.bf16.mxu0 0
        %3583 = vmatmul.mubr.bf16.gmra.mrb[0].mxu0 %v1975
        %v3584 = vpop.f32.mrb[0].mxu0
        %v3585 = vadd.f32 0.0, %v3584
        %v3586 = vpop.f32.mrb[0].mxu0
        %v3587 = vpop.f32.mrb[0].mxu0
        %v3588 = vadd.f32 0.0, %v3587
        %v3589 = vpop.f32.mrb[0].mxu0
        %3590 = vdwg.mxu0
        %3591 = vadd.xlane.f32.xlu0 %v3585
        %v3592 = vpop.xlane.xlu0 %3591
        %3593 = vadd.xlane.f32.xlu0 %v3588
        %v3594 = vpop.xlane.xlu0 %3593
        %v3595 = vmul.f32 %v3592, %v600
        %v3596 = vmul.f32 %v3594, %v600
        %v3597 = vsub.f32 %v3585, %v3595
        %v3598 = vsub.f32 %v3588, %v3596
        %v3599 = vmul.f32 %v3597, %v3597
        %v3600 = vmul.f32 %v3598, %v3598
        %3601 = vadd.xlane.f32.xlu0 %v3599
        %v3602 = vpop.xlane.xlu0 %3601
        %3603 = vadd.xlane.f32.xlu0 %v3600
        %v3604 = vpop.xlane.xlu0 %3603
        %v3605 = vmul.f32 %v3602, %v600
        %v3606 = vmul.f32 %v3604, %v600
        %v3607 = vadd.f32 %v3605, 1e-05
        %v3608 = vadd.f32 %v3606, 1e-05
        %v3609 = vrsqrt.pop %v3607
        %v3610 = vrsqrt.pop %v3608
        %v3611 = vmul.f32 %v3597, %v3609
        %v3612 = vmul.f32 %v3598, %v3610
        %v3613 = vmul.f32 %v3611, %v2043
        %v3614 = vmul.f32 %v3612, %v2048
        %v3615 = vadd.f32 %v3613, %v2055
        %v3616 = vadd.f32 %v3614, %v2060
        %v3617 = vxor.u32 %v3615, 2147483648
        %v3618 = vxor.u32 %v3616, 2147483648
        %v3619 = vmul.f32 %v3617, 1.442695
        %v3620 = vpow.pop %v3619
        %v3621 = vmul.f32 %v3618, 1.442695
        %v3622 = vpow.pop %v3621
        %v3623 = vadd.f32 %v3620, 1.0
        %v3624 = vadd.f32 %v3622, 1.0
        %v3625 = vrcp.pop %v3623
        %v3626 = vmul.f32 1.0, %v3625
        %v3627 = vrcp.pop %v3624
        %v3628 = vmul.f32 1.0, %v3627
        %v3629 = vmul.f32 %v3548, %v3626
        %v3630 = vmul.f32 %v3549, %v3628
        %v3631 = vadd.f32 %v3480, %v3629
        %v3632 = vadd.f32 %v3481, %v3630
        %v3633 = vmul.f32 %v3631, 0.70710677
        %v3634 = vmul.f32 %v3632, 0.70710677
        %v3635 = vpack.c.bf16 %v3634, %v3633
        %3636 = vmatprep.subr.bf16.mxu0 0
        %3637 = vmatpush1.bf16.msra.mxu0 %v3635
        %3638 = vmatprep.subr.bf16.mxu0 0
        %3639 = vmatpush1.bf16.msra.mxu0 0
        %3640 = vmatprep.subr.bf16.mxu0 0
        %3641 = vmatpush1.bf16.msra.mxu0 0
        %3642 = vmatprep.subr.bf16.mxu0 0
        %3643 = vmatpush1.bf16.msra.mxu0 0
        %3644 = vmatprep.subr.bf16.mxu0 0
        %3645 = vmatpush1.bf16.msra.mxu0 0
        %3646 = vmatprep.subr.bf16.mxu0 0
        %3647 = vmatpush1.bf16.msra.mxu0 0
        %3648 = vmatprep.subr.bf16.mxu0 0
        %3649 = vmatpush1.bf16.msra.mxu0 0
        %3650 = vmatprep.subr.bf16.mxu0 0
        %3651 = vmatpush1.bf16.msra.mxu0 0
        %3652 = vmatprep.subr.bf16.mxu0 0
        %3653 = vmatpush1.bf16.msra.mxu0 0
        %3654 = vmatprep.subr.bf16.mxu0 0
        %3655 = vmatpush1.bf16.msra.mxu0 0
        %3656 = vmatprep.subr.bf16.mxu0 0
        %3657 = vmatpush1.bf16.msra.mxu0 0
        %3658 = vmatprep.subr.bf16.mxu0 0
        %3659 = vmatpush1.bf16.msra.mxu0 0
        %3660 = vmatprep.subr.bf16.mxu0 0
        %3661 = vmatpush1.bf16.msra.mxu0 0
        %3662 = vmatprep.subr.bf16.mxu0 0
        %3663 = vmatpush1.bf16.msra.mxu0 0
        %3664 = vmatprep.subr.bf16.mxu0 0
        %3665 = vmatpush1.bf16.msra.mxu0 0
        %3666 = vmatprep.subr.bf16.mxu0 0
        %3667 = vmatpush1.bf16.msra.mxu0 0
        %3668 = vmatprep.mubr.bf16.mxu0 0
        %3669 = vmatmul.mubr.bf16.gmra.mrb[0].mxu0 %v2089
        %v3670 = vpop.f32.mrb[0].mxu0
        %v3671 = vadd.f32 0.0, %v3670
        %v3672 = vpop.f32.mrb[0].mxu0
        %v3673 = vpop.f32.mrb[0].mxu0
        %v3674 = vadd.f32 0.0, %v3673
        %v3675 = vpop.f32.mrb[0].mxu0
        %3676 = vdwg.mxu0
        %3677 = vadd.xlane.f32.xlu0 %v3671
        %v3678 = vpop.xlane.xlu0 %3677
        %3679 = vadd.xlane.f32.xlu0 %v3674
        %v3680 = vpop.xlane.xlu0 %3679
        %v3681 = vmul.f32 %v3678, %v600
        %v3682 = vmul.f32 %v3680, %v600
        %v3683 = vsub.f32 %v3671, %v3681
        %v3684 = vsub.f32 %v3674, %v3682
        %v3685 = vmul.f32 %v3683, %v3683
        %v3686 = vmul.f32 %v3684, %v3684
        %3687 = vadd.xlane.f32.xlu0 %v3685
        %v3688 = vpop.xlane.xlu0 %3687
        %3689 = vadd.xlane.f32.xlu0 %v3686
        %v3690 = vpop.xlane.xlu0 %3689
        %v3691 = vmul.f32 %v3688, %v600
        %v3692 = vmul.f32 %v3690, %v600
        %v3693 = vadd.f32 %v3691, 1e-05
        %v3694 = vadd.f32 %v3692, 1e-05
        %v3695 = vrsqrt.pop %v3693
        %v3696 = vrsqrt.pop %v3694
        %v3697 = vmul.f32 %v3683, %v3695
        %v3698 = vmul.f32 %v3684, %v3696
        %v3699 = vmul.f32 %v3697, %v2157
        %v3700 = vmul.f32 %v3698, %v2162
        %v3701 = vadd.f32 %v3699, %v2169
        %v3702 = vadd.f32 %v3700, %v2174
        %3703 = vmatprep.subr.bf16.mxu0 0
        %3704 = vmatpush1.bf16.msra.mxu0 %v3635
        %3705 = vmatprep.subr.bf16.mxu0 0
        %3706 = vmatpush1.bf16.msra.mxu0 0
        %3707 = vmatprep.subr.bf16.mxu0 0
        %3708 = vmatpush1.bf16.msra.mxu0 0
        %3709 = vmatprep.subr.bf16.mxu0 0
        %3710 = vmatpush1.bf16.msra.mxu0 0
        %3711 = vmatprep.subr.bf16.mxu0 0
        %3712 = vmatpush1.bf16.msra.mxu0 0
        %3713 = vmatprep.subr.bf16.mxu0 0
        %3714 = vmatpush1.bf16.msra.mxu0 0
        %3715 = vmatprep.subr.bf16.mxu0 0
        %3716 = vmatpush1.bf16.msra.mxu0 0
        %3717 = vmatprep.subr.bf16.mxu0 0
        %3718 = vmatpush1.bf16.msra.mxu0 0
        %3719 = vmatprep.subr.bf16.mxu0 0
        %3720 = vmatpush1.bf16.msra.mxu0 0
        %3721 = vmatprep.subr.bf16.mxu0 0
        %3722 = vmatpush1.bf16.msra.mxu0 0
        %3723 = vmatprep.subr.bf16.mxu0 0
        %3724 = vmatpush1.bf16.msra.mxu0 0
        %3725 = vmatprep.subr.bf16.mxu0 0
        %3726 = vmatpush1.bf16.msra.mxu0 0
        %3727 = vmatprep.subr.bf16.mxu0 0
        %3728 = vmatpush1.bf16.msra.mxu0 0
        %3729 = vmatprep.subr.bf16.mxu0 0
        %3730 = vmatpush1.bf16.msra.mxu0 0
        %3731 = vmatprep.subr.bf16.mxu0 0
        %3732 = vmatpush1.bf16.msra.mxu0 0
        %3733 = vmatprep.subr.bf16.mxu0 0
        %3734 = vmatpush1.bf16.msra.mxu0 0
        %3735 = vmatprep.mubr.bf16.mxu0 0
        %3736 = vmatmul.mubr.bf16.gmra.mrb[0].mxu0 %v2184
        %v3737 = vpop.f32.mrb[0].mxu0
        %v3738 = vadd.f32 0.0, %v3737
        %v3739 = vpop.f32.mrb[0].mxu0
        %v3740 = vpop.f32.mrb[0].mxu0
        %v3741 = vadd.f32 0.0, %v3740
        %v3742 = vpop.f32.mrb[0].mxu0
        %3743 = vdwg.mxu0
        %3744 = vadd.xlane.f32.xlu0 %v3738
        %v3745 = vpop.xlane.xlu0 %3744
        %3746 = vadd.xlane.f32.xlu0 %v3741
        %v3747 = vpop.xlane.xlu0 %3746
        %v3748 = vmul.f32 %v3745, %v600
        %v3749 = vmul.f32 %v3747, %v600
        %v3750 = vsub.f32 %v3738, %v3748
        %v3751 = vsub.f32 %v3741, %v3749
        %v3752 = vmul.f32 %v3750, %v3750
        %v3753 = vmul.f32 %v3751, %v3751
        %3754 = vadd.xlane.f32.xlu0 %v3752
        %v3755 = vpop.xlane.xlu0 %3754
        %3756 = vadd.xlane.f32.xlu0 %v3753
        %v3757 = vpop.xlane.xlu0 %3756
        %v3758 = vmul.f32 %v3755, %v600
        %v3759 = vmul.f32 %v3757, %v600
        %v3760 = vadd.f32 %v3758, 1e-05
        %v3761 = vadd.f32 %v3759, 1e-05
        %v3762 = vrsqrt.pop %v3760
        %v3763 = vrsqrt.pop %v3761
        %v3764 = vmul.f32 %v3750, %v3762
        %v3765 = vmul.f32 %v3751, %v3763
        %v3766 = vmul.f32 %v3764, %v2252
        %v3767 = vmul.f32 %v3765, %v2257
        %v3768 = vadd.f32 %v3766, %v2264
        %v3769 = vadd.f32 %v3767, %v2269
        %v3770 = vxor.u32 %v3768, 2147483648
        %v3771 = vxor.u32 %v3769, 2147483648
        %v3772 = vmul.f32 %v3770, 1.442695
        %v3773 = vpow.pop %v3772
        %v3774 = vmul.f32 %v3771, 1.442695
        %v3775 = vpow.pop %v3774
        %v3776 = vadd.f32 %v3773, 1.0
        %v3777 = vadd.f32 %v3775, 1.0
        %v3778 = vrcp.pop %v3776
        %v3779 = vmul.f32 1.0, %v3778
        %v3780 = vrcp.pop %v3777
        %v3781 = vmul.f32 1.0, %v3780
        %v3782 = vmul.f32 %v3701, %v3779
        %v3783 = vmul.f32 %v3702, %v3781
        %v3784 = vadd.f32 %v3633, %v3782
        %v3785 = vadd.f32 %v3634, %v3783
        %v3786 = vmul.f32 %v3784, 0.70710677
        %v3787 = vmul.f32 %v3785, 0.70710677
        %s3788 = scalar_lea.vmem %s444, 16 [#allocation2]
        %3789 = vst [vmem:[%s3788] sm:$0xff] %v3786
        %3790 = vst [vmem:[%s3788 + $0x8] sm:$0xff] %v3787
        %vm3791 = vcmask 0
        %3792 = vst.msk [vmem:[%s473] sm:$0x1] %vm3791, %v3177
        %s3793 = sand.u32 %s281, 1
        %s3794 = scalar_lea.sflag [#allocation3], %s3793
        %s3795 = sand.u32 %s281, 1
        %s3796 = smul.addr %s3795, 32
        %s3797 = scalar_lea.vmem [#allocation2], %s3796
        %p3798 = scmp.lt.s32.totalorder %s27, 1
        %s3799 = scalar_select %p3798, %s27, 1
        %s3800 = scalar_lea.vmem %s12, %s3799
        // Predicated region
        $region65: #{tpu_custom_call.1} parent=63 // pred_check
          %p3801 = pneg %p291
        $region66: #{tpu_custom_call.1} parent=63 // pred_check_branch
          %3803 = sbr.rel (%p3801) target = $region68
        $region67: #{tpu_custom_call.1} parent=63 // pred_region
          %s3804 = smul.u32 2, %s27
          %s3806 = ssub.s32 512, 512
          %3807 = vsyncadd %s3794, %s3806
          %s3808 = smul.addr %s3804, 2
          %s3809 = smul.addr %s3808, 128
          %s3810 = scalar_lea.hbm %s11, %s3809
          %s3811 = sshll.u32 %s3797, 4
          %s3812 = int_to_ptr.vmem [resolvable:$true] %s3811
          %3817 = dma.vmem_to_hbm [thread:$0]  %s3812, 512, %s3810, %s3794, 128, 128, 8
        $region68: #{tpu_custom_call.1} parent=63 // pred_fallthru
          _
        // Predicated region
        $region69: #{tpu_custom_call.1} parent=63 // pred_check
          %p3818 = pneg %p317
        $region70: #{tpu_custom_call.1} parent=63 // pred_check_branch
          %3820 = sbr.rel (%p3818) target = $region72
        $region71: #{tpu_custom_call.1} parent=63 // pred_region
          _
        $region72: #{tpu_custom_call.1} parent=63 // pred_fallthru
          _
      $region64: #{tpu_custom_call.1} parent=5 // pred_fallthru
        _
      %p3821 = scmp.le.s32.totalorder 2, %s22
      // Predicated region
      $region73: #{tpu_custom_call.1} parent=5 // pred_check
        %p3822 = pneg %p3821
      $region74: #{tpu_custom_call.1} parent=5 // pred_check_branch
        %3824 = sbr.rel (%p3822) target = $region76
      $region75: #{tpu_custom_call.1} parent=5 // pred_region
        %s3825 = ssub.s32 %s22, 2
        // Predicated region
        $region77: #{tpu_custom_call.1} parent=75 // pred_check
          %p3826 = pneg %p297
        $region78: #{tpu_custom_call.1} parent=75 // pred_check_branch
          %3828 = sbr.rel (%p3826) target = $region80
        $region79: #{tpu_custom_call.1} parent=75 // pred_region
          %s3829 = sand.u32 %s282, 1
          %s3830 = scalar_lea.sflag [#allocation3], %s3829
          %s3831 = sand.u32 %s282, 1
          %s3832 = smul.addr %s3831, 32
          %s3833 = scalar_lea.vmem [#allocation2], %s3832
          %3834 = dma.done %s3830, 512
        $region80: #{tpu_custom_call.1} parent=75 // pred_fallthru
          _
        // Predicated region
        $region81: #{tpu_custom_call.1} parent=75 // pred_check
          %p3835 = pneg %p323
        $region82: #{tpu_custom_call.1} parent=75 // pred_check_branch
          %3837 = sbr.rel (%p3835) target = $region84
        $region83: #{tpu_custom_call.1} parent=75 // pred_region
          %p3838 = scmp.lt.s32.totalorder %s28, 1
          %s3839 = scalar_select %p3838, %s28, 1
          %s3840 = scalar_lea.vmem %s12, %s3839
        $region84: #{tpu_custom_call.1} parent=75 // pred_fallthru
          _
      $region76: #{tpu_custom_call.1} parent=5 // pred_fallthru
        _
    $region6: #{tpu_custom_call.1} parent=1 // loop_footer
      %s26 = sadd.s32 1, %s22
    $region7: #{tpu_custom_call.1} parent=1 // loop_footer_branch
      %21 = sbr.rel target = $region3
    $region8: #{tpu_custom_call.1} parent=1 // loop_exit
      _
    %3841 = vsyncpa [#allocation3], 1
    %s3842 = scalar_lea.sflag [#allocation3], 1
    %3843 = vsyncpa %s3842, 1

</llo_original>
